<compile_context>
chip_gen: v7x
topology: tpu7x:2x2x1
jax: 0.10.0
libtpu: 0.0.40
codegen_flags: <defaults>
</compile_context>

<pallas_src>
import jax
import jax.numpy as jnp
from jax import lax
from jax.experimental import pallas as pl
from jax.experimental.pallas import tpu as pltpu

HI = lax.Precision.HIGHEST  # used only by the pure-JAX reference


def _round_up(x, m):
    return (x + m - 1) // m * m


# ----------------------------------------------------------------------------
# Kernel A: LSTM stack (grid over layers) + dot attention + concat projection
# ----------------------------------------------------------------------------
def _make_state_kernel(hidden_size, in_width, src_len):
    H, IN, S = hidden_size, in_width, src_len

    def kernel(emb_ref, enc_ref, h0_ref, c0_ref, w_ref, b_ref,
               wc_o_ref, wc_c_ref, bc_ref,
               hn_ref, cn_ref, attn_ref, cc_ref, xh_ref):
        l = pl.program_id(0)

        # Layer-0 input: the (batch-padded, IN-padded) embedding.
        @pl.when(l == 0)
        def _():
            xh_ref[:, :IN] = emb_ref[...]

        h = h0_ref[0]                                      # (B, H) f32
        c = c0_ref[0]                                      # (B, H) f32
        xh_ref[:, IN:] = h                                 # concat([x, h]) in scratch

        # ONE fused matmul per layer: (B, IN+H) @ (IN+H, 4H), bf16 in, f32 acc.
        gates = (jnp.dot(xh_ref[...].astype(jnp.bfloat16), w_ref[0],
                         preferred_element_type=jnp.float32)
                 + b_ref[0])                               # (B, 4H), order i,f,g,o
        i_g = jax.nn.sigmoid(gates[:, 0 * H:1 * H])
        f_g = jax.nn.sigmoid(gates[:, 1 * H:2 * H])
        g_g = jnp.tanh(gates[:, 2 * H:3 * H])
        o_g = jax.nn.sigmoid(gates[:, 3 * H:4 * H])

        c_new = f_g * c + i_g * g_g
        h_new = o_g * jnp.tanh(c_new)
        hn_ref[0] = h_new
        cn_ref[0] = c_new

        # Feed next layer (inter-layer dropout is identity in eval mode).
        xh_ref[:, :H] = h_new
        if IN > H:   # only when E > H: clear stale embedding lanes
            xh_ref[:, H:IN] = jnp.zeros((h_new.shape[0], IN - H), jnp.float32)

        # Attention + concat projection only after the last layer.
        @pl.when(l == pl.num_programs(0) - 1)
        def _():
            enc = enc_ref[...]                             # (B, Sp, H) bf16
            # q=1 scores: VPU multiply + lane reduce (not 1-row MXU matmuls).
            scores = jnp.sum(h_new[:, None, :] * enc, axis=2)      # (B, Sp) f32
            pos = lax.broadcasted_iota(jnp.int32, scores.shape, 1)
            scores = jnp.where(pos < S, scores, -1e30)     # mask source padding
            m = jnp.max(scores, axis=1, keepdims=True)
            e = jnp.exp(scores - m)
            attn = e / jnp.sum(e, axis=1, keepdims=True)   # (B, Sp)
            attn_ref[...] = attn

            # context = attn @ enc, also on the VPU (q=1).
            context = jnp.sum(attn[:, :, None] * enc, axis=1)      # (B, H) f32

            # concat([out, ctx]) @ Wc.T == out @ Wc_o + ctx @ Wc_c (pre-split/T).
            cc_ref[...] = jnp.tanh(
                jnp.dot(h_new.astype(jnp.bfloat16), wc_o_ref[...],
                        preferred_element_type=jnp.float32)
                + jnp.dot(context.astype(jnp.bfloat16), wc_c_ref[...],
                          preferred_element_type=jnp.float32)
                + bc_ref[...])

    return kernel


# ----------------------------------------------------------------------------
# Kernel B: vocab projection, tiled over V (embarrassingly parallel grid)
# ----------------------------------------------------------------------------
def _vocab_proj_kernel(cc_ref, wf_ref, bf_ref, logits_ref):
    logits_ref[...] = (
        jnp.dot(cc_ref[...].astype(jnp.bfloat16), wf_ref[...],
                preferred_element_type=jnp.float32)
        + bf_ref[...])


# ----------------------------------------------------------------------------
# One-time host-side preparation (hoisted out of the decode loop)
# ----------------------------------------------------------------------------
def _pick_tile_v(hidden, vocab, b_pad=8, vmem_budget_bytes=24 * 1024 * 1024):
    """VMEM-aware vocab tile: 2x (double-buffer) bf16 weight column + 2x f32
    output column + f32 bias column per lane of V must fit the budget."""
    per_lane = 2 * hidden * 2 + 2 * b_pad * 4 + 2 * 4
    tile = vmem_budget_bytes // per_lane
    tile = max(128, min(4096, (tile // 128) * 128))
    tile = min(tile, _round_up(vocab, 128))
    return tile


def prepare_kernel_params(params):
    """Fuse biases, stack & pre-transpose weights (bf16), pad the vocab
    projection to a lane-dense, even tile count."""
    L = len(params['w_ih'])
    H = params['w_hh'][0].shape[1]
    E = params['w_ih'][0].shape[1]
    V = params['fc_w'].shape[0]
    IN = max(E, H)

    tile_v = _pick_tile_v(H, V)
    v_pad = _round_up(V, tile_v)
    n_tiles = v_pad // tile_v
    if n_tiles > 1 and n_tiles % 2 == 1:
        n_tiles += 1                      # even tile count keeps v7x's 2 TCs balanced
        v_pad = n_tiles * tile_v

    # Stacked per-layer LSTM weights: rows [0:in_l] = w_ih.T, [IN:IN+H] = w_hh.T.
    w_stack = jnp.zeros((L, IN + H, 4 * H), jnp.float32)
    b_stack = jnp.zeros((L, 1, 4 * H), jnp.float32)
    for l in range(L):
        in_l = params['w_ih'][l].shape[1]
        w_stack = w_stack.at[l, :in_l, :].set(params['w_ih'][l].T)
        w_stack = w_stack.at[l, IN:, :].set(params['w_hh'][l].T)
        b_stack = b_stack.at[l, 0, :].set(params['b_ih'][l] + params['b_hh'][l])

    kp = {
        'embedding': params['embedding'].astype(jnp.float32),
        'w_stack': w_stack.astype(jnp.bfloat16),                    # (L, IN+H, 4H)
        'b_stack': b_stack,                                         # (L, 1, 4H) f32
        'wc_o_t': params['concat_w'][:, :H].T.astype(jnp.bfloat16),  # (H, H)
        'wc_c_t': params['concat_w'][:, H:].T.astype(jnp.bfloat16),  # (H, H)
        'bc': params['concat_b'].reshape(1, H).astype(jnp.float32),
        'fc_w_t': jnp.zeros((H, v_pad), jnp.bfloat16).at[:, :V].set(
            params['fc_w'].T.astype(jnp.bfloat16)),
        'fc_b': jnp.zeros((1, v_pad), jnp.float32).at[:, :V].set(
            params['fc_b'].reshape(1, V)),
        'tile_v': tile_v, 'v_pad': v_pad, 'vocab': V,
        'num_layers': L, 'hidden': H, 'emb': E, 'in_width': IN,
    }
    return kp


def prepare_encoder_states(encoder_states):
    """(S, B, H) f32 -> (B_pad, Sp, H) bf16, Sp padded to a multiple of 128 and
    B padded to a multiple of 8.  Do this ONCE per source sequence."""
    S, B, H = encoder_states.shape
    s_pad = _round_up(S, 128)
    b_pad = _round_up(B, 8)
    enc = jnp.transpose(encoder_states, (1, 0, 2))
    enc = jnp.pad(enc, ((0, b_pad - B), (0, s_pad - S), (0, 0)))
    return enc.astype(jnp.bfloat16), S


# ----------------------------------------------------------------------------
# Forward wrapper (one decode step)
# ----------------------------------------------------------------------------
def decoder_attention_lstm_forward(x_tokens, enc_bsh, src_len, hidden, cell, kp):
    """x_tokens:(B,), enc_bsh:(B_pad,Sp,H) prepared bf16, hidden/cell:(L,B,H)
    -> (log_probs (B,V), hidden (L,B,H), cell (L,B,H), attn (B,S))."""
    B = x_tokens.shape[0]
    L, H, V = kp['num_layers'], kp['hidden'], kp['vocab']
    E, IN = kp['emb'], kp['in_width']
    tile_v, v_pad = kp['tile_v'], kp['v_pad']
    B_pad, Sp, _ = enc_bsh.shape

    # Batch pad once (sublane-aligned outputs), slice off on return.
    emb = jnp.take(kp['embedding'], x_tokens, axis=0)                 # (B, E) gather glue
    emb_p = jnp.zeros((B_pad, IN), jnp.float32).at[:B, :E].set(emb)
    h_p = jnp.zeros((L, B_pad, H), jnp.float32).at[:, :B].set(hidden)
    c_p = jnp.zeros((L, B_pad, H), jnp.float32).at[:, :B].set(cell)

    hn, cn, attn_p, cc = pl.pallas_call(
        _make_state_kernel(H, IN, src_len),
        out_shape=(
            jax.ShapeDtypeStruct((L, B_pad, H), jnp.float32),   # new hidden
            jax.ShapeDtypeStruct((L, B_pad, H), jnp.float32),   # new cell
            jax.ShapeDtypeStruct((B_pad, Sp), jnp.float32),     # attention (padded S)
            jax.ShapeDtypeStruct((B_pad, H), jnp.float32),      # tanh(concat(...))
        ),
        grid=(L,),
        in_specs=[
            pl.BlockSpec((B_pad, IN), lambda l: (0, 0)),             # emb (resident)
            pl.BlockSpec((B_pad, Sp, H), lambda l: (0, 0, 0)),       # enc bf16 (resident)
            pl.BlockSpec((1, B_pad, H), lambda l: (l, 0, 0)),        # h0[l]
            pl.BlockSpec((1, B_pad, H), lambda l: (l, 0, 0)),        # c0[l]
            pl.BlockSpec((1, IN + H, 4 * H), lambda l: (l, 0, 0)),   # stacked weights[l]
            pl.BlockSpec((1, 1, 4 * H), lambda l: (l, 0, 0)),        # fused bias[l]
            pl.BlockSpec((H, H), lambda l: (0, 0)),                  # Wc "out" half
            pl.BlockSpec((H, H), lambda l: (0, 0)),                  # Wc "context" half
            pl.BlockSpec((1, H), lambda l: (0, 0)),                  # bc
        ],
        out_specs=(
            pl.BlockSpec((1, B_pad, H), lambda l: (l, 0, 0)),
            pl.BlockSpec((1, B_pad, H), lambda l: (l, 0, 0)),
            pl.BlockSpec((B_pad, Sp), lambda l: (0, 0)),
            pl.BlockSpec((B_pad, H), lambda l: (0, 0)),
        ),
        scratch_shapes=[pltpu.VMEM((B_pad, IN + H), jnp.float32)],   # [x, h] carry
        compiler_params=pltpu.CompilerParams(
            dimension_semantics=("arbitrary",),
            vmem_limit_bytes=48 * 1024 * 1024),
    )(emb_p, enc_bsh, h_p, c_p, kp['w_stack'], kp['b_stack'],
      kp['wc_o_t'], kp['wc_c_t'], kp['bc'])

    # Vocab projection: 1-D "parallel" grid over V tiles (shards across the two
    # v7x TensorCores; bf16 fc_w tiles streamed/double-buffered by BlockSpec).
    logits_p = pl.pallas_call(
        _vocab_proj_kernel,
        out_shape=jax.ShapeDtypeStruct((B_pad, v_pad), jnp.float32),
        grid=(v_pad // tile_v,),
        in_specs=[
            pl.BlockSpec((B_pad, H), lambda j: (0, 0)),      # cc stays resident
            pl.BlockSpec((H, tile_v), lambda j: (0, j)),     # fc_w.T tile (bf16)
            pl.BlockSpec((1, tile_v), lambda j: (0, j)),     # fc_b tile
        ],
        out_specs=pl.BlockSpec((B_pad, tile_v), lambda j: (0, j)),
        compiler_params=pltpu.CompilerParams(
            dimension_semantics=("parallel",),
            vmem_limit_bytes=32 * 1024 * 1024),
    )(cc, kp['fc_w_t'], kp['fc_b'])

    # Final normalization in the wrapper keeps every vocab tile independent;
    # padded columns/rows are sliced off first, so they never affect results.
    logits = logits_p[:B, :V]
    logp = jax.nn.log_softmax(logits, axis=1)
    return logp, hn[:, :B], cn[:, :B], attn_p[:B, :src_len]


# ----------------------------------------------------------------------------
# Pure-JAX mirror of the PyTorch forward (eval mode) for verification
# ----------------------------------------------------------------------------
def reference_forward(x_tokens, encoder_states, hidden, cell, params):
    emb = jnp.take(params['embedding'], x_tokens, axis=0)
    L, B, H = hidden.shape
    x = emb
    hs, cs = [], []
    for l in range(L):
        gates = (jnp.dot(x, params['w_ih'][l].T, precision=HI) + params['b_ih'][l]
                 + jnp.dot(hidden[l], params['w_hh'][l].T, precision=HI) + params['b_hh'][l])
        i = jax.nn.sigmoid(gates[:, :H])
        f = jax.nn.sigmoid(gates[:, H:2 * H])
        g = jnp.tanh(gates[:, 2 * H:3 * H])
        o = jax.nn.sigmoid(gates[:, 3 * H:])
        c_new = f * cell[l] + i * g
        h_new = o * jnp.tanh(c_new)
        hs.append(h_new)
        cs.append(c_new)
        x = h_new
    out = x                                                        # (B, H)
    scores = jnp.sum(out[None, :, :] * encoder_states, axis=2)     # (S, B)
    attn = jax.nn.softmax(scores.T, axis=1)                        # (B, S)
    context = jnp.einsum('bs,bsh->bh', attn,
                         jnp.transpose(encoder_states, (1, 0, 2)), precision=HI)
    concat_in = jnp.concatenate([out, context], axis=1)
    cc = jnp.tanh(jnp.dot(concat_in, params['concat_w'].T, precision=HI) + params['concat_b'])
    logits = jnp.dot(cc, params['fc_w'].T, precision=HI) + params['fc_b']
    logp = jax.nn.log_softmax(logits, axis=1)
    return logp, jnp.stack(hs), jnp.stack(cs), attn


def init_params(key, vocab_size, emb_size, hidden_size, num_layers):
    keys = iter(jax.random.split(key, 8 + 4 * num_layers))
    scale = 0.1
    p = {
        'embedding': scale * jax.random.normal(next(keys), (vocab_size, emb_size), jnp.float32),
        'w_ih': [], 'w_hh': [], 'b_ih': [], 'b_hh': [],
    }
    for l in range(num_layers):
        in_l = emb_size if l == 0 else hidden_size
        p['w_ih'].append(scale * jax.random.normal(next(keys), (4 * hidden_size, in_l), jnp.float32))
        p['w_hh'].append(scale * jax.random.normal(next(keys), (4 * hidden_size, hidden_size), jnp.float32))
        p['b_ih'].append(scale * jax.random.normal(next(keys), (4 * hidden_size,), jnp.float32))
        p['b_hh'].append(scale * jax.random.normal(next(keys), (4 * hidden_size,), jnp.float32))
    p['concat_w'] = scale * jax.random.normal(next(keys), (hidden_size, 2 * hidden_size), jnp.float32)
    p['concat_b'] = scale * jax.random.normal(next(keys), (hidden_size,), jnp.float32)
    p['fc_w'] = scale * jax.random.normal(next(keys), (vocab_size, hidden_size), jnp.float32)
    p['fc_b'] = scale * jax.random.normal(next(keys), (vocab_size,), jnp.float32)
    return p


if __name__ == "__main__":
    B, S, H, E, L, V = 2, 8, 32, 16, 2, 20   # batch, src_len, hidden, emb, layers, vocab

    key = jax.random.PRNGKey(0)
    k_par, k_x, k_enc, k_h, k_c = jax.random.split(key, 5)
    params = init_params(k_par, V, E, H, L)
    kparams = prepare_kernel_params(params)                 # one-time weight prep

    x_tokens = jax.random.randint(k_x, (B,), 0, V, dtype=jnp.int32)
    encoder_states = jax.random.normal(k_enc, (S, B, H), jnp.float32)
    hidden = jax.random.normal(k_h, (L, B, H), jnp.float32)
    cell = jax.random.normal(k_c, (L, B, H), jnp.float32)

    enc_bsh, src_len = prepare_encoder_states(encoder_states)   # hoisted out of decode loop

    outs = decoder_attention_lstm_forward(x_tokens, enc_bsh, src_len, hidden, cell, kparams)
    outs = jax.block_until_ready(outs)

    refs = reference_forward(x_tokens, encoder_states, hidden, cell, params)
    names = ["log_probs", "hidden", "cell", "attn"]
    # Tolerance reflects bf16 weights / bf16 encoder states with f32 accumulation
    # (same error class as default-precision MXU, which this test passed before).
    for name, a, b in zip(names, outs, refs):
        assert a.shape == b.shape, (name, a.shape, b.shape)
        assert jnp.allclose(a, b, atol=3e-2, rtol=3e-2), (
            name, float(jnp.max(jnp.abs(a - b))))

    print("KERNEL_OK")
</pallas_src>

<mosaic_0001>
module attributes {stable_mosaic.version = 11 : i64} {
  func.func @kernel(%arg0: i32, %arg1: memref<8x32xf32, #tpu.memory_space<vmem>>, %arg2: memref<8x128x32xbf16, #tpu.memory_space<vmem>>, %arg3: memref<1x8x32xf32, #tpu.memory_space<vmem>>, %arg4: memref<1x8x32xf32, #tpu.memory_space<vmem>>, %arg5: memref<1x64x128xbf16, #tpu.memory_space<vmem>>, %arg6: memref<1x1x128xf32, #tpu.memory_space<vmem>>, %arg7: memref<32x32xbf16, #tpu.memory_space<vmem>>, %arg8: memref<32x32xbf16, #tpu.memory_space<vmem>>, %arg9: memref<1x32xf32, #tpu.memory_space<vmem>>, %arg10: memref<1x8x32xf32, #tpu.memory_space<vmem>>, %arg11: memref<1x8x32xf32, #tpu.memory_space<vmem>>, %arg12: memref<8x128xf32, #tpu.memory_space<vmem>>, %arg13: memref<8x32xf32, #tpu.memory_space<vmem>>, %arg14: memref<8x64xf32, #tpu.memory_space<vmem>>) attributes {dimension_semantics = [#tpu.dimension_semantics<arbitrary>], iteration_bounds = array<i64: 2>, scalar_prefetch = 0 : i64, scratch_operands = 1 : i64, tpu.core_type = #tpu.core_type<tc>, window_params = [{pipeline_mode = #tpu.pipeline_mode<synchronous>, transform_indices = @transform_0, window_bounds = array<i64: 8, 32>}, {pipeline_mode = #tpu.pipeline_mode<synchronous>, transform_indices = @transform_1, window_bounds = array<i64: 8, 128, 32>}, {transform_indices = @transform_2, window_bounds = array<i64: 1, 8, 32>}, {transform_indices = @transform_3, window_bounds = array<i64: 1, 8, 32>}, {transform_indices = @transform_4, window_bounds = array<i64: 1, 64, 128>}, {transform_indices = @transform_5, window_bounds = array<i64: 1, 1, 128>}, {pipeline_mode = #tpu.pipeline_mode<synchronous>, transform_indices = @transform_6, window_bounds = array<i64: 32, 32>}, {pipeline_mode = #tpu.pipeline_mode<synchronous>, transform_indices = @transform_7, window_bounds = array<i64: 32, 32>}, {pipeline_mode = #tpu.pipeline_mode<synchronous>, transform_indices = @transform_8, window_bounds = array<i64: 1, 32>}, {transform_indices = @transform_9, window_bounds = array<i64: 1, 8, 32>}, {transform_indices = @transform_10, window_bounds = array<i64: 1, 8, 32>}, {pipeline_mode = #tpu.pipeline_mode<synchronous>, transform_indices = @transform_11, window_bounds = array<i64: 8, 128>}, {pipeline_mode = #tpu.pipeline_mode<synchronous>, transform_indices = @transform_12, window_bounds = array<i64: 8, 32>}]} {
    %c0_i32 = arith.constant 0 : i32
    %0 = arith.cmpi eq, %arg0, %c0_i32 : i32
    %1 = arith.extui %0 : i1 to i32
    %c0_i32_0 = arith.constant 0 : i32
    %2 = arith.cmpi ne, %1, %c0_i32_0 : i32
    scf.if %2 {
      %c0_27 = arith.constant 0 : index
      %c0_28 = arith.constant 0 : index
      %52 = vector.load %arg1[%c0_27, %c0_28] : memref<8x32xf32, #tpu.memory_space<vmem>>, vector<8x32xf32>
      %c0_29 = arith.constant 0 : index
      %c0_30 = arith.constant 0 : index
      %53 = vector.load %arg14[%c0_29, %c0_30] : memref<8x64xf32, #tpu.memory_space<vmem>>, vector<8x32xf32>
      tpu.vector_store %arg14[%c0_29, %c0_30], %52 {strides = array<i32>} : memref<8x64xf32, #tpu.memory_space<vmem>>, vector<8x32xf32>,
    } else {
    }
    %c0 = arith.constant 0 : index
    %c0_1 = arith.constant 0 : index
    %c0_2 = arith.constant 0 : index
    %3 = vector.load %arg3[%c0, %c0_1, %c0_2] : memref<1x8x32xf32, #tpu.memory_space<vmem>>, vector<1x8x32xf32>
    %4 = vector.shape_cast %3 : vector<1x8x32xf32> to vector<8x32xf32>
    %c0_3 = arith.constant 0 : index
    %c0_4 = arith.constant 0 : index
    %c0_5 = arith.constant 0 : index
    %5 = vector.load %arg4[%c0_3, %c0_4, %c0_5] : memref<1x8x32xf32, #tpu.memory_space<vmem>>, vector<1x8x32xf32>
    %6 = vector.shape_cast %5 : vector<1x8x32xf32> to vector<8x32xf32>
    %c0_6 = arith.constant 0 : index
    %c32 = arith.constant 32 : index
    %7 = vector.load %arg14[%c0_6, %c32] : memref<8x64xf32, #tpu.memory_space<vmem>>, vector<8x32xf32>
    tpu.vector_store %arg14[%c0_6, %c32], %4 {strides = array<i32>} : memref<8x64xf32, #tpu.memory_space<vmem>>, vector<8x32xf32>,
    %c0_7 = arith.constant 0 : index
    %c0_8 = arith.constant 0 : index
    %8 = vector.load %arg14[%c0_7, %c0_8] : memref<8x64xf32, #tpu.memory_space<vmem>>, vector<8x64xf32>
    %9 = arith.truncf %8 : vector<8x64xf32> to vector<8x64xbf16>
    %c0_9 = arith.constant 0 : index
    %c0_10 = arith.constant 0 : index
    %c0_11 = arith.constant 0 : index
    %10 = vector.load %arg5[%c0_9, %c0_10, %c0_11] : memref<1x64x128xbf16, #tpu.memory_space<vmem>>, vector<1x64x128xbf16>
    %11 = vector.shape_cast %10 : vector<1x64x128xbf16> to vector<64x128xbf16>
    %cst = arith.constant dense<0.000000e+00> : vector<8x128xf32>
    %12 = tpu.matmul %9, %11, %cst {dimension_numbers = #tpu.dot_dimension_numbers<[1], [0], [0], [1], [0, 0, 1, 1], [], []>} : vector<8x64xbf16>, vector<64x128xbf16>, vector<8x128xf32> -> vector<8x128xf32>
    %c0_12 = arith.constant 0 : index
    %c0_13 = arith.constant 0 : index
    %c0_14 = arith.constant 0 : index
    %13 = vector.load %arg6[%c0_12, %c0_13, %c0_14] : memref<1x1x128xf32, #tpu.memory_space<vmem>>, vector<1x1x128xf32>
    %14 = vector.shape_cast %13 : vector<1x1x128xf32> to vector<1x128xf32>
    %15 = vector.broadcast %14 : vector<1x128xf32> to vector<8x128xf32>
    %16 = arith.addf %12, %15 : vector<8x128xf32>
    %17 = vector.extract_strided_slice %16 {offsets = [0, 0], sizes = [8, 32], strides = [1, 1]} : vector<8x128xf32> to vector<8x32xf32>
    %18 = arith.negf %17 : vector<8x32xf32>
    %19 = math.exp %18 : vector<8x32xf32>
    %cst_15 = arith.constant 1.000000e+00 : f32
    %20 = vector.broadcast %cst_15 : f32 to vector<8x32xf32>
    %21 = arith.addf %20, %19 : vector<8x32xf32>
    %22 = arith.divf %20, %21 : vector<8x32xf32>
    %23 = vector.extract_strided_slice %16 {offsets = [0, 32], sizes = [8, 32], strides = [1, 1]} : vector<8x128xf32> to vector<8x32xf32>
    %24 = arith.negf %23 : vector<8x32xf32>
    %25 = math.exp %24 : vector<8x32xf32>
    %cst_16 = arith.constant 1.000000e+00 : f32
    %26 = vector.broadcast %cst_16 : f32 to vector<8x32xf32>
    %27 = arith.addf %26, %25 : vector<8x32xf32>
    %28 = arith.divf %26, %27 : vector<8x32xf32>
    %29 = vector.extract_strided_slice %16 {offsets = [0, 64], sizes = [8, 32], strides = [1, 1]} : vector<8x128xf32> to vector<8x32xf32>
    %30 = math.tanh %29 : vector<8x32xf32>
    %31 = vector.extract_strided_slice %16 {offsets = [0, 96], sizes = [8, 32], strides = [1, 1]} : vector<8x128xf32> to vector<8x32xf32>
    %32 = arith.negf %31 : vector<8x32xf32>
    %33 = math.exp %32 : vector<8x32xf32>
    %cst_17 = arith.constant 1.000000e+00 : f32
    %34 = vector.broadcast %cst_17 : f32 to vector<8x32xf32>
    %35 = arith.addf %34, %33 : vector<8x32xf32>
    %36 = arith.divf %34, %35 : vector<8x32xf32>
    %37 = arith.mulf %28, %6 : vector<8x32xf32>
    %38 = arith.mulf %22, %30 : vector<8x32xf32>
    %39 = arith.addf %37, %38 : vector<8x32xf32>
    %40 = math.tanh %39 : vector<8x32xf32>
    %41 = arith.mulf %36, %40 : vector<8x32xf32>
    %c0_18 = arith.constant 0 : index
    %c0_19 = arith.constant 0 : index
    %c0_20 = arith.constant 0 : index
    %42 = vector.load %arg10[%c0_18, %c0_19, %c0_20] : memref<1x8x32xf32, #tpu.memory_space<vmem>>, vector<1x8x32xf32>
    %43 = vector.shape_cast %42 : vector<1x8x32xf32> to vector<8x32xf32>
    %44 = vector.shape_cast %41 : vector<8x32xf32> to vector<1x8x32xf32>
    tpu.vector_store %arg10[%c0_18, %c0_19, %c0_20], %44 {strides = array<i32>} : memref<1x8x32xf32, #tpu.memory_space<vmem>>, vector<1x8x32xf32>,
    %c0_21 = arith.constant 0 : index
    %c0_22 = arith.constant 0 : index
    %c0_23 = arith.constant 0 : index
    %45 = vector.load %arg11[%c0_21, %c0_22, %c0_23] : memref<1x8x32xf32, #tpu.memory_space<vmem>>, vector<1x8x32xf32>
    %46 = vector.shape_cast %45 : vector<1x8x32xf32> to vector<8x32xf32>
    %47 = vector.shape_cast %39 : vector<8x32xf32> to vector<1x8x32xf32>
    tpu.vector_store %arg11[%c0_21, %c0_22, %c0_23], %47 {strides = array<i32>} : memref<1x8x32xf32, #tpu.memory_space<vmem>>, vector<1x8x32xf32>,
    %c0_24 = arith.constant 0 : index
    %c0_25 = arith.constant 0 : index
    %48 = vector.load %arg14[%c0_24, %c0_25] : memref<8x64xf32, #tpu.memory_space<vmem>>, vector<8x32xf32>
    tpu.vector_store %arg14[%c0_24, %c0_25], %41 {strides = array<i32>} : memref<8x64xf32, #tpu.memory_space<vmem>>, vector<8x32xf32>,
    %c1_i32 = arith.constant 1 : i32
    %49 = arith.cmpi eq, %arg0, %c1_i32 : i32
    %50 = arith.extui %49 : i1 to i32
    %c0_i32_26 = arith.constant 0 : i32
    %51 = arith.cmpi ne, %50, %c0_i32_26 : i32
    scf.if %51 {
      %c0_27 = arith.constant 0 : index
      %c0_28 = arith.constant 0 : index
      %c0_29 = arith.constant 0 : index
      %52 = vector.load %arg2[%c0_27, %c0_28, %c0_29] : memref<8x128x32xbf16, #tpu.memory_space<vmem>>, vector<8x128x32xbf16>
      %53 = vector.shape_cast %41 : vector<8x32xf32> to vector<8x1x32xf32>
      %54 = arith.extf %52 : vector<8x128x32xbf16> to vector<8x128x32xf32>
      %55 = vector.broadcast %53 : vector<8x1x32xf32> to vector<8x128x32xf32>
      %56 = arith.mulf %55, %54 : vector<8x128x32xf32>
      %cst_30 = arith.constant dense<0.000000e+00> : vector<8x128xf32>
      %57 = vector.multi_reduction <add>, %56, %cst_30 [2] : vector<8x128x32xf32> to vector<8x128xf32>
      %58 = tpu.iota {dimensions = array<i32: 1>} : vector<8x128xi32>
      %c8_i32 = arith.constant 8 : i32
      %59 = vector.broadcast %c8_i32 : i32 to vector<8x128xi32>
      %60 = arith.cmpi slt, %58, %59 : vector<8x128xi32>
      %cst_31 = arith.constant -1.000000e+30 : f32
      %61 = vector.broadcast %cst_31 : f32 to vector<8x128xf32>
      %62 = arith.select %60, %57, %61 : vector<8x128xi1>, vector<8x128xf32>
      %cst_32 = arith.constant dense<0xFF800000> : vector<8xf32>
      %63 = vector.multi_reduction <maximumf>, %62, %cst_32 [1] : vector<8x128xf32> to vector<8xf32>
      %64 = vector.shape_cast %63 : vector<8xf32> to vector<8x1xf32>
      %65 = vector.broadcast %64 : vector<8x1xf32> to vector<8x128xf32>
      %66 = arith.subf %62, %65 : vector<8x128xf32>
      %67 = math.exp %66 : vector<8x128xf32>
      %cst_33 = arith.constant dense<0.000000e+00> : vector<8xf32>
      %68 = vector.multi_reduction <add>, %67, %cst_33 [1] : vector<8x128xf32> to vector<8xf32>
      %69 = vector.shape_cast %68 : vector<8xf32> to vector<8x1xf32>
      %70 = vector.broadcast %69 : vector<8x1xf32> to vector<8x128xf32>
      %71 = arith.divf %67, %70 : vector<8x128xf32>
      %c0_34 = arith.constant 0 : index
      %c0_35 = arith.constant 0 : index
      %72 = vector.load %arg12[%c0_34, %c0_35] : memref<8x128xf32, #tpu.memory_space<vmem>>, vector<8x128xf32>
      tpu.vector_store %arg12[%c0_34, %c0_35], %71 {strides = array<i32>} : memref<8x128xf32, #tpu.memory_space<vmem>>, vector<8x128xf32>,
      %73 = vector.shape_cast %71 : vector<8x128xf32> to vector<8x128x1xf32>
      %74 = arith.extf %52 : vector<8x128x32xbf16> to vector<8x128x32xf32>
      %75 = vector.broadcast %73 : vector<8x128x1xf32> to vector<8x128x32xf32>
      %76 = arith.mulf %75, %74 : vector<8x128x32xf32>
      %cst_36 = arith.constant dense<0.000000e+00> : vector<8x32xf32>
      %77 = vector.multi_reduction <add>, %76, %cst_36 [1] : vector<8x128x32xf32> to vector<8x32xf32>
      %78 = arith.truncf %41 : vector<8x32xf32> to vector<8x32xbf16>
      %c0_37 = arith.constant 0 : index
      %c0_38 = arith.constant 0 : index
      %79 = vector.load %arg7[%c0_37, %c0_38] : memref<32x32xbf16, #tpu.memory_space<vmem>>, vector<32x32xbf16>
      %cst_39 = arith.constant dense<0.000000e+00> : vector<8x32xf32>
      %80 = tpu.matmul %78, %79, %cst_39 {dimension_numbers = #tpu.dot_dimension_numbers<[1], [0], [0], [1], [0, 0, 1, 1], [], []>} : vector<8x32xbf16>, vector<32x32xbf16>, vector<8x32xf32> -> vector<8x32xf32>
      %81 = arith.truncf %77 : vector<8x32xf32> to vector<8x32xbf16>
      %c0_40 = arith.constant 0 : index
      %c0_41 = arith.constant 0 : index
      %82 = vector.load %arg8[%c0_40, %c0_41] : memref<32x32xbf16, #tpu.memory_space<vmem>>, vector<32x32xbf16>
      %cst_42 = arith.constant dense<0.000000e+00> : vector<8x32xf32>
      %83 = tpu.matmul %81, %82, %cst_42 {dimension_numbers = #tpu.dot_dimension_numbers<[1], [0], [0], [1], [0, 0, 1, 1], [], []>} : vector<8x32xbf16>, vector<32x32xbf16>, vector<8x32xf32> -> vector<8x32xf32>
      %84 = arith.addf %80, %83 : vector<8x32xf32>
      %c0_43 = arith.constant 0 : index
      %c0_44 = arith.constant 0 : index
      %85 = vector.load %arg9[%c0_43, %c0_44] : memref<1x32xf32, #tpu.memory_space<vmem>>, vector<1x32xf32>
      %86 = vector.broadcast %85 : vector<1x32xf32> to vector<8x32xf32>
      %87 = arith.addf %84, %86 : vector<8x32xf32>
      %88 = math.tanh %87 : vector<8x32xf32>
      %c0_45 = arith.constant 0 : index
      %c0_46 = arith.constant 0 : index
      %89 = vector.load %arg13[%c0_45, %c0_46] : memref<8x32xf32, #tpu.memory_space<vmem>>, vector<8x32xf32>
      tpu.vector_store %arg13[%c0_45, %c0_46], %88 {strides = array<i32>} : memref<8x32xf32, #tpu.memory_space<vmem>>, vector<8x32xf32>,
    } else {
    }
    return
  }
  func.func @transform_0(%arg0: i32) -> (i32, i32) {
    %c0_i32 = arith.constant 0 : i32
    %c0_i32_0 = arith.constant 0 : i32
    %c0_i32_1 = arith.constant 0 : i32
    return %c0_i32, %c0_i32_0 : i32, i32
  }
  func.func @transform_1(%arg0: i32) -> (i32, i32, i32) {
    %c0_i32 = arith.constant 0 : i32
    %c0_i32_0 = arith.constant 0 : i32
    %c0_i32_1 = arith.constant 0 : i32
    %c0_i32_2 = arith.constant 0 : i32
    return %c0_i32, %c0_i32_0, %c0_i32_1 : i32, i32, i32
  }
  func.func @transform_2(%arg0: i32) -> (i32, i32, i32) {
    %c0_i32 = arith.constant 0 : i32
    %c0_i32_0 = arith.constant 0 : i32
    %c0_i32_1 = arith.constant 0 : i32
    return %arg0, %c0_i32, %c0_i32_0 : i32, i32, i32
  }
  func.func @transform_3(%arg0: i32) -> (i32, i32, i32) {
    %c0_i32 = arith.constant 0 : i32
    %c0_i32_0 = arith.constant 0 : i32
    %c0_i32_1 = arith.constant 0 : i32
    return %arg0, %c0_i32, %c0_i32_0 : i32, i32, i32
  }
  func.func @transform_4(%arg0: i32) -> (i32, i32, i32) {
    %c0_i32 = arith.constant 0 : i32
    %c0_i32_0 = arith.constant 0 : i32
    %c0_i32_1 = arith.constant 0 : i32
    return %arg0, %c0_i32, %c0_i32_0 : i32, i32, i32
  }
  func.func @transform_5(%arg0: i32) -> (i32, i32, i32) {
    %c0_i32 = arith.constant 0 : i32
    %c0_i32_0 = arith.constant 0 : i32
    %c0_i32_1 = arith.constant 0 : i32
    return %arg0, %c0_i32, %c0_i32_0 : i32, i32, i32
  }
  func.func @transform_6(%arg0: i32) -> (i32, i32) {
    %c0_i32 = arith.constant 0 : i32
    %c0_i32_0 = arith.constant 0 : i32
    %c0_i32_1 = arith.constant 0 : i32
    return %c0_i32, %c0_i32_0 : i32, i32
  }
  func.func @transform_7(%arg0: i32) -> (i32, i32) {
    %c0_i32 = arith.constant 0 : i32
    %c0_i32_0 = arith.constant 0 : i32
    %c0_i32_1 = arith.constant 0 : i32
    return %c0_i32, %c0_i32_0 : i32, i32
  }
  func.func @transform_8(%arg0: i32) -> (i32, i32) {
    %c0_i32 = arith.constant 0 : i32
    %c0_i32_0 = arith.constant 0 : i32
    %c0_i32_1 = arith.constant 0 : i32
    return %c0_i32, %c0_i32_0 : i32, i32
  }
  func.func @transform_9(%arg0: i32) -> (i32, i32, i32) {
    %c0_i32 = arith.constant 0 : i32
    %c0_i32_0 = arith.constant 0 : i32
    %c0_i32_1 = arith.constant 0 : i32
    return %arg0, %c0_i32, %c0_i32_0 : i32, i32, i32
  }
  func.func @transform_10(%arg0: i32) -> (i32, i32, i32) {
    %c0_i32 = arith.constant 0 : i32
    %c0_i32_0 = arith.constant 0 : i32
    %c0_i32_1 = arith.constant 0 : i32
    return %arg0, %c0_i32, %c0_i32_0 : i32, i32, i32
  }
  func.func @transform_11(%arg0: i32) -> (i32, i32) {
    %c0_i32 = arith.constant 0 : i32
    %c0_i32_0 = arith.constant 0 : i32
    %c0_i32_1 = arith.constant 0 : i32
    return %c0_i32, %c0_i32_0 : i32, i32
  }
  func.func @transform_12(%arg0: i32) -> (i32, i32) {
    %c0_i32 = arith.constant 0 : i32
    %c0_i32_0 = arith.constant 0 : i32
    %c0_i32_1 = arith.constant 0 : i32
    return %c0_i32, %c0_i32_0 : i32, i32
  }
}

</mosaic_0001>

<llo_original>
// kernel: tpu_custom_call.1
$region0: #{tpu_custom_call.1}
  #allocation0 [shape = 'u32[]', space=smem, size = 0x4, offset = 0x4, fixed_abs, tag = 'smem constant byte address 0x4 - core index']
  #allocation1 [shape = 'u32[144,128]{1,0:T(1,128)}', space=vmem, size = 0x12000, scoped, tag = 'internal scratch']
  #allocation2 [shape = 'f32[8,64]{1,0:T(8,128)}', space=vmem, size = 0x1000, scoped, tag = 'scratch operand']
  %s0 = inlined_call_operand.vmem [shape: f32[8,32], index: 0, kind: input, shape index: {}]
  %s1 = inlined_call_operand.vmem [shape: bf16[8,128,32], index: 1, kind: input, shape index: {}]
  %s2 = inlined_call_operand.vmem [shape: f32[2,8,32], index: 2, kind: input, shape index: {}]
  %s3 = inlined_call_operand.vmem [shape: f32[2,8,32], index: 3, kind: input, shape index: {}]
  %s4 = inlined_call_operand.vmem [shape: bf16[2,64,128], index: 4, kind: input, shape index: {}]
  %s5 = inlined_call_operand.vmem [shape: f32[2,1,128], index: 5, kind: input, shape index: {}]
  %s6 = inlined_call_operand.vmem [shape: bf16[32,32], index: 6, kind: input, shape index: {}]
  %s7 = inlined_call_operand.vmem [shape: bf16[32,32], index: 7, kind: input, shape index: {}]
  %s8 = inlined_call_operand.vmem [shape: f32[1,32], index: 8, kind: input, shape index: {}]
  %s9 = inlined_call_operand.hbm [shape: f32[2,8,32], index: 9, kind: output, shape index: {0}]
  %s10 = inlined_call_operand.hbm [shape: f32[2,8,32], index: 10, kind: output, shape index: {1}]
  %s11 = inlined_call_operand.hbm [shape: f32[8,128], index: 11, kind: output, shape index: {2}]
  %s12 = inlined_call_operand.hbm [shape: f32[8,32], index: 12, kind: output, shape index: {3}]
  %13 = xla_tuple %s9, %s10, %s11, %s12
  %s14 = sld [smem:[#allocation0]]
  $region101: #{tpu_custom_call.1} parent=0
    _
  %s16 = ssub.s32 1, %s14
  %s17 = scalar_select 0, %s16, %s14
  $region1: #{tpu_custom_call.1} parent=0
    #allocation3 [shape = 'u8[8192]{0}', space=vmem, size = 0x2000, scoped, tag = 'output window, operand 0']
    #allocation4 [shape = 's32[2]{0}', space=sflag, size = 0x8, scoped, tag = 'scoped memory for tpu_custom_call.1']
    #allocation5 [shape = 'u8[8192]{0}', space=vmem, size = 0x2000, scoped, tag = 'output window, operand 1']
    #allocation6 [shape = 's32[2]{0}', space=sflag, size = 0x8, scoped, tag = 'scoped memory for tpu_custom_call.1']
    #allocation7 [shape = 'u8[4096]{0}', space=vmem, size = 0x1000, scoped, tag = 'output window, operand 2, single buffered']
    #allocation8 [shape = 'u8[4096]{0}', space=vmem, size = 0x1000, scoped, tag = 'output window, operand 3, single buffered']
    #allocation9 [shape = 's32[1]{0}', space=sflag, size = 0x4, scoped, tag = 'scoped memory for tpu_custom_call.1']
    %18 = vsyncpa [#allocation4], 0
    %s19 = scalar_lea.sflag [#allocation4], 1
    %20 = vsyncpa %s19, 0
    %21 = vsyncpa [#allocation6], 0
    %s22 = scalar_lea.sflag [#allocation6], 1
    %23 = vsyncpa %s22, 0
    %24 = vsyncpa [#allocation9], 0
    loop: start=0, step=1, limit=4
    $region2: #{tpu_custom_call.1} parent=1 // loop_pre_header
      _
    $region3: #{tpu_custom_call.1} parent=1 // loop_header
      %s26 = sphi 0, %s30
      %p27 = scmp.ge.s32.totalorder %s26, 4
      %s34 = sphi 0, %s34
      %s36 = sphi 0, %s34
      %s37 = sphi 0, %s36
      %s51 = sphi 0, %s37
      %s55 = sphi 0, %s55
      %s57 = sphi 0, %s55
      %s58 = sphi 0, %s57
      %s72 = sphi 0, %s58
      %s78 = sphi 0, %s80
      %s81 = sphi 0, %s78
      %s82 = sphi 0, %s81
      %s98 = sphi 0, %s82
      %s104 = sphi 0, %s106
      %s107 = sphi 0, %s104
      %s108 = sphi 0, %s107
      %s124 = sphi 0, %s108
      %s130 = sphi 0, %s132
      %s133 = sphi 0, %s130
      %s134 = sphi 0, %s133
      %s150 = sphi 0, %s134
      %s156 = sphi 0, %s158
      %s159 = sphi 0, %s156
      %s160 = sphi 0, %s159
      %s176 = sphi 0, %s160
      %s180 = sphi 0, %s180
      %s182 = sphi 0, %s180
      %s183 = sphi 0, %s182
      %s197 = sphi 0, %s183
      %s201 = sphi 0, %s201
      %s203 = sphi 0, %s201
      %s204 = sphi 0, %s203
      %s218 = sphi 0, %s204
      %s222 = sphi 0, %s222
      %s224 = sphi 0, %s222
      %s225 = sphi 0, %s224
      %s239 = sphi 0, %s225
      %s245 = sphi 0, %s247
      %s248 = sphi 0, %s245
      %s249 = sphi 0, %s248
      %s265 = sphi 0, %s249
      %s271 = sphi 0, %s273
      %s274 = sphi 0, %s271
      %s275 = sphi 0, %s274
      %s291 = sphi 0, %s275
      %s295 = sphi 0, %s295
      %s297 = sphi 0, %s295
      %s298 = sphi 0, %s297
      %s312 = sphi 0, %s298
      %s316 = sphi 0, %s316
      %s318 = sphi 0, %s316
      %s319 = sphi 0, %s318
      %s333 = sphi 0, %s319
    $region4: #{tpu_custom_call.1} parent=1 // loop_header_branch
      %29 = sbr.rel (%p27) target = $region8
    $region5: #{tpu_custom_call.1} parent=1 // loop_body
      %s31 = ssub.s32 %s26, 1
      %s32 = ssub.s32 %s26, 2
      %s33 = sadd.s32 %s26, 1
      %s35 = sadd.s32 %s34, 1
      %p38 = scmp.eq.s32.totalorder %s26, 1
      %p39 = scmp.ne.s32.totalorder %s34, %s36
      %p40 = scmp.eq.s32.totalorder %s26, 0
      %p41 = por %p39, %p40
      %p42 = scmp.ne.s32.totalorder %s34, %s36
      %p43 = scmp.eq.s32.totalorder %s31, 1
      %p44 = por %p42, %p43
      %p45 = scmp.ne.s32.totalorder %s36, %s37
      %p46 = scmp.eq.s32.totalorder %s31, 0
      %p47 = por %p45, %p46
      %p48 = scmp.ne.s32.totalorder %s36, %s37
      %p49 = scmp.eq.s32.totalorder %s32, 1
      %p50 = por %p48, %p49
      %p52 = scmp.ne.s32.totalorder %s37, %s51
      %p53 = scmp.eq.s32.totalorder %s32, 0
      %p54 = por %p52, %p53
      %s56 = sadd.s32 %s55, 1
      %p59 = scmp.eq.s32.totalorder %s26, 1
      %p60 = scmp.ne.s32.totalorder %s55, %s57
      %p61 = scmp.eq.s32.totalorder %s26, 0
      %p62 = por %p60, %p61
      %p63 = scmp.ne.s32.totalorder %s55, %s57
      %p64 = scmp.eq.s32.totalorder %s31, 1
      %p65 = por %p63, %p64
      %p66 = scmp.ne.s32.totalorder %s57, %s58
      %p67 = scmp.eq.s32.totalorder %s31, 0
      %p68 = por %p66, %p67
      %p69 = scmp.ne.s32.totalorder %s57, %s58
      %p70 = scmp.eq.s32.totalorder %s32, 1
      %p71 = por %p69, %p70
      %p73 = scmp.ne.s32.totalorder %s58, %s72
      %p74 = scmp.eq.s32.totalorder %s32, 0
      %p75 = por %p73, %p74
      %s76 = ssub.s32 %s26, %s33
      %p77 = scmp.eq.s32.totalorder %s76, 0
      %s79 = sadd.s32 %s78, 1
      %s80 = scalar_select %p77, %s78, %s79
      %p83 = pneg %p77
      %p84 = scmp.eq.s32.totalorder %s26, 1
      %p85 = por %p83, %p84
      %p86 = scmp.ne.s32.totalorder %s78, %s81
      %p87 = scmp.eq.s32.totalorder %s26, 0
      %p88 = por %p86, %p87
      %p89 = scmp.ne.s32.totalorder %s78, %s81
      %p90 = scmp.eq.s32.totalorder %s31, 1
      %p91 = por %p89, %p90
      %p92 = scmp.ne.s32.totalorder %s81, %s82
      %p93 = scmp.eq.s32.totalorder %s31, 0
      %p94 = por %p92, %p93
      %p95 = scmp.ne.s32.totalorder %s81, %s82
      %p96 = scmp.eq.s32.totalorder %s32, 1
      %p97 = por %p95, %p96
      %p99 = scmp.ne.s32.totalorder %s82, %s98
      %p100 = scmp.eq.s32.totalorder %s32, 0
      %p101 = por %p99, %p100
      %s102 = ssub.s32 %s26, %s33
      %p103 = scmp.eq.s32.totalorder %s102, 0
      %s105 = sadd.s32 %s104, 1
      %s106 = scalar_select %p103, %s104, %s105
      %p109 = pneg %p103
      %p110 = scmp.eq.s32.totalorder %s26, 1
      %p111 = por %p109, %p110
      %p112 = scmp.ne.s32.totalorder %s104, %s107
      %p113 = scmp.eq.s32.totalorder %s26, 0
      %p114 = por %p112, %p113
      %p115 = scmp.ne.s32.totalorder %s104, %s107
      %p116 = scmp.eq.s32.totalorder %s31, 1
      %p117 = por %p115, %p116
      %p118 = scmp.ne.s32.totalorder %s107, %s108
      %p119 = scmp.eq.s32.totalorder %s31, 0
      %p120 = por %p118, %p119
      %p121 = scmp.ne.s32.totalorder %s107, %s108
      %p122 = scmp.eq.s32.totalorder %s32, 1
      %p123 = por %p121, %p122
      %p125 = scmp.ne.s32.totalorder %s108, %s124
      %p126 = scmp.eq.s32.totalorder %s32, 0
      %p127 = por %p125, %p126
      %s128 = ssub.s32 %s26, %s33
      %p129 = scmp.eq.s32.totalorder %s128, 0
      %s131 = sadd.s32 %s130, 1
      %s132 = scalar_select %p129, %s130, %s131
      %p135 = pneg %p129
      %p136 = scmp.eq.s32.totalorder %s26, 1
      %p137 = por %p135, %p136
      %p138 = scmp.ne.s32.totalorder %s130, %s133
      %p139 = scmp.eq.s32.totalorder %s26, 0
      %p140 = por %p138, %p139
      %p141 = scmp.ne.s32.totalorder %s130, %s133
      %p142 = scmp.eq.s32.totalorder %s31, 1
      %p143 = por %p141, %p142
      %p144 = scmp.ne.s32.totalorder %s133, %s134
      %p145 = scmp.eq.s32.totalorder %s31, 0
      %p146 = por %p144, %p145
      %p147 = scmp.ne.s32.totalorder %s133, %s134
      %p148 = scmp.eq.s32.totalorder %s32, 1
      %p149 = por %p147, %p148
      %p151 = scmp.ne.s32.totalorder %s134, %s150
      %p152 = scmp.eq.s32.totalorder %s32, 0
      %p153 = por %p151, %p152
      %s154 = ssub.s32 %s26, %s33
      %p155 = scmp.eq.s32.totalorder %s154, 0
      %s157 = sadd.s32 %s156, 1
      %s158 = scalar_select %p155, %s156, %s157
      %p161 = pneg %p155
      %p162 = scmp.eq.s32.totalorder %s26, 1
      %p163 = por %p161, %p162
      %p164 = scmp.ne.s32.totalorder %s156, %s159
      %p165 = scmp.eq.s32.totalorder %s26, 0
      %p166 = por %p164, %p165
      %p167 = scmp.ne.s32.totalorder %s156, %s159
      %p168 = scmp.eq.s32.totalorder %s31, 1
      %p169 = por %p167, %p168
      %p170 = scmp.ne.s32.totalorder %s159, %s160
      %p171 = scmp.eq.s32.totalorder %s31, 0
      %p172 = por %p170, %p171
      %p173 = scmp.ne.s32.totalorder %s159, %s160
      %p174 = scmp.eq.s32.totalorder %s32, 1
      %p175 = por %p173, %p174
      %p177 = scmp.ne.s32.totalorder %s160, %s176
      %p178 = scmp.eq.s32.totalorder %s32, 0
      %p179 = por %p177, %p178
      %s181 = sadd.s32 %s180, 1
      %p184 = scmp.eq.s32.totalorder %s26, 1
      %p185 = scmp.ne.s32.totalorder %s180, %s182
      %p186 = scmp.eq.s32.totalorder %s26, 0
      %p187 = por %p185, %p186
      %p188 = scmp.ne.s32.totalorder %s180, %s182
      %p189 = scmp.eq.s32.totalorder %s31, 1
      %p190 = por %p188, %p189
      %p191 = scmp.ne.s32.totalorder %s182, %s183
      %p192 = scmp.eq.s32.totalorder %s31, 0
      %p193 = por %p191, %p192
      %p194 = scmp.ne.s32.totalorder %s182, %s183
      %p195 = scmp.eq.s32.totalorder %s32, 1
      %p196 = por %p194, %p195
      %p198 = scmp.ne.s32.totalorder %s183, %s197
      %p199 = scmp.eq.s32.totalorder %s32, 0
      %p200 = por %p198, %p199
      %s202 = sadd.s32 %s201, 1
      %p205 = scmp.eq.s32.totalorder %s26, 1
      %p206 = scmp.ne.s32.totalorder %s201, %s203
      %p207 = scmp.eq.s32.totalorder %s26, 0
      %p208 = por %p206, %p207
      %p209 = scmp.ne.s32.totalorder %s201, %s203
      %p210 = scmp.eq.s32.totalorder %s31, 1
      %p211 = por %p209, %p210
      %p212 = scmp.ne.s32.totalorder %s203, %s204
      %p213 = scmp.eq.s32.totalorder %s31, 0
      %p214 = por %p212, %p213
      %p215 = scmp.ne.s32.totalorder %s203, %s204
      %p216 = scmp.eq.s32.totalorder %s32, 1
      %p217 = por %p215, %p216
      %p219 = scmp.ne.s32.totalorder %s204, %s218
      %p220 = scmp.eq.s32.totalorder %s32, 0
      %p221 = por %p219, %p220
      %s223 = sadd.s32 %s222, 1
      %p226 = scmp.eq.s32.totalorder %s26, 1
      %p227 = scmp.ne.s32.totalorder %s222, %s224
      %p228 = scmp.eq.s32.totalorder %s26, 0
      %p229 = por %p227, %p228
      %p230 = scmp.ne.s32.totalorder %s222, %s224
      %p231 = scmp.eq.s32.totalorder %s31, 1
      %p232 = por %p230, %p231
      %p233 = scmp.ne.s32.totalorder %s224, %s225
      %p234 = scmp.eq.s32.totalorder %s31, 0
      %p235 = por %p233, %p234
      %p236 = scmp.ne.s32.totalorder %s224, %s225
      %p237 = scmp.eq.s32.totalorder %s32, 1
      %p238 = por %p236, %p237
      %p240 = scmp.ne.s32.totalorder %s225, %s239
      %p241 = scmp.eq.s32.totalorder %s32, 0
      %p242 = por %p240, %p241
      %s243 = ssub.s32 %s26, %s33
      %p244 = scmp.eq.s32.totalorder %s243, 0
      %s246 = sadd.s32 %s245, 1
      %s247 = scalar_select %p244, %s245, %s246
      %p250 = pneg %p244
      %p251 = scmp.eq.s32.totalorder %s26, 1
      %p252 = por %p250, %p251
      %p253 = scmp.ne.s32.totalorder %s245, %s248
      %p254 = scmp.eq.s32.totalorder %s26, 0
      %p255 = por %p253, %p254
      %p256 = scmp.ne.s32.totalorder %s245, %s248
      %p257 = scmp.eq.s32.totalorder %s31, 1
      %p258 = por %p256, %p257
      %p259 = scmp.ne.s32.totalorder %s248, %s249
      %p260 = scmp.eq.s32.totalorder %s31, 0
      %p261 = por %p259, %p260
      %p262 = scmp.ne.s32.totalorder %s248, %s249
      %p263 = scmp.eq.s32.totalorder %s32, 1
      %p264 = por %p262, %p263
      %p266 = scmp.ne.s32.totalorder %s249, %s265
      %p267 = scmp.eq.s32.totalorder %s32, 0
      %p268 = por %p266, %p267
      %s269 = ssub.s32 %s26, %s33
      %p270 = scmp.eq.s32.totalorder %s269, 0
      %s272 = sadd.s32 %s271, 1
      %s273 = scalar_select %p270, %s271, %s272
      %p276 = pneg %p270
      %p277 = scmp.eq.s32.totalorder %s26, 1
      %p278 = por %p276, %p277
      %p279 = scmp.ne.s32.totalorder %s271, %s274
      %p280 = scmp.eq.s32.totalorder %s26, 0
      %p281 = por %p279, %p280
      %p282 = scmp.ne.s32.totalorder %s271, %s274
      %p283 = scmp.eq.s32.totalorder %s31, 1
      %p284 = por %p282, %p283
      %p285 = scmp.ne.s32.totalorder %s274, %s275
      %p286 = scmp.eq.s32.totalorder %s31, 0
      %p287 = por %p285, %p286
      %p288 = scmp.ne.s32.totalorder %s274, %s275
      %p289 = scmp.eq.s32.totalorder %s32, 1
      %p290 = por %p288, %p289
      %p292 = scmp.ne.s32.totalorder %s275, %s291
      %p293 = scmp.eq.s32.totalorder %s32, 0
      %p294 = por %p292, %p293
      %s296 = sadd.s32 %s295, 1
      %p299 = scmp.eq.s32.totalorder %s26, 1
      %p300 = scmp.ne.s32.totalorder %s295, %s297
      %p301 = scmp.eq.s32.totalorder %s26, 0
      %p302 = por %p300, %p301
      %p303 = scmp.ne.s32.totalorder %s295, %s297
      %p304 = scmp.eq.s32.totalorder %s31, 1
      %p305 = por %p303, %p304
      %p306 = scmp.ne.s32.totalorder %s297, %s298
      %p307 = scmp.eq.s32.totalorder %s31, 0
      %p308 = por %p306, %p307
      %p309 = scmp.ne.s32.totalorder %s297, %s298
      %p310 = scmp.eq.s32.totalorder %s32, 1
      %p311 = por %p309, %p310
      %p313 = scmp.ne.s32.totalorder %s298, %s312
      %p314 = scmp.eq.s32.totalorder %s32, 0
      %p315 = por %p313, %p314
      %s317 = sadd.s32 %s316, 1
      %p320 = scmp.eq.s32.totalorder %s26, 1
      %p321 = scmp.ne.s32.totalorder %s316, %s318
      %p322 = scmp.eq.s32.totalorder %s26, 0
      %p323 = por %p321, %p322
      %p324 = scmp.ne.s32.totalorder %s316, %s318
      %p325 = scmp.eq.s32.totalorder %s31, 1
      %p326 = por %p324, %p325
      %p327 = scmp.ne.s32.totalorder %s318, %s319
      %p328 = scmp.eq.s32.totalorder %s31, 0
      %p329 = por %p327, %p328
      %p330 = scmp.ne.s32.totalorder %s318, %s319
      %p331 = scmp.eq.s32.totalorder %s32, 1
      %p332 = por %p330, %p331
      %p334 = scmp.ne.s32.totalorder %s319, %s333
      %p335 = scmp.eq.s32.totalorder %s32, 0
      %p336 = por %p334, %p335
      %p337 = scmp.le.s32.totalorder 1, %s26
      %p338 = scmp.lt.s32.totalorder %s26, 3
      %p339 = pnand %p337, %p338
      %p340 = pneg %p339
      // Predicated region
      $region9: #{tpu_custom_call.1} parent=5 // pred_check
        _
      $region10: #{tpu_custom_call.1} parent=5 // pred_check_branch
        %342 = sbr.rel (%p339) target = $region12
      $region11: #{tpu_custom_call.1} parent=5 // pred_region
        %s343 = ssub.s32 %s26, 1
        // Predicated region
        $region13: #{tpu_custom_call.1} parent=11 // pred_check
          %p344 = pneg %p47
        $region14: #{tpu_custom_call.1} parent=11 // pred_check_branch
          %346 = sbr.rel (%p344) target = $region16
        $region15: #{tpu_custom_call.1} parent=11 // pred_region
          _
        $region16: #{tpu_custom_call.1} parent=11 // pred_fallthru
          _
        // Predicated region
        $region17: #{tpu_custom_call.1} parent=11 // pred_check
          %p347 = pneg %p68
        $region18: #{tpu_custom_call.1} parent=11 // pred_check_branch
          %349 = sbr.rel (%p347) target = $region20
        $region19: #{tpu_custom_call.1} parent=11 // pred_region
          _
        $region20: #{tpu_custom_call.1} parent=11 // pred_fallthru
          _
        // Predicated region
        $region21: #{tpu_custom_call.1} parent=11 // pred_check
          %p350 = pneg %p193
        $region22: #{tpu_custom_call.1} parent=11 // pred_check_branch
          %352 = sbr.rel (%p350) target = $region24
        $region23: #{tpu_custom_call.1} parent=11 // pred_region
          _
        $region24: #{tpu_custom_call.1} parent=11 // pred_fallthru
          _
        // Predicated region
        $region25: #{tpu_custom_call.1} parent=11 // pred_check
          %p353 = pneg %p214
        $region26: #{tpu_custom_call.1} parent=11 // pred_check_branch
          %355 = sbr.rel (%p353) target = $region28
        $region27: #{tpu_custom_call.1} parent=11 // pred_region
          _
        $region28: #{tpu_custom_call.1} parent=11 // pred_fallthru
          _
        // Predicated region
        $region29: #{tpu_custom_call.1} parent=11 // pred_check
          %p356 = pneg %p235
        $region30: #{tpu_custom_call.1} parent=11 // pred_check_branch
          %358 = sbr.rel (%p356) target = $region32
        $region31: #{tpu_custom_call.1} parent=11 // pred_region
          _
        $region32: #{tpu_custom_call.1} parent=11 // pred_fallthru
          _
      $region12: #{tpu_custom_call.1} parent=5 // pred_fallthru
        _
      %p359 = scmp.lt.s32.totalorder %s26, 2
      // Predicated region
      $region33: #{tpu_custom_call.1} parent=5 // pred_check
        %p360 = pneg %p359
      $region34: #{tpu_custom_call.1} parent=5 // pred_check_branch
        %362 = sbr.rel (%p360) target = $region36
      $region35: #{tpu_custom_call.1} parent=5 // pred_region
        // Predicated region
        $region37: #{tpu_custom_call.1} parent=35 // pred_check
          %p363 = pneg %p88
        $region38: #{tpu_custom_call.1} parent=35 // pred_check_branch
          %365 = sbr.rel (%p363) target = $region40
        $region39: #{tpu_custom_call.1} parent=35 // pred_region
          %p366 = scmp.lt.s32.totalorder %s26, 1
          %s367 = scalar_select %p366, %s26, 1
          %s368 = smul.addr %s367, 8
          %s369 = scalar_lea.vmem %s2, %s368
        $region40: #{tpu_custom_call.1} parent=35 // pred_fallthru
          _
        // Predicated region
        $region41: #{tpu_custom_call.1} parent=35 // pred_check
          %p370 = pneg %p114
        $region42: #{tpu_custom_call.1} parent=35 // pred_check_branch
          %372 = sbr.rel (%p370) target = $region44
        $region43: #{tpu_custom_call.1} parent=35 // pred_region
          %p373 = scmp.lt.s32.totalorder %s26, 1
          %s374 = scalar_select %p373, %s26, 1
          %s375 = smul.addr %s374, 8
          %s376 = scalar_lea.vmem %s3, %s375
        $region44: #{tpu_custom_call.1} parent=35 // pred_fallthru
          _
        // Predicated region
        $region45: #{tpu_custom_call.1} parent=35 // pred_check
          %p377 = pneg %p140
        $region46: #{tpu_custom_call.1} parent=35 // pred_check_branch
          %379 = sbr.rel (%p377) target = $region48
        $region47: #{tpu_custom_call.1} parent=35 // pred_region
          %p380 = scmp.lt.s32.totalorder %s26, 1
          %s381 = scalar_select %p380, %s26, 1
          %s382 = smul.addr %s381, 8
          %s383 = smul.addr %s382, 4
          %s384 = scalar_lea.vmem %s4, %s383
        $region48: #{tpu_custom_call.1} parent=35 // pred_fallthru
          _
        // Predicated region
        $region49: #{tpu_custom_call.1} parent=35 // pred_check
          %p385 = pneg %p166
        $region50: #{tpu_custom_call.1} parent=35 // pred_check_branch
          %387 = sbr.rel (%p385) target = $region52
        $region51: #{tpu_custom_call.1} parent=35 // pred_region
          %p388 = scmp.lt.s32.totalorder %s26, 1
          %s389 = scalar_select %p388, %s26, 1
          %s390 = scalar_lea.vmem %s5, %s389
        $region52: #{tpu_custom_call.1} parent=35 // pred_fallthru
          _
      $region36: #{tpu_custom_call.1} parent=5 // pred_fallthru
        _
      %p391 = scmp.le.s32.totalorder 1, %s26
      %p392 = scmp.lt.s32.totalorder %s26, 3
      %p393 = pnand %p391, %p392
      %p394 = pneg %p393
      // Predicated region
      $region53: #{tpu_custom_call.1} parent=5 // pred_check
        _
      $region54: #{tpu_custom_call.1} parent=5 // pred_check_branch
        %396 = sbr.rel (%p393) target = $region56
      $region55: #{tpu_custom_call.1} parent=5 // pred_region
        %s397 = ssub.s32 %s26, 1
        %p398 = pneg %p47
        %p399 = pneg %p44
        %p400 = pneg %p68
        %p401 = pneg %p65
        %p402 = scmp.lt.s32.totalorder %s31, 1
        %s403 = scalar_select %p402, %s31, 1
        %s404 = smul.addr %s403, 8
        %s405 = scalar_lea.vmem %s2, %s404
        %p406 = pneg %p94
        %p407 = pneg %p91
        %p408 = scmp.lt.s32.totalorder %s31, 1
        %s409 = scalar_select %p408, %s31, 1
        %s410 = smul.addr %s409, 8
        %s411 = scalar_lea.vmem %s3, %s410
        %p412 = pneg %p120
        %p413 = pneg %p117
        %p414 = scmp.lt.s32.totalorder %s31, 1
        %s415 = scalar_select %p414, %s31, 1
        %s416 = smul.addr %s415, 8
        %s417 = smul.addr %s416, 4
        %s418 = scalar_lea.vmem %s4, %s417
        %p419 = pneg %p146
        %p420 = pneg %p143
        %p421 = scmp.lt.s32.totalorder %s31, 1
        %s422 = scalar_select %p421, %s31, 1
        %s423 = scalar_lea.vmem %s5, %s422
        %p424 = pneg %p172
        %p425 = pneg %p169
        %p426 = pneg %p193
        %p427 = pneg %p190
        %p428 = pneg %p214
        %p429 = pneg %p211
        %p430 = pneg %p235
        %p431 = pneg %p232
        %p432 = pneg %p261
        %p433 = pneg %p258
        %s434 = sand.u32 %s248, 1
        %s435 = scalar_lea.sflag [#allocation4], %s434
        %s436 = sand.u32 %s248, 1
        %s437 = smul.addr %s436, 8
        %s438 = scalar_lea.vmem [#allocation3], %s437
        %p439 = pneg %p287
        %p440 = pneg %p284
        %s441 = sand.u32 %s31, 1
        %s442 = scalar_lea.sflag [#allocation6], %s441
        %s443 = sand.u32 %s274, 1
        %s444 = smul.addr %s443, 8
        %s445 = scalar_lea.vmem [#allocation5], %s444
        %p446 = pneg %p308
        %p447 = pneg %p305
        %p448 = pneg %p329
        %p449 = pneg %p326
        %p450 = scmp.lt.s32.totalorder %s31, 1
        %s451 = scalar_select %p450, %s31, 1
        %s452 = smul.addr %s451, 8
        %s453 = scalar_lea.vmem %s2, %s452
        %p454 = scmp.lt.s32.totalorder %s31, 1
        %s455 = scalar_select %p454, %s31, 1
        %s456 = smul.addr %s455, 8
        %s457 = scalar_lea.vmem %s3, %s456
        %p458 = scmp.lt.s32.totalorder %s31, 1
        %s459 = scalar_select %p458, %s31, 1
        %s460 = smul.addr %s459, 8
        %s461 = smul.addr %s460, 4
        %s462 = scalar_lea.vmem %s4, %s461
        %p463 = scmp.lt.s32.totalorder %s31, 1
        %s464 = scalar_select %p463, %s31, 1
        %s465 = scalar_lea.vmem %s5, %s464
        %p467 = scmp.eq.s32.totalorder %s31, 0
        // Predicated region
        $region57: #{tpu_custom_call.1} parent=55 // pred_check
          %p468 = pneg %p467
        $region58: #{tpu_custom_call.1} parent=55 // pred_check_branch
          %470 = sbr.rel (%p468) target = $region60
        $region59: #{tpu_custom_call.1} parent=55 // pred_region
          %v471 = vld [vmem:[%s0] sm:$0xff]
          %vm472 = vcmask 261120
          %473 = vst.msk [vmem:[#allocation2] sm:$0xff] %vm472, %v471
        $region60: #{tpu_custom_call.1} parent=55 // pred_fallthru
          _
        %v474 = vld [vmem:[%s453] sm:$0xff]
        %v475 = vld [vmem:[%s457] sm:$0xff]
        %477 = vrot.lane.b32.xlu0 %v474, 32
        %v478 = vpop.permute.xlu0 %477
        %vm480 = vcmask 523520
        %481 = vst.msk [vmem:[#allocation2] sm:$0xff] %vm480, %v478
        %v482 = vld [vmem:[#allocation2] sm:$0xff]
        %v483 = vpack.c.bf16 %v482, %v482
        %v484 = vld [vmem:[%s462] sm:$0xf]
        %v485 = vld [vmem:[%s462 + $0x4] sm:$0xf]
        %v486 = vld [vmem:[%s462 + $0x8] sm:$0xf]
        %v487 = vld [vmem:[%s462 + $0xc] sm:$0xf]
        %v488 = vld [vmem:[%s462 + $0x10] sm:$0xf]
        %v489 = vld [vmem:[%s462 + $0x14] sm:$0xf]
        %v490 = vld [vmem:[%s462 + $0x18] sm:$0xf]
        %v491 = vld [vmem:[%s462 + $0x1c] sm:$0xf]
        %v492 = vld [vmem:[%s465] sm:$0x1]
        %v494 = vlaneseq
        %v495 = vshrl.u32 %v494, 7
        %v496 = vsub.s32 0, %v495
        %v497 = vrot.slane %v492, %v496
        %v507 = vunpack.c.l.b16 %v484
        %v508 = vunpack.c.l.b16 %v485
        %v509 = vunpack.c.l.b16 %v486
        %v510 = vunpack.c.l.b16 %v487
        %v511 = vunpack.c.l.b16 %v488
        %v512 = vunpack.c.l.b16 %v489
        %v513 = vunpack.c.l.b16 %v490
        %v514 = vunpack.c.l.b16 %v491
        %v515 = vpack.c.b16 %v508, %v507
        %v516 = vpack.c.b16 %v510, %v509
        %v517 = vpack.c.b16 %v512, %v511
        %v518 = vpack.c.b16 %v514, %v513
        %vm523 = vcmask 523264
        %v525 = vsel %vm523, %v483, 0
        %527 = vmatprep.subr.bf16.mxu0 0
        %528 = vmatpush1.bf16.msra.mxu0 %v515
        %529 = vmatprep.subr.bf16.mxu0 0
        %530 = vmatpush1.bf16.msra.mxu0 %v516
        %531 = vmatprep.subr.bf16.mxu0 0
        %532 = vmatpush1.bf16.msra.mxu0 %v517
        %533 = vmatprep.subr.bf16.mxu0 0
        %534 = vmatpush1.bf16.msra.mxu0 %v518
        %535 = vmatprep.subr.bf16.mxu0 0
        %536 = vmatpush1.bf16.msra.mxu0 0
        %537 = vmatprep.subr.bf16.mxu0 0
        %538 = vmatpush1.bf16.msra.mxu0 0
        %539 = vmatprep.subr.bf16.mxu0 0
        %540 = vmatpush1.bf16.msra.mxu0 0
        %541 = vmatprep.subr.bf16.mxu0 0
        %542 = vmatpush1.bf16.msra.mxu0 0
        %543 = vmatprep.subr.bf16.mxu0 0
        %544 = vmatpush1.bf16.msra.mxu0 0
        %545 = vmatprep.subr.bf16.mxu0 0
        %546 = vmatpush1.bf16.msra.mxu0 0
        %547 = vmatprep.subr.bf16.mxu0 0
        %548 = vmatpush1.bf16.msra.mxu0 0
        %549 = vmatprep.subr.bf16.mxu0 0
        %550 = vmatpush1.bf16.msra.mxu0 0
        %551 = vmatprep.subr.bf16.mxu0 0
        %552 = vmatpush1.bf16.msra.mxu0 0
        %553 = vmatprep.subr.bf16.mxu0 0
        %554 = vmatpush1.bf16.msra.mxu0 0
        %555 = vmatprep.subr.bf16.mxu0 0
        %556 = vmatpush1.bf16.msra.mxu0 0
        %557 = vmatprep.subr.bf16.mxu0 0
        %558 = vmatpush1.bf16.msra.mxu0 0
        %559 = vmatprep.mubr.bf16.mxu0 0
        %560 = vmatmul.mubr.bf16.gmra.mrb[0].mxu0 %v525
        %v561 = vpop.f32.mrb[0].mxu0
        %v562 = vadd.f32 %v497, %v561
        %v563 = vpop.f32.mrb[0].mxu0
        %v564 = vpop.f32.mrb[0].mxu0
        %v565 = vpop.f32.mrb[0].mxu0
        %566 = vdwg.mxu0
        %v567 = vxor.u32 %v562, 2147483648
        %v568 = vmul.f32 %v567, 1.442695
        %v569 = vpow.pop %v568
        %v570 = vadd.f32 %v569, 1.0
        %v571 = vrcp.pop %v570
        %v572 = vmul.f32 1.0, %v571
        %v573 = vtanh.pop %v562
        %575 = vrot.lane.b32.xlu0 %v475, 32
        %v576 = vpop.permute.xlu0 %575
        %v578 = vmul.f32 %v572, %v576
        %580 = vrot.lane.b32.xlu0 %v573, 64
        %v581 = vpop.permute.xlu0 %580
        %v583 = vmul.f32 %v572, %v581
        %585 = vrot.lane.b32.xlu0 %v583, 32
        %v586 = vpop.permute.xlu0 %585
        %v588 = vadd.f32 %v578, %v586
        %v589 = vtanh.pop %v588
        %591 = vrot.lane.b32.xlu0 %v589, 64
        %v592 = vpop.permute.xlu0 %591
        %v594 = vmul.f32 %v572, %v592
        %596 = vrot.lane.b32.xlu0 %v594, 32
        %v597 = vpop.permute.xlu0 %596
        %vm599 = vcmask 261120
        %600 = vst.msk [vmem:[%s438] sm:$0xff] %vm599, %v597
        %602 = vrot.lane.b32.xlu0 %v588, 96
        %v603 = vpop.permute.xlu0 %602
        %605 = vst.msk [vmem:[%s445] sm:$0xff] %vm599, %v603
        %606 = vst.msk [vmem:[#allocation2] sm:$0xff] %vm599, %v597
        %p607 = scmp.eq.s32.totalorder %s31, 1
        // Predicated region
        $region61: #{tpu_custom_call.1} parent=55 // pred_check
          %p608 = pneg %p607
        $region62: #{tpu_custom_call.1} parent=55 // pred_check_branch
          %610 = sbr.rel (%p608) target = $region64
        $region63: #{tpu_custom_call.1} parent=55 // pred_region
          %v611 = vld [vmem:[%s1] sm:$0xf]
          %v612 = vld [vmem:[%s1 + $0x4] sm:$0xf]
          %v613 = vld [vmem:[%s1 + $0x8] sm:$0xf]
          %v614 = vld [vmem:[%s1 + $0xc] sm:$0xf]
          %v615 = vld [vmem:[%s1 + $0x10] sm:$0xf]
          %v616 = vld [vmem:[%s1 + $0x14] sm:$0xf]
          %v617 = vld [vmem:[%s1 + $0x18] sm:$0xf]
          %v618 = vld [vmem:[%s1 + $0x1c] sm:$0xf]
          %v619 = vld [vmem:[%s1 + $0x20] sm:$0xf]
          %v620 = vld [vmem:[%s1 + $0x24] sm:$0xf]
          %v621 = vld [vmem:[%s1 + $0x28] sm:$0xf]
          %v622 = vld [vmem:[%s1 + $0x2c] sm:$0xf]
          %v623 = vld [vmem:[%s1 + $0x30] sm:$0xf]
          %v624 = vld [vmem:[%s1 + $0x34] sm:$0xf]
          %v625 = vld [vmem:[%s1 + $0x38] sm:$0xf]
          %v626 = vld [vmem:[%s1 + $0x3c] sm:$0xf]
          %v627 = vld [vmem:[%s1 + $0x40] sm:$0xf]
          %v628 = vld [vmem:[%s1 + $0x44] sm:$0xf]
          %v629 = vld [vmem:[%s1 + $0x48] sm:$0xf]
          %v630 = vld [vmem:[%s1 + $0x4c] sm:$0xf]
          %v631 = vld [vmem:[%s1 + $0x50] sm:$0xf]
          %v632 = vld [vmem:[%s1 + $0x54] sm:$0xf]
          %v633 = vld [vmem:[%s1 + $0x58] sm:$0xf]
          %v634 = vld [vmem:[%s1 + $0x5c] sm:$0xf]
          %v635 = vld [vmem:[%s1 + $0x60] sm:$0xf]
          %v636 = vld [vmem:[%s1 + $0x64] sm:$0xf]
          %v637 = vld [vmem:[%s1 + $0x68] sm:$0xf]
          %v638 = vld [vmem:[%s1 + $0x6c] sm:$0xf]
          %v639 = vld [vmem:[%s1 + $0x70] sm:$0xf]
          %v640 = vld [vmem:[%s1 + $0x74] sm:$0xf]
          %v641 = vld [vmem:[%s1 + $0x78] sm:$0xf]
          %v642 = vld [vmem:[%s1 + $0x7c] sm:$0xf]
          %v643 = vld [vmem:[%s1 + $0x80] sm:$0xf]
          %v644 = vld [vmem:[%s1 + $0x84] sm:$0xf]
          %v645 = vld [vmem:[%s1 + $0x88] sm:$0xf]
          %v646 = vld [vmem:[%s1 + $0x8c] sm:$0xf]
          %v647 = vld [vmem:[%s1 + $0x90] sm:$0xf]
          %v648 = vld [vmem:[%s1 + $0x94] sm:$0xf]
          %v649 = vld [vmem:[%s1 + $0x98] sm:$0xf]
          %v650 = vld [vmem:[%s1 + $0x9c] sm:$0xf]
          %v651 = vld [vmem:[%s1 + $0xa0] sm:$0xf]
          %v652 = vld [vmem:[%s1 + $0xa4] sm:$0xf]
          %v653 = vld [vmem:[%s1 + $0xa8] sm:$0xf]
          %v654 = vld [vmem:[%s1 + $0xac] sm:$0xf]
          %v655 = vld [vmem:[%s1 + $0xb0] sm:$0xf]
          %v656 = vld [vmem:[%s1 + $0xb4] sm:$0xf]
          %v657 = vld [vmem:[%s1 + $0xb8] sm:$0xf]
          %v658 = vld [vmem:[%s1 + $0xbc] sm:$0xf]
          %v659 = vld [vmem:[%s1 + $0xc0] sm:$0xf]
          %v660 = vld [vmem:[%s1 + $0xc4] sm:$0xf]
          %v661 = vld [vmem:[%s1 + $0xc8] sm:$0xf]
          %v662 = vld [vmem:[%s1 + $0xcc] sm:$0xf]
          %v663 = vld [vmem:[%s1 + $0xd0] sm:$0xf]
          %v664 = vld [vmem:[%s1 + $0xd4] sm:$0xf]
          %v665 = vld [vmem:[%s1 + $0xd8] sm:$0xf]
          %v666 = vld [vmem:[%s1 + $0xdc] sm:$0xf]
          %v667 = vld [vmem:[%s1 + $0xe0] sm:$0xf]
          %v668 = vld [vmem:[%s1 + $0xe4] sm:$0xf]
          %v669 = vld [vmem:[%s1 + $0xe8] sm:$0xf]
          %v670 = vld [vmem:[%s1 + $0xec] sm:$0xf]
          %v671 = vld [vmem:[%s1 + $0xf0] sm:$0xf]
          %v672 = vld [vmem:[%s1 + $0xf4] sm:$0xf]
          %v673 = vld [vmem:[%s1 + $0xf8] sm:$0xf]
          %v674 = vld [vmem:[%s1 + $0xfc] sm:$0xf]
          %v675 = vld [vmem:[%s1 + $0x100] sm:$0xf]
          %v676 = vld [vmem:[%s1 + $0x104] sm:$0xf]
          %v677 = vld [vmem:[%s1 + $0x108] sm:$0xf]
          %v678 = vld [vmem:[%s1 + $0x10c] sm:$0xf]
          %v679 = vld [vmem:[%s1 + $0x110] sm:$0xf]
          %v680 = vld [vmem:[%s1 + $0x114] sm:$0xf]
          %v681 = vld [vmem:[%s1 + $0x118] sm:$0xf]
          %v682 = vld [vmem:[%s1 + $0x11c] sm:$0xf]
          %v683 = vld [vmem:[%s1 + $0x120] sm:$0xf]
          %v684 = vld [vmem:[%s1 + $0x124] sm:$0xf]
          %v685 = vld [vmem:[%s1 + $0x128] sm:$0xf]
          %v686 = vld [vmem:[%s1 + $0x12c] sm:$0xf]
          %v687 = vld [vmem:[%s1 + $0x130] sm:$0xf]
          %v688 = vld [vmem:[%s1 + $0x134] sm:$0xf]
          %v689 = vld [vmem:[%s1 + $0x138] sm:$0xf]
          %v690 = vld [vmem:[%s1 + $0x13c] sm:$0xf]
          %v691 = vld [vmem:[%s1 + $0x140] sm:$0xf]
          %v692 = vld [vmem:[%s1 + $0x144] sm:$0xf]
          %v693 = vld [vmem:[%s1 + $0x148] sm:$0xf]
          %v694 = vld [vmem:[%s1 + $0x14c] sm:$0xf]
          %v695 = vld [vmem:[%s1 + $0x150] sm:$0xf]
          %v696 = vld [vmem:[%s1 + $0x154] sm:$0xf]
          %v697 = vld [vmem:[%s1 + $0x158] sm:$0xf]
          %v698 = vld [vmem:[%s1 + $0x15c] sm:$0xf]
          %v699 = vld [vmem:[%s1 + $0x160] sm:$0xf]
          %v700 = vld [vmem:[%s1 + $0x164] sm:$0xf]
          %v701 = vld [vmem:[%s1 + $0x168] sm:$0xf]
          %v702 = vld [vmem:[%s1 + $0x16c] sm:$0xf]
          %v703 = vld [vmem:[%s1 + $0x170] sm:$0xf]
          %v704 = vld [vmem:[%s1 + $0x174] sm:$0xf]
          %v705 = vld [vmem:[%s1 + $0x178] sm:$0xf]
          %v706 = vld [vmem:[%s1 + $0x17c] sm:$0xf]
          %v707 = vld [vmem:[%s1 + $0x180] sm:$0xf]
          %v708 = vld [vmem:[%s1 + $0x184] sm:$0xf]
          %v709 = vld [vmem:[%s1 + $0x188] sm:$0xf]
          %v710 = vld [vmem:[%s1 + $0x18c] sm:$0xf]
          %v711 = vld [vmem:[%s1 + $0x190] sm:$0xf]
          %v712 = vld [vmem:[%s1 + $0x194] sm:$0xf]
          %v713 = vld [vmem:[%s1 + $0x198] sm:$0xf]
          %v714 = vld [vmem:[%s1 + $0x19c] sm:$0xf]
          %v715 = vld [vmem:[%s1 + $0x1a0] sm:$0xf]
          %v716 = vld [vmem:[%s1 + $0x1a4] sm:$0xf]
          %v717 = vld [vmem:[%s1 + $0x1a8] sm:$0xf]
          %v718 = vld [vmem:[%s1 + $0x1ac] sm:$0xf]
          %v719 = vld [vmem:[%s1 + $0x1b0] sm:$0xf]
          %v720 = vld [vmem:[%s1 + $0x1b4] sm:$0xf]
          %v721 = vld [vmem:[%s1 + $0x1b8] sm:$0xf]
          %v722 = vld [vmem:[%s1 + $0x1bc] sm:$0xf]
          %v723 = vld [vmem:[%s1 + $0x1c0] sm:$0xf]
          %v724 = vld [vmem:[%s1 + $0x1c4] sm:$0xf]
          %v725 = vld [vmem:[%s1 + $0x1c8] sm:$0xf]
          %v726 = vld [vmem:[%s1 + $0x1cc] sm:$0xf]
          %v727 = vld [vmem:[%s1 + $0x1d0] sm:$0xf]
          %v728 = vld [vmem:[%s1 + $0x1d4] sm:$0xf]
          %v729 = vld [vmem:[%s1 + $0x1d8] sm:$0xf]
          %v730 = vld [vmem:[%s1 + $0x1dc] sm:$0xf]
          %v731 = vld [vmem:[%s1 + $0x1e0] sm:$0xf]
          %v732 = vld [vmem:[%s1 + $0x1e4] sm:$0xf]
          %v733 = vld [vmem:[%s1 + $0x1e8] sm:$0xf]
          %v734 = vld [vmem:[%s1 + $0x1ec] sm:$0xf]
          %v735 = vld [vmem:[%s1 + $0x1f0] sm:$0xf]
          %v736 = vld [vmem:[%s1 + $0x1f4] sm:$0xf]
          %v737 = vld [vmem:[%s1 + $0x1f8] sm:$0xf]
          %v738 = vld [vmem:[%s1 + $0x1fc] sm:$0xf]
          %v739 = vcombine.high %v594, %v594
          %v741 = vunpack.c.l.s4 1966171168
          %v742 = vunpack.c.0.s8 %v741
          %v743 = vlaneseq
          %v744 = vshrl.u32 %v743, 7
          %v745 = vsub.s32 %v742, %v744
          %v746 = vrot.slane %v594, %v745
          %v748 = vunpack.c.l.s4 1966171168
          %v749 = vunpack.c.0.s8 %v748
          %v750 = vlaneseq
          %v751 = vshrl.u32 %v750, 7
          %v752 = vsub.s32 %v749, %v751
          %v753 = vrot.slane %v739, %v752
          %v754 = vcombine.high %v746, %v746
          %v755 = vcombine.high %v753, %v753
          %v757 = vunpack.c.l.s4 1966171168
          %v758 = vunpack.c.0.s8 %v757
          %v759 = vlaneseq
          %v760 = vshrl.u32 %v759, 7
          %v761 = vsub.s32 %v758, %v760
          %v762 = vrot.slane %v746, %v761
          %v764 = vunpack.c.l.s4 1966171168
          %v765 = vunpack.c.0.s8 %v764
          %v766 = vlaneseq
          %v767 = vshrl.u32 %v766, 7
          %v768 = vsub.s32 %v765, %v767
          %v769 = vrot.slane %v753, %v768
          %v771 = vunpack.c.l.s4 1966171168
          %v772 = vunpack.c.0.s8 %v771
          %v773 = vlaneseq
          %v774 = vshrl.u32 %v773, 7
          %v775 = vsub.s32 %v772, %v774
          %v776 = vrot.slane %v754, %v775
          %v778 = vunpack.c.l.s4 1966171168
          %v779 = vunpack.c.0.s8 %v778
          %v780 = vlaneseq
          %v781 = vshrl.u32 %v780, 7
          %v782 = vsub.s32 %v779, %v781
          %v783 = vrot.slane %v755, %v782
          %v784 = vcombine.high %v762, %v762
          %v785 = vcombine.high %v769, %v769
          %v786 = vcombine.high %v776, %v776
          %v787 = vcombine.high %v783, %v783
          %v788 = vunpack.c.l.bf16 %v611
          %v789 = vunpack.c.l.bf16 %v612
          %v790 = vunpack.c.l.bf16 %v613
          %v791 = vunpack.c.l.bf16 %v614
          %v792 = vunpack.c.l.bf16 %v615
          %v793 = vunpack.c.l.bf16 %v616
          %v794 = vunpack.c.l.bf16 %v617
          %v795 = vunpack.c.l.bf16 %v618
          %v796 = vunpack.c.l.bf16 %v619
          %v797 = vunpack.c.l.bf16 %v620
          %v798 = vunpack.c.l.bf16 %v621
          %v799 = vunpack.c.l.bf16 %v622
          %v800 = vunpack.c.l.bf16 %v623
          %v801 = vunpack.c.l.bf16 %v624
          %v802 = vunpack.c.l.bf16 %v625
          %v803 = vunpack.c.l.bf16 %v626
          %v804 = vunpack.c.l.bf16 %v627
          %v805 = vunpack.c.l.bf16 %v628
          %v806 = vunpack.c.l.bf16 %v629
          %v807 = vunpack.c.l.bf16 %v630
          %v808 = vunpack.c.l.bf16 %v631
          %v809 = vunpack.c.l.bf16 %v632
          %v810 = vunpack.c.l.bf16 %v633
          %v811 = vunpack.c.l.bf16 %v634
          %v812 = vunpack.c.l.bf16 %v635
          %v813 = vunpack.c.l.bf16 %v636
          %v814 = vunpack.c.l.bf16 %v637
          %v815 = vunpack.c.l.bf16 %v638
          %v816 = vunpack.c.l.bf16 %v639
          %v817 = vunpack.c.l.bf16 %v640
          %v818 = vunpack.c.l.bf16 %v641
          %v819 = vunpack.c.l.bf16 %v642
          %v820 = vunpack.c.l.bf16 %v643
          %v821 = vunpack.c.l.bf16 %v644
          %v822 = vunpack.c.l.bf16 %v645
          %v823 = vunpack.c.l.bf16 %v646
          %v824 = vunpack.c.l.bf16 %v647
          %v825 = vunpack.c.l.bf16 %v648
          %v826 = vunpack.c.l.bf16 %v649
          %v827 = vunpack.c.l.bf16 %v650
          %v828 = vunpack.c.l.bf16 %v651
          %v829 = vunpack.c.l.bf16 %v652
          %v830 = vunpack.c.l.bf16 %v653
          %v831 = vunpack.c.l.bf16 %v654
          %v832 = vunpack.c.l.bf16 %v655
          %v833 = vunpack.c.l.bf16 %v656
          %v834 = vunpack.c.l.bf16 %v657
          %v835 = vunpack.c.l.bf16 %v658
          %v836 = vunpack.c.l.bf16 %v659
          %v837 = vunpack.c.l.bf16 %v660
          %v838 = vunpack.c.l.bf16 %v661
          %v839 = vunpack.c.l.bf16 %v662
          %v840 = vunpack.c.l.bf16 %v663
          %v841 = vunpack.c.l.bf16 %v664
          %v842 = vunpack.c.l.bf16 %v665
          %v843 = vunpack.c.l.bf16 %v666
          %v844 = vunpack.c.l.bf16 %v667
          %v845 = vunpack.c.l.bf16 %v668
          %v846 = vunpack.c.l.bf16 %v669
          %v847 = vunpack.c.l.bf16 %v670
          %v848 = vunpack.c.l.bf16 %v671
          %v849 = vunpack.c.l.bf16 %v672
          %v850 = vunpack.c.l.bf16 %v673
          %v851 = vunpack.c.l.bf16 %v674
          %v852 = vunpack.c.l.bf16 %v675
          %v853 = vunpack.c.l.bf16 %v676
          %v854 = vunpack.c.l.bf16 %v677
          %v855 = vunpack.c.l.bf16 %v678
          %v856 = vunpack.c.l.bf16 %v679
          %v857 = vunpack.c.l.bf16 %v680
          %v858 = vunpack.c.l.bf16 %v681
          %v859 = vunpack.c.l.bf16 %v682
          %v860 = vunpack.c.l.bf16 %v683
          %v861 = vunpack.c.l.bf16 %v684
          %v862 = vunpack.c.l.bf16 %v685
          %v863 = vunpack.c.l.bf16 %v686
          %v864 = vunpack.c.l.bf16 %v687
          %v865 = vunpack.c.l.bf16 %v688
          %v866 = vunpack.c.l.bf16 %v689
          %v867 = vunpack.c.l.bf16 %v690
          %v868 = vunpack.c.l.bf16 %v691
          %v869 = vunpack.c.l.bf16 %v692
          %v870 = vunpack.c.l.bf16 %v693
          %v871 = vunpack.c.l.bf16 %v694
          %v872 = vunpack.c.l.bf16 %v695
          %v873 = vunpack.c.l.bf16 %v696
          %v874 = vunpack.c.l.bf16 %v697
          %v875 = vunpack.c.l.bf16 %v698
          %v876 = vunpack.c.l.bf16 %v699
          %v877 = vunpack.c.l.bf16 %v700
          %v878 = vunpack.c.l.bf16 %v701
          %v879 = vunpack.c.l.bf16 %v702
          %v880 = vunpack.c.l.bf16 %v703
          %v881 = vunpack.c.l.bf16 %v704
          %v882 = vunpack.c.l.bf16 %v705
          %v883 = vunpack.c.l.bf16 %v706
          %v884 = vunpack.c.l.bf16 %v707
          %v885 = vunpack.c.l.bf16 %v708
          %v886 = vunpack.c.l.bf16 %v709
          %v887 = vunpack.c.l.bf16 %v710
          %v888 = vunpack.c.l.bf16 %v711
          %v889 = vunpack.c.l.bf16 %v712
          %v890 = vunpack.c.l.bf16 %v713
          %v891 = vunpack.c.l.bf16 %v714
          %v892 = vunpack.c.l.bf16 %v715
          %v893 = vunpack.c.l.bf16 %v716
          %v894 = vunpack.c.l.bf16 %v717
          %v895 = vunpack.c.l.bf16 %v718
          %v896 = vunpack.c.l.bf16 %v719
          %v897 = vunpack.c.l.bf16 %v720
          %v898 = vunpack.c.l.bf16 %v721
          %v899 = vunpack.c.l.bf16 %v722
          %v900 = vunpack.c.l.bf16 %v723
          %v901 = vunpack.c.l.bf16 %v724
          %v902 = vunpack.c.l.bf16 %v725
          %v903 = vunpack.c.l.bf16 %v726
          %v904 = vunpack.c.l.bf16 %v727
          %v905 = vunpack.c.l.bf16 %v728
          %v906 = vunpack.c.l.bf16 %v729
          %v907 = vunpack.c.l.bf16 %v730
          %v908 = vunpack.c.l.bf16 %v731
          %v909 = vunpack.c.l.bf16 %v732
          %v910 = vunpack.c.l.bf16 %v733
          %v911 = vunpack.c.l.bf16 %v734
          %v912 = vunpack.c.l.bf16 %v735
          %v913 = vunpack.c.l.bf16 %v736
          %v914 = vunpack.c.l.bf16 %v737
          %v915 = vunpack.c.l.bf16 %v738
          %v916 = vlaneseq
          %v917 = vshrl.u32 %v916, 7
          %v918 = vsub.s32 0, %v917
          %v919 = vrot.slane %v762, %v918
          %v920 = vlaneseq
          %v921 = vshrl.u32 %v920, 7
          %v922 = vsub.s32 0, %v921
          %v923 = vrot.slane %v776, %v922
          %v924 = vlaneseq
          %v925 = vshrl.u32 %v924, 7
          %v926 = vsub.s32 0, %v925
          %v927 = vrot.slane %v784, %v926
          %v928 = vlaneseq
          %v929 = vshrl.u32 %v928, 7
          %v930 = vsub.s32 0, %v929
          %v931 = vrot.slane %v786, %v930
          %v932 = vlaneseq
          %v933 = vshrl.u32 %v932, 7
          %v934 = vsub.s32 0, %v933
          %v935 = vrot.slane %v769, %v934
          %v936 = vlaneseq
          %v937 = vshrl.u32 %v936, 7
          %v938 = vsub.s32 0, %v937
          %v939 = vrot.slane %v783, %v938
          %v940 = vlaneseq
          %v941 = vshrl.u32 %v940, 7
          %v942 = vsub.s32 0, %v941
          %v943 = vrot.slane %v785, %v942
          %v944 = vlaneseq
          %v945 = vshrl.u32 %v944, 7
          %v946 = vsub.s32 0, %v945
          %v947 = vrot.slane %v787, %v946
          %1084 = vrot.lane.b32.xlu0 %v788, 96
          %v1085 = vpop.permute.xlu0 %1084
          %1086 = vrot.lane.b32.xlu0 %v789, 96
          %v1087 = vpop.permute.xlu0 %1086
          %1088 = vrot.lane.b32.xlu0 %v790, 96
          %v1089 = vpop.permute.xlu0 %1088
          %1090 = vrot.lane.b32.xlu0 %v791, 96
          %v1091 = vpop.permute.xlu0 %1090
          %1092 = vrot.lane.b32.xlu0 %v792, 96
          %v1093 = vpop.permute.xlu0 %1092
          %1094 = vrot.lane.b32.xlu0 %v793, 96
          %v1095 = vpop.permute.xlu0 %1094
          %1096 = vrot.lane.b32.xlu0 %v794, 96
          %v1097 = vpop.permute.xlu0 %1096
          %1098 = vrot.lane.b32.xlu0 %v795, 96
          %v1099 = vpop.permute.xlu0 %1098
          %1100 = vrot.lane.b32.xlu0 %v796, 96
          %v1101 = vpop.permute.xlu0 %1100
          %1102 = vrot.lane.b32.xlu0 %v797, 96
          %v1103 = vpop.permute.xlu0 %1102
          %1104 = vrot.lane.b32.xlu0 %v798, 96
          %v1105 = vpop.permute.xlu0 %1104
          %1106 = vrot.lane.b32.xlu0 %v799, 96
          %v1107 = vpop.permute.xlu0 %1106
          %1108 = vrot.lane.b32.xlu0 %v800, 96
          %v1109 = vpop.permute.xlu0 %1108
          %1110 = vrot.lane.b32.xlu0 %v801, 96
          %v1111 = vpop.permute.xlu0 %1110
          %1112 = vrot.lane.b32.xlu0 %v802, 96
          %v1113 = vpop.permute.xlu0 %1112
          %1114 = vrot.lane.b32.xlu0 %v803, 96
          %v1115 = vpop.permute.xlu0 %1114
          %1116 = vrot.lane.b32.xlu0 %v804, 96
          %v1117 = vpop.permute.xlu0 %1116
          %1118 = vrot.lane.b32.xlu0 %v805, 96
          %v1119 = vpop.permute.xlu0 %1118
          %1120 = vrot.lane.b32.xlu0 %v806, 96
          %v1121 = vpop.permute.xlu0 %1120
          %1122 = vrot.lane.b32.xlu0 %v807, 96
          %v1123 = vpop.permute.xlu0 %1122
          %1124 = vrot.lane.b32.xlu0 %v808, 96
          %v1125 = vpop.permute.xlu0 %1124
          %1126 = vrot.lane.b32.xlu0 %v809, 96
          %v1127 = vpop.permute.xlu0 %1126
          %1128 = vrot.lane.b32.xlu0 %v810, 96
          %v1129 = vpop.permute.xlu0 %1128
          %1130 = vrot.lane.b32.xlu0 %v811, 96
          %v1131 = vpop.permute.xlu0 %1130
          %1132 = vrot.lane.b32.xlu0 %v812, 96
          %v1133 = vpop.permute.xlu0 %1132
          %1134 = vrot.lane.b32.xlu0 %v813, 96
          %v1135 = vpop.permute.xlu0 %1134
          %1136 = vrot.lane.b32.xlu0 %v814, 96
          %v1137 = vpop.permute.xlu0 %1136
          %1138 = vrot.lane.b32.xlu0 %v815, 96
          %v1139 = vpop.permute.xlu0 %1138
          %1140 = vrot.lane.b32.xlu0 %v816, 96
          %v1141 = vpop.permute.xlu0 %1140
          %1142 = vrot.lane.b32.xlu0 %v817, 96
          %v1143 = vpop.permute.xlu0 %1142
          %1144 = vrot.lane.b32.xlu0 %v818, 96
          %v1145 = vpop.permute.xlu0 %1144
          %1146 = vrot.lane.b32.xlu0 %v819, 96
          %v1147 = vpop.permute.xlu0 %1146
          %1148 = vrot.lane.b32.xlu0 %v820, 96
          %v1149 = vpop.permute.xlu0 %1148
          %1150 = vrot.lane.b32.xlu0 %v821, 96
          %v1151 = vpop.permute.xlu0 %1150
          %1152 = vrot.lane.b32.xlu0 %v822, 96
          %v1153 = vpop.permute.xlu0 %1152
          %1154 = vrot.lane.b32.xlu0 %v823, 96
          %v1155 = vpop.permute.xlu0 %1154
          %1156 = vrot.lane.b32.xlu0 %v824, 96
          %v1157 = vpop.permute.xlu0 %1156
          %1158 = vrot.lane.b32.xlu0 %v825, 96
          %v1159 = vpop.permute.xlu0 %1158
          %1160 = vrot.lane.b32.xlu0 %v826, 96
          %v1161 = vpop.permute.xlu0 %1160
          %1162 = vrot.lane.b32.xlu0 %v827, 96
          %v1163 = vpop.permute.xlu0 %1162
          %1164 = vrot.lane.b32.xlu0 %v828, 96
          %v1165 = vpop.permute.xlu0 %1164
          %1166 = vrot.lane.b32.xlu0 %v829, 96
          %v1167 = vpop.permute.xlu0 %1166
          %1168 = vrot.lane.b32.xlu0 %v830, 96
          %v1169 = vpop.permute.xlu0 %1168
          %1170 = vrot.lane.b32.xlu0 %v831, 96
          %v1171 = vpop.permute.xlu0 %1170
          %1172 = vrot.lane.b32.xlu0 %v832, 96
          %v1173 = vpop.permute.xlu0 %1172
          %1174 = vrot.lane.b32.xlu0 %v833, 96
          %v1175 = vpop.permute.xlu0 %1174
          %1176 = vrot.lane.b32.xlu0 %v834, 96
          %v1177 = vpop.permute.xlu0 %1176
          %1178 = vrot.lane.b32.xlu0 %v835, 96
          %v1179 = vpop.permute.xlu0 %1178
          %1180 = vrot.lane.b32.xlu0 %v836, 96
          %v1181 = vpop.permute.xlu0 %1180
          %1182 = vrot.lane.b32.xlu0 %v837, 96
          %v1183 = vpop.permute.xlu0 %1182
          %1184 = vrot.lane.b32.xlu0 %v838, 96
          %v1185 = vpop.permute.xlu0 %1184
          %1186 = vrot.lane.b32.xlu0 %v839, 96
          %v1187 = vpop.permute.xlu0 %1186
          %1188 = vrot.lane.b32.xlu0 %v840, 96
          %v1189 = vpop.permute.xlu0 %1188
          %1190 = vrot.lane.b32.xlu0 %v841, 96
          %v1191 = vpop.permute.xlu0 %1190
          %1192 = vrot.lane.b32.xlu0 %v842, 96
          %v1193 = vpop.permute.xlu0 %1192
          %1194 = vrot.lane.b32.xlu0 %v843, 96
          %v1195 = vpop.permute.xlu0 %1194
          %1196 = vrot.lane.b32.xlu0 %v844, 96
          %v1197 = vpop.permute.xlu0 %1196
          %1198 = vrot.lane.b32.xlu0 %v845, 96
          %v1199 = vpop.permute.xlu0 %1198
          %1200 = vrot.lane.b32.xlu0 %v846, 96
          %v1201 = vpop.permute.xlu0 %1200
          %1202 = vrot.lane.b32.xlu0 %v847, 96
          %v1203 = vpop.permute.xlu0 %1202
          %1204 = vrot.lane.b32.xlu0 %v848, 96
          %v1205 = vpop.permute.xlu0 %1204
          %1206 = vrot.lane.b32.xlu0 %v849, 96
          %v1207 = vpop.permute.xlu0 %1206
          %1208 = vrot.lane.b32.xlu0 %v850, 96
          %v1209 = vpop.permute.xlu0 %1208
          %1210 = vrot.lane.b32.xlu0 %v851, 96
          %v1211 = vpop.permute.xlu0 %1210
          %1212 = vrot.lane.b32.xlu0 %v852, 96
          %v1213 = vpop.permute.xlu0 %1212
          %1214 = vrot.lane.b32.xlu0 %v853, 96
          %v1215 = vpop.permute.xlu0 %1214
          %1216 = vrot.lane.b32.xlu0 %v854, 96
          %v1217 = vpop.permute.xlu0 %1216
          %1218 = vrot.lane.b32.xlu0 %v855, 96
          %v1219 = vpop.permute.xlu0 %1218
          %1220 = vrot.lane.b32.xlu0 %v856, 96
          %v1221 = vpop.permute.xlu0 %1220
          %1222 = vrot.lane.b32.xlu0 %v857, 96
          %v1223 = vpop.permute.xlu0 %1222
          %1224 = vrot.lane.b32.xlu0 %v858, 96
          %v1225 = vpop.permute.xlu0 %1224
          %1226 = vrot.lane.b32.xlu0 %v859, 96
          %v1227 = vpop.permute.xlu0 %1226
          %1228 = vrot.lane.b32.xlu0 %v860, 96
          %v1229 = vpop.permute.xlu0 %1228
          %1230 = vrot.lane.b32.xlu0 %v861, 96
          %v1231 = vpop.permute.xlu0 %1230
          %1232 = vrot.lane.b32.xlu0 %v862, 96
          %v1233 = vpop.permute.xlu0 %1232
          %1234 = vrot.lane.b32.xlu0 %v863, 96
          %v1235 = vpop.permute.xlu0 %1234
          %1236 = vrot.lane.b32.xlu0 %v864, 96
          %v1237 = vpop.permute.xlu0 %1236
          %1238 = vrot.lane.b32.xlu0 %v865, 96
          %v1239 = vpop.permute.xlu0 %1238
          %1240 = vrot.lane.b32.xlu0 %v866, 96
          %v1241 = vpop.permute.xlu0 %1240
          %1242 = vrot.lane.b32.xlu0 %v867, 96
          %v1243 = vpop.permute.xlu0 %1242
          %1244 = vrot.lane.b32.xlu0 %v868, 96
          %v1245 = vpop.permute.xlu0 %1244
          %1246 = vrot.lane.b32.xlu0 %v869, 96
          %v1247 = vpop.permute.xlu0 %1246
          %1248 = vrot.lane.b32.xlu0 %v870, 96
          %v1249 = vpop.permute.xlu0 %1248
          %1250 = vrot.lane.b32.xlu0 %v871, 96
          %v1251 = vpop.permute.xlu0 %1250
          %1252 = vrot.lane.b32.xlu0 %v872, 96
          %v1253 = vpop.permute.xlu0 %1252
          %1254 = vrot.lane.b32.xlu0 %v873, 96
          %v1255 = vpop.permute.xlu0 %1254
          %1256 = vrot.lane.b32.xlu0 %v874, 96
          %v1257 = vpop.permute.xlu0 %1256
          %1258 = vrot.lane.b32.xlu0 %v875, 96
          %v1259 = vpop.permute.xlu0 %1258
          %1260 = vrot.lane.b32.xlu0 %v876, 96
          %v1261 = vpop.permute.xlu0 %1260
          %1262 = vrot.lane.b32.xlu0 %v877, 96
          %v1263 = vpop.permute.xlu0 %1262
          %1264 = vrot.lane.b32.xlu0 %v878, 96
          %v1265 = vpop.permute.xlu0 %1264
          %1266 = vrot.lane.b32.xlu0 %v879, 96
          %v1267 = vpop.permute.xlu0 %1266
          %1268 = vrot.lane.b32.xlu0 %v880, 96
          %v1269 = vpop.permute.xlu0 %1268
          %1270 = vrot.lane.b32.xlu0 %v881, 96
          %v1271 = vpop.permute.xlu0 %1270
          %1272 = vrot.lane.b32.xlu0 %v882, 96
          %v1273 = vpop.permute.xlu0 %1272
          %1274 = vrot.lane.b32.xlu0 %v883, 96
          %v1275 = vpop.permute.xlu0 %1274
          %1276 = vrot.lane.b32.xlu0 %v884, 96
          %v1277 = vpop.permute.xlu0 %1276
          %1278 = vrot.lane.b32.xlu0 %v885, 96
          %v1279 = vpop.permute.xlu0 %1278
          %1280 = vrot.lane.b32.xlu0 %v886, 96
          %v1281 = vpop.permute.xlu0 %1280
          %1282 = vrot.lane.b32.xlu0 %v887, 96
          %v1283 = vpop.permute.xlu0 %1282
          %1284 = vrot.lane.b32.xlu0 %v888, 96
          %v1285 = vpop.permute.xlu0 %1284
          %1286 = vrot.lane.b32.xlu0 %v889, 96
          %v1287 = vpop.permute.xlu0 %1286
          %1288 = vrot.lane.b32.xlu0 %v890, 96
          %v1289 = vpop.permute.xlu0 %1288
          %1290 = vrot.lane.b32.xlu0 %v891, 96
          %v1291 = vpop.permute.xlu0 %1290
          %1292 = vrot.lane.b32.xlu0 %v892, 96
          %v1293 = vpop.permute.xlu0 %1292
          %1294 = vrot.lane.b32.xlu0 %v893, 96
          %v1295 = vpop.permute.xlu0 %1294
          %1296 = vrot.lane.b32.xlu0 %v894, 96
          %v1297 = vpop.permute.xlu0 %1296
          %1298 = vrot.lane.b32.xlu0 %v895, 96
          %v1299 = vpop.permute.xlu0 %1298
          %1300 = vrot.lane.b32.xlu0 %v896, 96
          %v1301 = vpop.permute.xlu0 %1300
          %1302 = vrot.lane.b32.xlu0 %v897, 96
          %v1303 = vpop.permute.xlu0 %1302
          %1304 = vrot.lane.b32.xlu0 %v898, 96
          %v1305 = vpop.permute.xlu0 %1304
          %1306 = vrot.lane.b32.xlu0 %v899, 96
          %v1307 = vpop.permute.xlu0 %1306
          %1308 = vrot.lane.b32.xlu0 %v900, 96
          %v1309 = vpop.permute.xlu0 %1308
          %1310 = vrot.lane.b32.xlu0 %v901, 96
          %v1311 = vpop.permute.xlu0 %1310
          %1312 = vrot.lane.b32.xlu0 %v902, 96
          %v1313 = vpop.permute.xlu0 %1312
          %1314 = vrot.lane.b32.xlu0 %v903, 96
          %v1315 = vpop.permute.xlu0 %1314
          %1316 = vrot.lane.b32.xlu0 %v904, 96
          %v1317 = vpop.permute.xlu0 %1316
          %1318 = vrot.lane.b32.xlu0 %v905, 96
          %v1319 = vpop.permute.xlu0 %1318
          %1320 = vrot.lane.b32.xlu0 %v906, 96
          %v1321 = vpop.permute.xlu0 %1320
          %1322 = vrot.lane.b32.xlu0 %v907, 96
          %v1323 = vpop.permute.xlu0 %1322
          %1324 = vrot.lane.b32.xlu0 %v908, 96
          %v1325 = vpop.permute.xlu0 %1324
          %1326 = vrot.lane.b32.xlu0 %v909, 96
          %v1327 = vpop.permute.xlu0 %1326
          %1328 = vrot.lane.b32.xlu0 %v910, 96
          %v1329 = vpop.permute.xlu0 %1328
          %1330 = vrot.lane.b32.xlu0 %v911, 96
          %v1331 = vpop.permute.xlu0 %1330
          %1332 = vrot.lane.b32.xlu0 %v912, 96
          %v1333 = vpop.permute.xlu0 %1332
          %1334 = vrot.lane.b32.xlu0 %v913, 96
          %v1335 = vpop.permute.xlu0 %1334
          %1336 = vrot.lane.b32.xlu0 %v914, 96
          %v1337 = vpop.permute.xlu0 %1336
          %1338 = vrot.lane.b32.xlu0 %v915, 96
          %v1339 = vpop.permute.xlu0 %1338
          %v1468 = vmul.f32 %v919, %v1085
          %v1469 = vmul.f32 %v919, %v1087
          %v1470 = vmul.f32 %v919, %v1089
          %v1471 = vmul.f32 %v919, %v1091
          %v1472 = vmul.f32 %v919, %v1093
          %v1473 = vmul.f32 %v919, %v1095
          %v1474 = vmul.f32 %v919, %v1097
          %v1475 = vmul.f32 %v919, %v1099
          %v1476 = vmul.f32 %v919, %v1101
          %v1477 = vmul.f32 %v919, %v1103
          %v1478 = vmul.f32 %v919, %v1105
          %v1479 = vmul.f32 %v919, %v1107
          %v1480 = vmul.f32 %v919, %v1109
          %v1481 = vmul.f32 %v919, %v1111
          %v1482 = vmul.f32 %v919, %v1113
          %v1483 = vmul.f32 %v919, %v1115
          %v1484 = vmul.f32 %v923, %v1117
          %v1485 = vmul.f32 %v923, %v1119
          %v1486 = vmul.f32 %v923, %v1121
          %v1487 = vmul.f32 %v923, %v1123
          %v1488 = vmul.f32 %v923, %v1125
          %v1489 = vmul.f32 %v923, %v1127
          %v1490 = vmul.f32 %v923, %v1129
          %v1491 = vmul.f32 %v923, %v1131
          %v1492 = vmul.f32 %v923, %v1133
          %v1493 = vmul.f32 %v923, %v1135
          %v1494 = vmul.f32 %v923, %v1137
          %v1495 = vmul.f32 %v923, %v1139
          %v1496 = vmul.f32 %v923, %v1141
          %v1497 = vmul.f32 %v923, %v1143
          %v1498 = vmul.f32 %v923, %v1145
          %v1499 = vmul.f32 %v923, %v1147
          %v1500 = vmul.f32 %v927, %v1149
          %v1501 = vmul.f32 %v927, %v1151
          %v1502 = vmul.f32 %v927, %v1153
          %v1503 = vmul.f32 %v927, %v1155
          %v1504 = vmul.f32 %v927, %v1157
          %v1505 = vmul.f32 %v927, %v1159
          %v1506 = vmul.f32 %v927, %v1161
          %v1507 = vmul.f32 %v927, %v1163
          %v1508 = vmul.f32 %v927, %v1165
          %v1509 = vmul.f32 %v927, %v1167
          %v1510 = vmul.f32 %v927, %v1169
          %v1511 = vmul.f32 %v927, %v1171
          %v1512 = vmul.f32 %v927, %v1173
          %v1513 = vmul.f32 %v927, %v1175
          %v1514 = vmul.f32 %v927, %v1177
          %v1515 = vmul.f32 %v927, %v1179
          %v1516 = vmul.f32 %v931, %v1181
          %v1517 = vmul.f32 %v931, %v1183
          %v1518 = vmul.f32 %v931, %v1185
          %v1519 = vmul.f32 %v931, %v1187
          %v1520 = vmul.f32 %v931, %v1189
          %v1521 = vmul.f32 %v931, %v1191
          %v1522 = vmul.f32 %v931, %v1193
          %v1523 = vmul.f32 %v931, %v1195
          %v1524 = vmul.f32 %v931, %v1197
          %v1525 = vmul.f32 %v931, %v1199
          %v1526 = vmul.f32 %v931, %v1201
          %v1527 = vmul.f32 %v931, %v1203
          %v1528 = vmul.f32 %v931, %v1205
          %v1529 = vmul.f32 %v931, %v1207
          %v1530 = vmul.f32 %v931, %v1209
          %v1531 = vmul.f32 %v931, %v1211
          %v1532 = vmul.f32 %v935, %v1213
          %v1533 = vmul.f32 %v935, %v1215
          %v1534 = vmul.f32 %v935, %v1217
          %v1535 = vmul.f32 %v935, %v1219
          %v1536 = vmul.f32 %v935, %v1221
          %v1537 = vmul.f32 %v935, %v1223
          %v1538 = vmul.f32 %v935, %v1225
          %v1539 = vmul.f32 %v935, %v1227
          %v1540 = vmul.f32 %v935, %v1229
          %v1541 = vmul.f32 %v935, %v1231
          %v1542 = vmul.f32 %v935, %v1233
          %v1543 = vmul.f32 %v935, %v1235
          %v1544 = vmul.f32 %v935, %v1237
          %v1545 = vmul.f32 %v935, %v1239
          %v1546 = vmul.f32 %v935, %v1241
          %v1547 = vmul.f32 %v935, %v1243
          %v1548 = vmul.f32 %v939, %v1245
          %v1549 = vmul.f32 %v939, %v1247
          %v1550 = vmul.f32 %v939, %v1249
          %v1551 = vmul.f32 %v939, %v1251
          %v1552 = vmul.f32 %v939, %v1253
          %v1553 = vmul.f32 %v939, %v1255
          %v1554 = vmul.f32 %v939, %v1257
          %v1555 = vmul.f32 %v939, %v1259
          %v1556 = vmul.f32 %v939, %v1261
          %v1557 = vmul.f32 %v939, %v1263
          %v1558 = vmul.f32 %v939, %v1265
          %v1559 = vmul.f32 %v939, %v1267
          %v1560 = vmul.f32 %v939, %v1269
          %v1561 = vmul.f32 %v939, %v1271
          %v1562 = vmul.f32 %v939, %v1273
          %v1563 = vmul.f32 %v939, %v1275
          %v1564 = vmul.f32 %v943, %v1277
          %v1565 = vmul.f32 %v943, %v1279
          %v1566 = vmul.f32 %v943, %v1281
          %v1567 = vmul.f32 %v943, %v1283
          %v1568 = vmul.f32 %v943, %v1285
          %v1569 = vmul.f32 %v943, %v1287
          %v1570 = vmul.f32 %v943, %v1289
          %v1571 = vmul.f32 %v943, %v1291
          %v1572 = vmul.f32 %v943, %v1293
          %v1573 = vmul.f32 %v943, %v1295
          %v1574 = vmul.f32 %v943, %v1297
          %v1575 = vmul.f32 %v943, %v1299
          %v1576 = vmul.f32 %v943, %v1301
          %v1577 = vmul.f32 %v943, %v1303
          %v1578 = vmul.f32 %v943, %v1305
          %v1579 = vmul.f32 %v943, %v1307
          %v1580 = vmul.f32 %v947, %v1309
          %v1581 = vmul.f32 %v947, %v1311
          %v1582 = vmul.f32 %v947, %v1313
          %v1583 = vmul.f32 %v947, %v1315
          %v1584 = vmul.f32 %v947, %v1317
          %v1585 = vmul.f32 %v947, %v1319
          %v1586 = vmul.f32 %v947, %v1321
          %v1587 = vmul.f32 %v947, %v1323
          %v1588 = vmul.f32 %v947, %v1325
          %v1589 = vmul.f32 %v947, %v1327
          %v1590 = vmul.f32 %v947, %v1329
          %v1591 = vmul.f32 %v947, %v1331
          %v1592 = vmul.f32 %v947, %v1333
          %v1593 = vmul.f32 %v947, %v1335
          %v1594 = vmul.f32 %v947, %v1337
          %v1595 = vmul.f32 %v947, %v1339
          %1724 = vrot.lane.b32.xlu0 %v1468, 32
          %v1725 = vpop.permute.xlu0 %1724
          %1726 = vrot.lane.b32.xlu0 %v1469, 32
          %v1727 = vpop.permute.xlu0 %1726
          %1728 = vrot.lane.b32.xlu0 %v1470, 32
          %v1729 = vpop.permute.xlu0 %1728
          %1730 = vrot.lane.b32.xlu0 %v1471, 32
          %v1731 = vpop.permute.xlu0 %1730
          %1732 = vrot.lane.b32.xlu0 %v1472, 32
          %v1733 = vpop.permute.xlu0 %1732
          %1734 = vrot.lane.b32.xlu0 %v1473, 32
          %v1735 = vpop.permute.xlu0 %1734
          %1736 = vrot.lane.b32.xlu0 %v1474, 32
          %v1737 = vpop.permute.xlu0 %1736
          %1738 = vrot.lane.b32.xlu0 %v1475, 32
          %v1739 = vpop.permute.xlu0 %1738
          %1740 = vrot.lane.b32.xlu0 %v1476, 32
          %v1741 = vpop.permute.xlu0 %1740
          %1742 = vrot.lane.b32.xlu0 %v1477, 32
          %v1743 = vpop.permute.xlu0 %1742
          %1744 = vrot.lane.b32.xlu0 %v1478, 32
          %v1745 = vpop.permute.xlu0 %1744
          %1746 = vrot.lane.b32.xlu0 %v1479, 32
          %v1747 = vpop.permute.xlu0 %1746
          %1748 = vrot.lane.b32.xlu0 %v1480, 32
          %v1749 = vpop.permute.xlu0 %1748
          %1750 = vrot.lane.b32.xlu0 %v1481, 32
          %v1751 = vpop.permute.xlu0 %1750
          %1752 = vrot.lane.b32.xlu0 %v1482, 32
          %v1753 = vpop.permute.xlu0 %1752
          %1754 = vrot.lane.b32.xlu0 %v1483, 32
          %v1755 = vpop.permute.xlu0 %1754
          %1756 = vrot.lane.b32.xlu0 %v1484, 32
          %v1757 = vpop.permute.xlu0 %1756
          %1758 = vrot.lane.b32.xlu0 %v1485, 32
          %v1759 = vpop.permute.xlu0 %1758
          %1760 = vrot.lane.b32.xlu0 %v1486, 32
          %v1761 = vpop.permute.xlu0 %1760
          %1762 = vrot.lane.b32.xlu0 %v1487, 32
          %v1763 = vpop.permute.xlu0 %1762
          %1764 = vrot.lane.b32.xlu0 %v1488, 32
          %v1765 = vpop.permute.xlu0 %1764
          %1766 = vrot.lane.b32.xlu0 %v1489, 32
          %v1767 = vpop.permute.xlu0 %1766
          %1768 = vrot.lane.b32.xlu0 %v1490, 32
          %v1769 = vpop.permute.xlu0 %1768
          %1770 = vrot.lane.b32.xlu0 %v1491, 32
          %v1771 = vpop.permute.xlu0 %1770
          %1772 = vrot.lane.b32.xlu0 %v1492, 32
          %v1773 = vpop.permute.xlu0 %1772
          %1774 = vrot.lane.b32.xlu0 %v1493, 32
          %v1775 = vpop.permute.xlu0 %1774
          %1776 = vrot.lane.b32.xlu0 %v1494, 32
          %v1777 = vpop.permute.xlu0 %1776
          %1778 = vrot.lane.b32.xlu0 %v1495, 32
          %v1779 = vpop.permute.xlu0 %1778
          %1780 = vrot.lane.b32.xlu0 %v1496, 32
          %v1781 = vpop.permute.xlu0 %1780
          %1782 = vrot.lane.b32.xlu0 %v1497, 32
          %v1783 = vpop.permute.xlu0 %1782
          %1784 = vrot.lane.b32.xlu0 %v1498, 32
          %v1785 = vpop.permute.xlu0 %1784
          %1786 = vrot.lane.b32.xlu0 %v1499, 32
          %v1787 = vpop.permute.xlu0 %1786
          %1788 = vrot.lane.b32.xlu0 %v1500, 32
          %v1789 = vpop.permute.xlu0 %1788
          %1790 = vrot.lane.b32.xlu0 %v1501, 32
          %v1791 = vpop.permute.xlu0 %1790
          %1792 = vrot.lane.b32.xlu0 %v1502, 32
          %v1793 = vpop.permute.xlu0 %1792
          %1794 = vrot.lane.b32.xlu0 %v1503, 32
          %v1795 = vpop.permute.xlu0 %1794
          %1796 = vrot.lane.b32.xlu0 %v1504, 32
          %v1797 = vpop.permute.xlu0 %1796
          %1798 = vrot.lane.b32.xlu0 %v1505, 32
          %v1799 = vpop.permute.xlu0 %1798
          %1800 = vrot.lane.b32.xlu0 %v1506, 32
          %v1801 = vpop.permute.xlu0 %1800
          %1802 = vrot.lane.b32.xlu0 %v1507, 32
          %v1803 = vpop.permute.xlu0 %1802
          %1804 = vrot.lane.b32.xlu0 %v1508, 32
          %v1805 = vpop.permute.xlu0 %1804
          %1806 = vrot.lane.b32.xlu0 %v1509, 32
          %v1807 = vpop.permute.xlu0 %1806
          %1808 = vrot.lane.b32.xlu0 %v1510, 32
          %v1809 = vpop.permute.xlu0 %1808
          %1810 = vrot.lane.b32.xlu0 %v1511, 32
          %v1811 = vpop.permute.xlu0 %1810
          %1812 = vrot.lane.b32.xlu0 %v1512, 32
          %v1813 = vpop.permute.xlu0 %1812
          %1814 = vrot.lane.b32.xlu0 %v1513, 32
          %v1815 = vpop.permute.xlu0 %1814
          %1816 = vrot.lane.b32.xlu0 %v1514, 32
          %v1817 = vpop.permute.xlu0 %1816
          %1818 = vrot.lane.b32.xlu0 %v1515, 32
          %v1819 = vpop.permute.xlu0 %1818
          %1820 = vrot.lane.b32.xlu0 %v1516, 32
          %v1821 = vpop.permute.xlu0 %1820
          %1822 = vrot.lane.b32.xlu0 %v1517, 32
          %v1823 = vpop.permute.xlu0 %1822
          %1824 = vrot.lane.b32.xlu0 %v1518, 32
          %v1825 = vpop.permute.xlu0 %1824
          %1826 = vrot.lane.b32.xlu0 %v1519, 32
          %v1827 = vpop.permute.xlu0 %1826
          %1828 = vrot.lane.b32.xlu0 %v1520, 32
          %v1829 = vpop.permute.xlu0 %1828
          %1830 = vrot.lane.b32.xlu0 %v1521, 32
          %v1831 = vpop.permute.xlu0 %1830
          %1832 = vrot.lane.b32.xlu0 %v1522, 32
          %v1833 = vpop.permute.xlu0 %1832
          %1834 = vrot.lane.b32.xlu0 %v1523, 32
          %v1835 = vpop.permute.xlu0 %1834
          %1836 = vrot.lane.b32.xlu0 %v1524, 32
          %v1837 = vpop.permute.xlu0 %1836
          %1838 = vrot.lane.b32.xlu0 %v1525, 32
          %v1839 = vpop.permute.xlu0 %1838
          %1840 = vrot.lane.b32.xlu0 %v1526, 32
          %v1841 = vpop.permute.xlu0 %1840
          %1842 = vrot.lane.b32.xlu0 %v1527, 32
          %v1843 = vpop.permute.xlu0 %1842
          %1844 = vrot.lane.b32.xlu0 %v1528, 32
          %v1845 = vpop.permute.xlu0 %1844
          %1846 = vrot.lane.b32.xlu0 %v1529, 32
          %v1847 = vpop.permute.xlu0 %1846
          %1848 = vrot.lane.b32.xlu0 %v1530, 32
          %v1849 = vpop.permute.xlu0 %1848
          %1850 = vrot.lane.b32.xlu0 %v1531, 32
          %v1851 = vpop.permute.xlu0 %1850
          %1852 = vrot.lane.b32.xlu0 %v1532, 32
          %v1853 = vpop.permute.xlu0 %1852
          %1854 = vrot.lane.b32.xlu0 %v1533, 32
          %v1855 = vpop.permute.xlu0 %1854
          %1856 = vrot.lane.b32.xlu0 %v1534, 32
          %v1857 = vpop.permute.xlu0 %1856
          %1858 = vrot.lane.b32.xlu0 %v1535, 32
          %v1859 = vpop.permute.xlu0 %1858
          %1860 = vrot.lane.b32.xlu0 %v1536, 32
          %v1861 = vpop.permute.xlu0 %1860
          %1862 = vrot.lane.b32.xlu0 %v1537, 32
          %v1863 = vpop.permute.xlu0 %1862
          %1864 = vrot.lane.b32.xlu0 %v1538, 32
          %v1865 = vpop.permute.xlu0 %1864
          %1866 = vrot.lane.b32.xlu0 %v1539, 32
          %v1867 = vpop.permute.xlu0 %1866
          %1868 = vrot.lane.b32.xlu0 %v1540, 32
          %v1869 = vpop.permute.xlu0 %1868
          %1870 = vrot.lane.b32.xlu0 %v1541, 32
          %v1871 = vpop.permute.xlu0 %1870
          %1872 = vrot.lane.b32.xlu0 %v1542, 32
          %v1873 = vpop.permute.xlu0 %1872
          %1874 = vrot.lane.b32.xlu0 %v1543, 32
          %v1875 = vpop.permute.xlu0 %1874
          %1876 = vrot.lane.b32.xlu0 %v1544, 32
          %v1877 = vpop.permute.xlu0 %1876
          %1878 = vrot.lane.b32.xlu0 %v1545, 32
          %v1879 = vpop.permute.xlu0 %1878
          %1880 = vrot.lane.b32.xlu0 %v1546, 32
          %v1881 = vpop.permute.xlu0 %1880
          %1882 = vrot.lane.b32.xlu0 %v1547, 32
          %v1883 = vpop.permute.xlu0 %1882
          %1884 = vrot.lane.b32.xlu0 %v1548, 32
          %v1885 = vpop.permute.xlu0 %1884
          %1886 = vrot.lane.b32.xlu0 %v1549, 32
          %v1887 = vpop.permute.xlu0 %1886
          %1888 = vrot.lane.b32.xlu0 %v1550, 32
          %v1889 = vpop.permute.xlu0 %1888
          %1890 = vrot.lane.b32.xlu0 %v1551, 32
          %v1891 = vpop.permute.xlu0 %1890
          %1892 = vrot.lane.b32.xlu0 %v1552, 32
          %v1893 = vpop.permute.xlu0 %1892
          %1894 = vrot.lane.b32.xlu0 %v1553, 32
          %v1895 = vpop.permute.xlu0 %1894
          %1896 = vrot.lane.b32.xlu0 %v1554, 32
          %v1897 = vpop.permute.xlu0 %1896
          %1898 = vrot.lane.b32.xlu0 %v1555, 32
          %v1899 = vpop.permute.xlu0 %1898
          %1900 = vrot.lane.b32.xlu0 %v1556, 32
          %v1901 = vpop.permute.xlu0 %1900
          %1902 = vrot.lane.b32.xlu0 %v1557, 32
          %v1903 = vpop.permute.xlu0 %1902
          %1904 = vrot.lane.b32.xlu0 %v1558, 32
          %v1905 = vpop.permute.xlu0 %1904
          %1906 = vrot.lane.b32.xlu0 %v1559, 32
          %v1907 = vpop.permute.xlu0 %1906
          %1908 = vrot.lane.b32.xlu0 %v1560, 32
          %v1909 = vpop.permute.xlu0 %1908
          %1910 = vrot.lane.b32.xlu0 %v1561, 32
          %v1911 = vpop.permute.xlu0 %1910
          %1912 = vrot.lane.b32.xlu0 %v1562, 32
          %v1913 = vpop.permute.xlu0 %1912
          %1914 = vrot.lane.b32.xlu0 %v1563, 32
          %v1915 = vpop.permute.xlu0 %1914
          %1916 = vrot.lane.b32.xlu0 %v1564, 32
          %v1917 = vpop.permute.xlu0 %1916
          %1918 = vrot.lane.b32.xlu0 %v1565, 32
          %v1919 = vpop.permute.xlu0 %1918
          %1920 = vrot.lane.b32.xlu0 %v1566, 32
          %v1921 = vpop.permute.xlu0 %1920
          %1922 = vrot.lane.b32.xlu0 %v1567, 32
          %v1923 = vpop.permute.xlu0 %1922
          %1924 = vrot.lane.b32.xlu0 %v1568, 32
          %v1925 = vpop.permute.xlu0 %1924
          %1926 = vrot.lane.b32.xlu0 %v1569, 32
          %v1927 = vpop.permute.xlu0 %1926
          %1928 = vrot.lane.b32.xlu0 %v1570, 32
          %v1929 = vpop.permute.xlu0 %1928
          %1930 = vrot.lane.b32.xlu0 %v1571, 32
          %v1931 = vpop.permute.xlu0 %1930
          %1932 = vrot.lane.b32.xlu0 %v1572, 32
          %v1933 = vpop.permute.xlu0 %1932
          %1934 = vrot.lane.b32.xlu0 %v1573, 32
          %v1935 = vpop.permute.xlu0 %1934
          %1936 = vrot.lane.b32.xlu0 %v1574, 32
          %v1937 = vpop.permute.xlu0 %1936
          %1938 = vrot.lane.b32.xlu0 %v1575, 32
          %v1939 = vpop.permute.xlu0 %1938
          %1940 = vrot.lane.b32.xlu0 %v1576, 32
          %v1941 = vpop.permute.xlu0 %1940
          %1942 = vrot.lane.b32.xlu0 %v1577, 32
          %v1943 = vpop.permute.xlu0 %1942
          %1944 = vrot.lane.b32.xlu0 %v1578, 32
          %v1945 = vpop.permute.xlu0 %1944
          %1946 = vrot.lane.b32.xlu0 %v1579, 32
          %v1947 = vpop.permute.xlu0 %1946
          %1948 = vrot.lane.b32.xlu0 %v1580, 32
          %v1949 = vpop.permute.xlu0 %1948
          %1950 = vrot.lane.b32.xlu0 %v1581, 32
          %v1951 = vpop.permute.xlu0 %1950
          %1952 = vrot.lane.b32.xlu0 %v1582, 32
          %v1953 = vpop.permute.xlu0 %1952
          %1954 = vrot.lane.b32.xlu0 %v1583, 32
          %v1955 = vpop.permute.xlu0 %1954
          %1956 = vrot.lane.b32.xlu0 %v1584, 32
          %v1957 = vpop.permute.xlu0 %1956
          %1958 = vrot.lane.b32.xlu0 %v1585, 32
          %v1959 = vpop.permute.xlu0 %1958
          %1960 = vrot.lane.b32.xlu0 %v1586, 32
          %v1961 = vpop.permute.xlu0 %1960
          %1962 = vrot.lane.b32.xlu0 %v1587, 32
          %v1963 = vpop.permute.xlu0 %1962
          %1964 = vrot.lane.b32.xlu0 %v1588, 32
          %v1965 = vpop.permute.xlu0 %1964
          %1966 = vrot.lane.b32.xlu0 %v1589, 32
          %v1967 = vpop.permute.xlu0 %1966
          %1968 = vrot.lane.b32.xlu0 %v1590, 32
          %v1969 = vpop.permute.xlu0 %1968
          %1970 = vrot.lane.b32.xlu0 %v1591, 32
          %v1971 = vpop.permute.xlu0 %1970
          %1972 = vrot.lane.b32.xlu0 %v1592, 32
          %v1973 = vpop.permute.xlu0 %1972
          %1974 = vrot.lane.b32.xlu0 %v1593, 32
          %v1975 = vpop.permute.xlu0 %1974
          %1976 = vrot.lane.b32.xlu0 %v1594, 32
          %v1977 = vpop.permute.xlu0 %1976
          %1978 = vrot.lane.b32.xlu0 %v1595, 32
          %v1979 = vpop.permute.xlu0 %1978
          %v2108 = vsel %vm599, %v1725, 0.0
          %2109 = vadd.xlane.f32.xlu0 %v2108
          %v2110 = vpop.xlane.xlu0 %2109
          %v2111 = vsel %vm599, %v1727, 0.0
          %2112 = vadd.xlane.f32.xlu0 %v2111
          %v2113 = vpop.xlane.xlu0 %2112
          %v2114 = vsel %vm599, %v1729, 0.0
          %2115 = vadd.xlane.f32.xlu0 %v2114
          %v2116 = vpop.xlane.xlu0 %2115
          %v2117 = vsel %vm599, %v1731, 0.0
          %2118 = vadd.xlane.f32.xlu0 %v2117
          %v2119 = vpop.xlane.xlu0 %2118
          %v2120 = vsel %vm599, %v1733, 0.0
          %2121 = vadd.xlane.f32.xlu0 %v2120
          %v2122 = vpop.xlane.xlu0 %2121
          %v2123 = vsel %vm599, %v1735, 0.0
          %2124 = vadd.xlane.f32.xlu0 %v2123
          %v2125 = vpop.xlane.xlu0 %2124
          %v2126 = vsel %vm599, %v1737, 0.0
          %2127 = vadd.xlane.f32.xlu0 %v2126
          %v2128 = vpop.xlane.xlu0 %2127
          %v2129 = vsel %vm599, %v1739, 0.0
          %2130 = vadd.xlane.f32.xlu0 %v2129
          %v2131 = vpop.xlane.xlu0 %2130
          %v2132 = vsel %vm599, %v1741, 0.0
          %2133 = vadd.xlane.f32.xlu0 %v2132
          %v2134 = vpop.xlane.xlu0 %2133
          %v2135 = vsel %vm599, %v1743, 0.0
          %2136 = vadd.xlane.f32.xlu0 %v2135
          %v2137 = vpop.xlane.xlu0 %2136
          %v2138 = vsel %vm599, %v1745, 0.0
          %2139 = vadd.xlane.f32.xlu0 %v2138
          %v2140 = vpop.xlane.xlu0 %2139
          %v2141 = vsel %vm599, %v1747, 0.0
          %2142 = vadd.xlane.f32.xlu0 %v2141
          %v2143 = vpop.xlane.xlu0 %2142
          %v2144 = vsel %vm599, %v1749, 0.0
          %2145 = vadd.xlane.f32.xlu0 %v2144
          %v2146 = vpop.xlane.xlu0 %2145
          %v2147 = vsel %vm599, %v1751, 0.0
          %2148 = vadd.xlane.f32.xlu0 %v2147
          %v2149 = vpop.xlane.xlu0 %2148
          %v2150 = vsel %vm599, %v1753, 0.0
          %2151 = vadd.xlane.f32.xlu0 %v2150
          %v2152 = vpop.xlane.xlu0 %2151
          %v2153 = vsel %vm599, %v1755, 0.0
          %2154 = vadd.xlane.f32.xlu0 %v2153
          %v2155 = vpop.xlane.xlu0 %2154
          %v2156 = vsel %vm599, %v1757, 0.0
          %2157 = vadd.xlane.f32.xlu0 %v2156
          %v2158 = vpop.xlane.xlu0 %2157
          %v2159 = vsel %vm599, %v1759, 0.0
          %2160 = vadd.xlane.f32.xlu0 %v2159
          %v2161 = vpop.xlane.xlu0 %2160
          %v2162 = vsel %vm599, %v1761, 0.0
          %2163 = vadd.xlane.f32.xlu0 %v2162
          %v2164 = vpop.xlane.xlu0 %2163
          %v2165 = vsel %vm599, %v1763, 0.0
          %2166 = vadd.xlane.f32.xlu0 %v2165
          %v2167 = vpop.xlane.xlu0 %2166
          %v2168 = vsel %vm599, %v1765, 0.0
          %2169 = vadd.xlane.f32.xlu0 %v2168
          %v2170 = vpop.xlane.xlu0 %2169
          %v2171 = vsel %vm599, %v1767, 0.0
          %2172 = vadd.xlane.f32.xlu0 %v2171
          %v2173 = vpop.xlane.xlu0 %2172
          %v2174 = vsel %vm599, %v1769, 0.0
          %2175 = vadd.xlane.f32.xlu0 %v2174
          %v2176 = vpop.xlane.xlu0 %2175
          %v2177 = vsel %vm599, %v1771, 0.0
          %2178 = vadd.xlane.f32.xlu0 %v2177
          %v2179 = vpop.xlane.xlu0 %2178
          %v2180 = vsel %vm599, %v1773, 0.0
          %2181 = vadd.xlane.f32.xlu0 %v2180
          %v2182 = vpop.xlane.xlu0 %2181
          %v2183 = vsel %vm599, %v1775, 0.0
          %2184 = vadd.xlane.f32.xlu0 %v2183
          %v2185 = vpop.xlane.xlu0 %2184
          %v2186 = vsel %vm599, %v1777, 0.0
          %2187 = vadd.xlane.f32.xlu0 %v2186
          %v2188 = vpop.xlane.xlu0 %2187
          %v2189 = vsel %vm599, %v1779, 0.0
          %2190 = vadd.xlane.f32.xlu0 %v2189
          %v2191 = vpop.xlane.xlu0 %2190
          %v2192 = vsel %vm599, %v1781, 0.0
          %2193 = vadd.xlane.f32.xlu0 %v2192
          %v2194 = vpop.xlane.xlu0 %2193
          %v2195 = vsel %vm599, %v1783, 0.0
          %2196 = vadd.xlane.f32.xlu0 %v2195
          %v2197 = vpop.xlane.xlu0 %2196
          %v2198 = vsel %vm599, %v1785, 0.0
          %2199 = vadd.xlane.f32.xlu0 %v2198
          %v2200 = vpop.xlane.xlu0 %2199
          %v2201 = vsel %vm599, %v1787, 0.0
          %2202 = vadd.xlane.f32.xlu0 %v2201
          %v2203 = vpop.xlane.xlu0 %2202
          %v2204 = vsel %vm599, %v1789, 0.0
          %2205 = vadd.xlane.f32.xlu0 %v2204
          %v2206 = vpop.xlane.xlu0 %2205
          %v2207 = vsel %vm599, %v1791, 0.0
          %2208 = vadd.xlane.f32.xlu0 %v2207
          %v2209 = vpop.xlane.xlu0 %2208
          %v2210 = vsel %vm599, %v1793, 0.0
          %2211 = vadd.xlane.f32.xlu0 %v2210
          %v2212 = vpop.xlane.xlu0 %2211
          %v2213 = vsel %vm599, %v1795, 0.0
          %2214 = vadd.xlane.f32.xlu0 %v2213
          %v2215 = vpop.xlane.xlu0 %2214
          %v2216 = vsel %vm599, %v1797, 0.0
          %2217 = vadd.xlane.f32.xlu0 %v2216
          %v2218 = vpop.xlane.xlu0 %2217
          %v2219 = vsel %vm599, %v1799, 0.0
          %2220 = vadd.xlane.f32.xlu0 %v2219
          %v2221 = vpop.xlane.xlu0 %2220
          %v2222 = vsel %vm599, %v1801, 0.0
          %2223 = vadd.xlane.f32.xlu0 %v2222
          %v2224 = vpop.xlane.xlu0 %2223
          %v2225 = vsel %vm599, %v1803, 0.0
          %2226 = vadd.xlane.f32.xlu0 %v2225
          %v2227 = vpop.xlane.xlu0 %2226
          %v2228 = vsel %vm599, %v1805, 0.0
          %2229 = vadd.xlane.f32.xlu0 %v2228
          %v2230 = vpop.xlane.xlu0 %2229
          %v2231 = vsel %vm599, %v1807, 0.0
          %2232 = vadd.xlane.f32.xlu0 %v2231
          %v2233 = vpop.xlane.xlu0 %2232
          %v2234 = vsel %vm599, %v1809, 0.0
          %2235 = vadd.xlane.f32.xlu0 %v2234
          %v2236 = vpop.xlane.xlu0 %2235
          %v2237 = vsel %vm599, %v1811, 0.0
          %2238 = vadd.xlane.f32.xlu0 %v2237
          %v2239 = vpop.xlane.xlu0 %2238
          %v2240 = vsel %vm599, %v1813, 0.0
          %2241 = vadd.xlane.f32.xlu0 %v2240
          %v2242 = vpop.xlane.xlu0 %2241
          %v2243 = vsel %vm599, %v1815, 0.0
          %2244 = vadd.xlane.f32.xlu0 %v2243
          %v2245 = vpop.xlane.xlu0 %2244
          %v2246 = vsel %vm599, %v1817, 0.0
          %2247 = vadd.xlane.f32.xlu0 %v2246
          %v2248 = vpop.xlane.xlu0 %2247
          %v2249 = vsel %vm599, %v1819, 0.0
          %2250 = vadd.xlane.f32.xlu0 %v2249
          %v2251 = vpop.xlane.xlu0 %2250
          %v2252 = vsel %vm599, %v1821, 0.0
          %2253 = vadd.xlane.f32.xlu0 %v2252
          %v2254 = vpop.xlane.xlu0 %2253
          %v2255 = vsel %vm599, %v1823, 0.0
          %2256 = vadd.xlane.f32.xlu0 %v2255
          %v2257 = vpop.xlane.xlu0 %2256
          %v2258 = vsel %vm599, %v1825, 0.0
          %2259 = vadd.xlane.f32.xlu0 %v2258
          %v2260 = vpop.xlane.xlu0 %2259
          %v2261 = vsel %vm599, %v1827, 0.0
          %2262 = vadd.xlane.f32.xlu0 %v2261
          %v2263 = vpop.xlane.xlu0 %2262
          %v2264 = vsel %vm599, %v1829, 0.0
          %2265 = vadd.xlane.f32.xlu0 %v2264
          %v2266 = vpop.xlane.xlu0 %2265
          %v2267 = vsel %vm599, %v1831, 0.0
          %2268 = vadd.xlane.f32.xlu0 %v2267
          %v2269 = vpop.xlane.xlu0 %2268
          %v2270 = vsel %vm599, %v1833, 0.0
          %2271 = vadd.xlane.f32.xlu0 %v2270
          %v2272 = vpop.xlane.xlu0 %2271
          %v2273 = vsel %vm599, %v1835, 0.0
          %2274 = vadd.xlane.f32.xlu0 %v2273
          %v2275 = vpop.xlane.xlu0 %2274
          %v2276 = vsel %vm599, %v1837, 0.0
          %2277 = vadd.xlane.f32.xlu0 %v2276
          %v2278 = vpop.xlane.xlu0 %2277
          %v2279 = vsel %vm599, %v1839, 0.0
          %2280 = vadd.xlane.f32.xlu0 %v2279
          %v2281 = vpop.xlane.xlu0 %2280
          %v2282 = vsel %vm599, %v1841, 0.0
          %2283 = vadd.xlane.f32.xlu0 %v2282
          %v2284 = vpop.xlane.xlu0 %2283
          %v2285 = vsel %vm599, %v1843, 0.0
          %2286 = vadd.xlane.f32.xlu0 %v2285
          %v2287 = vpop.xlane.xlu0 %2286
          %v2288 = vsel %vm599, %v1845, 0.0
          %2289 = vadd.xlane.f32.xlu0 %v2288
          %v2290 = vpop.xlane.xlu0 %2289
          %v2291 = vsel %vm599, %v1847, 0.0
          %2292 = vadd.xlane.f32.xlu0 %v2291
          %v2293 = vpop.xlane.xlu0 %2292
          %v2294 = vsel %vm599, %v1849, 0.0
          %2295 = vadd.xlane.f32.xlu0 %v2294
          %v2296 = vpop.xlane.xlu0 %2295
          %v2297 = vsel %vm599, %v1851, 0.0
          %2298 = vadd.xlane.f32.xlu0 %v2297
          %v2299 = vpop.xlane.xlu0 %2298
          %v2300 = vsel %vm599, %v1853, 0.0
          %2301 = vadd.xlane.f32.xlu0 %v2300
          %v2302 = vpop.xlane.xlu0 %2301
          %v2303 = vsel %vm599, %v1855, 0.0
          %2304 = vadd.xlane.f32.xlu0 %v2303
          %v2305 = vpop.xlane.xlu0 %2304
          %v2306 = vsel %vm599, %v1857, 0.0
          %2307 = vadd.xlane.f32.xlu0 %v2306
          %v2308 = vpop.xlane.xlu0 %2307
          %v2309 = vsel %vm599, %v1859, 0.0
          %2310 = vadd.xlane.f32.xlu0 %v2309
          %v2311 = vpop.xlane.xlu0 %2310
          %v2312 = vsel %vm599, %v1861, 0.0
          %2313 = vadd.xlane.f32.xlu0 %v2312
          %v2314 = vpop.xlane.xlu0 %2313
          %v2315 = vsel %vm599, %v1863, 0.0
          %2316 = vadd.xlane.f32.xlu0 %v2315
          %v2317 = vpop.xlane.xlu0 %2316
          %v2318 = vsel %vm599, %v1865, 0.0
          %2319 = vadd.xlane.f32.xlu0 %v2318
          %v2320 = vpop.xlane.xlu0 %2319
          %v2321 = vsel %vm599, %v1867, 0.0
          %2322 = vadd.xlane.f32.xlu0 %v2321
          %v2323 = vpop.xlane.xlu0 %2322
          %v2324 = vsel %vm599, %v1869, 0.0
          %2325 = vadd.xlane.f32.xlu0 %v2324
          %v2326 = vpop.xlane.xlu0 %2325
          %v2327 = vsel %vm599, %v1871, 0.0
          %2328 = vadd.xlane.f32.xlu0 %v2327
          %v2329 = vpop.xlane.xlu0 %2328
          %v2330 = vsel %vm599, %v1873, 0.0
          %2331 = vadd.xlane.f32.xlu0 %v2330
          %v2332 = vpop.xlane.xlu0 %2331
          %v2333 = vsel %vm599, %v1875, 0.0
          %2334 = vadd.xlane.f32.xlu0 %v2333
          %v2335 = vpop.xlane.xlu0 %2334
          %v2336 = vsel %vm599, %v1877, 0.0
          %2337 = vadd.xlane.f32.xlu0 %v2336
          %v2338 = vpop.xlane.xlu0 %2337
          %v2339 = vsel %vm599, %v1879, 0.0
          %2340 = vadd.xlane.f32.xlu0 %v2339
          %v2341 = vpop.xlane.xlu0 %2340
          %v2342 = vsel %vm599, %v1881, 0.0
          %2343 = vadd.xlane.f32.xlu0 %v2342
          %v2344 = vpop.xlane.xlu0 %2343
          %v2345 = vsel %vm599, %v1883, 0.0
          %2346 = vadd.xlane.f32.xlu0 %v2345
          %v2347 = vpop.xlane.xlu0 %2346
          %v2348 = vsel %vm599, %v1885, 0.0
          %2349 = vadd.xlane.f32.xlu0 %v2348
          %v2350 = vpop.xlane.xlu0 %2349
          %v2351 = vsel %vm599, %v1887, 0.0
          %2352 = vadd.xlane.f32.xlu0 %v2351
          %v2353 = vpop.xlane.xlu0 %2352
          %v2354 = vsel %vm599, %v1889, 0.0
          %2355 = vadd.xlane.f32.xlu0 %v2354
          %v2356 = vpop.xlane.xlu0 %2355
          %v2357 = vsel %vm599, %v1891, 0.0
          %2358 = vadd.xlane.f32.xlu0 %v2357
          %v2359 = vpop.xlane.xlu0 %2358
          %v2360 = vsel %vm599, %v1893, 0.0
          %2361 = vadd.xlane.f32.xlu0 %v2360
          %v2362 = vpop.xlane.xlu0 %2361
          %v2363 = vsel %vm599, %v1895, 0.0
          %2364 = vadd.xlane.f32.xlu0 %v2363
          %v2365 = vpop.xlane.xlu0 %2364
          %v2366 = vsel %vm599, %v1897, 0.0
          %2367 = vadd.xlane.f32.xlu0 %v2366
          %v2368 = vpop.xlane.xlu0 %2367
          %v2369 = vsel %vm599, %v1899, 0.0
          %2370 = vadd.xlane.f32.xlu0 %v2369
          %v2371 = vpop.xlane.xlu0 %2370
          %v2372 = vsel %vm599, %v1901, 0.0
          %2373 = vadd.xlane.f32.xlu0 %v2372
          %v2374 = vpop.xlane.xlu0 %2373
          %v2375 = vsel %vm599, %v1903, 0.0
          %2376 = vadd.xlane.f32.xlu0 %v2375
          %v2377 = vpop.xlane.xlu0 %2376
          %v2378 = vsel %vm599, %v1905, 0.0
          %2379 = vadd.xlane.f32.xlu0 %v2378
          %v2380 = vpop.xlane.xlu0 %2379
          %v2381 = vsel %vm599, %v1907, 0.0
          %2382 = vadd.xlane.f32.xlu0 %v2381
          %v2383 = vpop.xlane.xlu0 %2382
          %v2384 = vsel %vm599, %v1909, 0.0
          %2385 = vadd.xlane.f32.xlu0 %v2384
          %v2386 = vpop.xlane.xlu0 %2385
          %v2387 = vsel %vm599, %v1911, 0.0
          %2388 = vadd.xlane.f32.xlu0 %v2387
          %v2389 = vpop.xlane.xlu0 %2388
          %v2390 = vsel %vm599, %v1913, 0.0
          %2391 = vadd.xlane.f32.xlu0 %v2390
          %v2392 = vpop.xlane.xlu0 %2391
          %v2393 = vsel %vm599, %v1915, 0.0
          %2394 = vadd.xlane.f32.xlu0 %v2393
          %v2395 = vpop.xlane.xlu0 %2394
          %v2396 = vsel %vm599, %v1917, 0.0
          %2397 = vadd.xlane.f32.xlu0 %v2396
          %v2398 = vpop.xlane.xlu0 %2397
          %v2399 = vsel %vm599, %v1919, 0.0
          %2400 = vadd.xlane.f32.xlu0 %v2399
          %v2401 = vpop.xlane.xlu0 %2400
          %v2402 = vsel %vm599, %v1921, 0.0
          %2403 = vadd.xlane.f32.xlu0 %v2402
          %v2404 = vpop.xlane.xlu0 %2403
          %v2405 = vsel %vm599, %v1923, 0.0
          %2406 = vadd.xlane.f32.xlu0 %v2405
          %v2407 = vpop.xlane.xlu0 %2406
          %v2408 = vsel %vm599, %v1925, 0.0
          %2409 = vadd.xlane.f32.xlu0 %v2408
          %v2410 = vpop.xlane.xlu0 %2409
          %v2411 = vsel %vm599, %v1927, 0.0
          %2412 = vadd.xlane.f32.xlu0 %v2411
          %v2413 = vpop.xlane.xlu0 %2412
          %v2414 = vsel %vm599, %v1929, 0.0
          %2415 = vadd.xlane.f32.xlu0 %v2414
          %v2416 = vpop.xlane.xlu0 %2415
          %v2417 = vsel %vm599, %v1931, 0.0
          %2418 = vadd.xlane.f32.xlu0 %v2417
          %v2419 = vpop.xlane.xlu0 %2418
          %v2420 = vsel %vm599, %v1933, 0.0
          %2421 = vadd.xlane.f32.xlu0 %v2420
          %v2422 = vpop.xlane.xlu0 %2421
          %v2423 = vsel %vm599, %v1935, 0.0
          %2424 = vadd.xlane.f32.xlu0 %v2423
          %v2425 = vpop.xlane.xlu0 %2424
          %v2426 = vsel %vm599, %v1937, 0.0
          %2427 = vadd.xlane.f32.xlu0 %v2426
          %v2428 = vpop.xlane.xlu0 %2427
          %v2429 = vsel %vm599, %v1939, 0.0
          %2430 = vadd.xlane.f32.xlu0 %v2429
          %v2431 = vpop.xlane.xlu0 %2430
          %v2432 = vsel %vm599, %v1941, 0.0
          %2433 = vadd.xlane.f32.xlu0 %v2432
          %v2434 = vpop.xlane.xlu0 %2433
          %v2435 = vsel %vm599, %v1943, 0.0
          %2436 = vadd.xlane.f32.xlu0 %v2435
          %v2437 = vpop.xlane.xlu0 %2436
          %v2438 = vsel %vm599, %v1945, 0.0
          %2439 = vadd.xlane.f32.xlu0 %v2438
          %v2440 = vpop.xlane.xlu0 %2439
          %v2441 = vsel %vm599, %v1947, 0.0
          %2442 = vadd.xlane.f32.xlu0 %v2441
          %v2443 = vpop.xlane.xlu0 %2442
          %v2444 = vsel %vm599, %v1949, 0.0
          %2445 = vadd.xlane.f32.xlu0 %v2444
          %v2446 = vpop.xlane.xlu0 %2445
          %v2447 = vsel %vm599, %v1951, 0.0
          %2448 = vadd.xlane.f32.xlu0 %v2447
          %v2449 = vpop.xlane.xlu0 %2448
          %v2450 = vsel %vm599, %v1953, 0.0
          %2451 = vadd.xlane.f32.xlu0 %v2450
          %v2452 = vpop.xlane.xlu0 %2451
          %v2453 = vsel %vm599, %v1955, 0.0
          %2454 = vadd.xlane.f32.xlu0 %v2453
          %v2455 = vpop.xlane.xlu0 %2454
          %v2456 = vsel %vm599, %v1957, 0.0
          %2457 = vadd.xlane.f32.xlu0 %v2456
          %v2458 = vpop.xlane.xlu0 %2457
          %v2459 = vsel %vm599, %v1959, 0.0
          %2460 = vadd.xlane.f32.xlu0 %v2459
          %v2461 = vpop.xlane.xlu0 %2460
          %v2462 = vsel %vm599, %v1961, 0.0
          %2463 = vadd.xlane.f32.xlu0 %v2462
          %v2464 = vpop.xlane.xlu0 %2463
          %v2465 = vsel %vm599, %v1963, 0.0
          %2466 = vadd.xlane.f32.xlu0 %v2465
          %v2467 = vpop.xlane.xlu0 %2466
          %v2468 = vsel %vm599, %v1965, 0.0
          %2469 = vadd.xlane.f32.xlu0 %v2468
          %v2470 = vpop.xlane.xlu0 %2469
          %v2471 = vsel %vm599, %v1967, 0.0
          %2472 = vadd.xlane.f32.xlu0 %v2471
          %v2473 = vpop.xlane.xlu0 %2472
          %v2474 = vsel %vm599, %v1969, 0.0
          %2475 = vadd.xlane.f32.xlu0 %v2474
          %v2476 = vpop.xlane.xlu0 %2475
          %v2477 = vsel %vm599, %v1971, 0.0
          %2478 = vadd.xlane.f32.xlu0 %v2477
          %v2479 = vpop.xlane.xlu0 %2478
          %v2480 = vsel %vm599, %v1973, 0.0
          %2481 = vadd.xlane.f32.xlu0 %v2480
          %v2482 = vpop.xlane.xlu0 %2481
          %v2483 = vsel %vm599, %v1975, 0.0
          %2484 = vadd.xlane.f32.xlu0 %v2483
          %v2485 = vpop.xlane.xlu0 %2484
          %v2486 = vsel %vm599, %v1977, 0.0
          %2487 = vadd.xlane.f32.xlu0 %v2486
          %v2488 = vpop.xlane.xlu0 %2487
          %v2489 = vsel %vm599, %v1979, 0.0
          %2490 = vadd.xlane.f32.xlu0 %v2489
          %v2491 = vpop.xlane.xlu0 %2490
          %v2492 = vlaneseq
          %v2493 = vand.u32 %v2492, 127
          %vm2494 = vcmp.lt.s32.totalorder %v2493, 8
          %v2623 = vlaneseq
          %v2624 = vshrl.u32 %v2623, 7
          %v2625 = vsub.s32 %v2493, %v2624
          %v2626 = vrot.slane %v2110, %v2625
          %v2627 = vadd.s32 %v2493, 4294967288
          %v2628 = vlaneseq
          %v2629 = vshrl.u32 %v2628, 7
          %v2630 = vsub.s32 %v2627, %v2629
          %v2631 = vrot.slane %v2113, %v2630
          %vm2632 = vcmask 130112
          %v2633 = vsel %vm2632, %v2631, %v2626
          %v2634 = vadd.s32 %v2493, 4294967280
          %v2635 = vlaneseq
          %v2636 = vshrl.u32 %v2635, 7
          %v2637 = vsub.s32 %v2634, %v2636
          %v2638 = vrot.slane %v2116, %v2637
          %vm2639 = vcmask 195712
          %v2640 = vsel %vm2639, %v2638, %v2633
          %v2641 = vadd.s32 %v2493, 4294967272
          %v2642 = vlaneseq
          %v2643 = vshrl.u32 %v2642, 7
          %v2644 = vsub.s32 %v2641, %v2643
          %v2645 = vrot.slane %v2119, %v2644
          %vm2646 = vcmask 261312
          %v2647 = vsel %vm2646, %v2645, %v2640
          %v2648 = vadd.s32 %v2493, 4294967264
          %v2649 = vlaneseq
          %v2650 = vshrl.u32 %v2649, 7
          %v2651 = vsub.s32 %v2648, %v2650
          %v2652 = vrot.slane %v2122, %v2651
          %vm2653 = vcmask 326912
          %v2654 = vsel %vm2653, %v2652, %v2647
          %v2655 = vadd.s32 %v2493, 4294967256
          %v2656 = vlaneseq
          %v2657 = vshrl.u32 %v2656, 7
          %v2658 = vsub.s32 %v2655, %v2657
          %v2659 = vrot.slane %v2125, %v2658
          %vm2660 = vcmask 392512
          %v2661 = vsel %vm2660, %v2659, %v2654
          %v2662 = vadd.s32 %v2493, 4294967248
          %v2663 = vlaneseq
          %v2664 = vshrl.u32 %v2663, 7
          %v2665 = vsub.s32 %v2662, %v2664
          %v2666 = vrot.slane %v2128, %v2665
          %vm2667 = vcmask 458112
          %v2668 = vsel %vm2667, %v2666, %v2661
          %v2669 = vadd.s32 %v2493, 4294967240
          %v2670 = vlaneseq
          %v2671 = vshrl.u32 %v2670, 7
          %v2672 = vsub.s32 %v2669, %v2671
          %v2673 = vrot.slane %v2131, %v2672
          %vm2674 = vcmask 523712
          %v2675 = vsel %vm2674, %v2673, %v2668
          %v2676 = vadd.s32 %v2493, 4294967232
          %v2677 = vlaneseq
          %v2678 = vshrl.u32 %v2677, 7
          %v2679 = vsub.s32 %v2676, %v2678
          %v2680 = vrot.slane %v2134, %v2679
          %vm2681 = vcmask 589312
          %v2682 = vsel %vm2681, %v2680, %v2675
          %v2683 = vadd.s32 %v2493, 4294967224
          %v2684 = vlaneseq
          %v2685 = vshrl.u32 %v2684, 7
          %v2686 = vsub.s32 %v2683, %v2685
          %v2687 = vrot.slane %v2137, %v2686
          %vm2688 = vcmask 654912
          %v2689 = vsel %vm2688, %v2687, %v2682
          %v2690 = vadd.s32 %v2493, 4294967216
          %v2691 = vlaneseq
          %v2692 = vshrl.u32 %v2691, 7
          %v2693 = vsub.s32 %v2690, %v2692
          %v2694 = vrot.slane %v2140, %v2693
          %vm2695 = vcmask 720512
          %v2696 = vsel %vm2695, %v2694, %v2689
          %v2697 = vadd.s32 %v2493, 4294967208
          %v2698 = vlaneseq
          %v2699 = vshrl.u32 %v2698, 7
          %v2700 = vsub.s32 %v2697, %v2699
          %v2701 = vrot.slane %v2143, %v2700
          %vm2702 = vcmask 786112
          %v2703 = vsel %vm2702, %v2701, %v2696
          %v2704 = vadd.s32 %v2493, 4294967200
          %v2705 = vlaneseq
          %v2706 = vshrl.u32 %v2705, 7
          %v2707 = vsub.s32 %v2704, %v2706
          %v2708 = vrot.slane %v2146, %v2707
          %vm2709 = vcmask 851712
          %v2710 = vsel %vm2709, %v2708, %v2703
          %v2711 = vadd.s32 %v2493, 4294967192
          %v2712 = vlaneseq
          %v2713 = vshrl.u32 %v2712, 7
          %v2714 = vsub.s32 %v2711, %v2713
          %v2715 = vrot.slane %v2149, %v2714
          %vm2716 = vcmask 917312
          %v2717 = vsel %vm2716, %v2715, %v2710
          %v2718 = vadd.s32 %v2493, 4294967184
          %v2719 = vlaneseq
          %v2720 = vshrl.u32 %v2719, 7
          %v2721 = vsub.s32 %v2718, %v2720
          %v2722 = vrot.slane %v2152, %v2721
          %vm2723 = vcmask 982912
          %v2724 = vsel %vm2723, %v2722, %v2717
          %v2725 = vadd.s32 %v2493, 4294967176
          %v2726 = vlaneseq
          %v2727 = vshrl.u32 %v2726, 7
          %v2728 = vsub.s32 %v2725, %v2727
          %v2729 = vrot.slane %v2155, %v2728
          %vm2730 = vcmask 1048512
          %v2731 = vsel %vm2730, %v2729, %v2724
          %v2732 = vlaneseq
          %v2733 = vshrl.u32 %v2732, 7
          %v2734 = vsub.s32 %v2493, %v2733
          %v2735 = vrot.slane %v2158, %v2734
          %v2736 = vlaneseq
          %v2737 = vshrl.u32 %v2736, 7
          %v2738 = vsub.s32 %v2627, %v2737
          %v2739 = vrot.slane %v2161, %v2738
          %v2740 = vsel %vm2632, %v2739, %v2735
          %v2741 = vlaneseq
          %v2742 = vshrl.u32 %v2741, 7
          %v2743 = vsub.s32 %v2634, %v2742
          %v2744 = vrot.slane %v2164, %v2743
          %v2745 = vsel %vm2639, %v2744, %v2740
          %v2746 = vlaneseq
          %v2747 = vshrl.u32 %v2746, 7
          %v2748 = vsub.s32 %v2641, %v2747
          %v2749 = vrot.slane %v2167, %v2748
          %v2750 = vsel %vm2646, %v2749, %v2745
          %v2751 = vlaneseq
          %v2752 = vshrl.u32 %v2751, 7
          %v2753 = vsub.s32 %v2648, %v2752
          %v2754 = vrot.slane %v2170, %v2753
          %v2755 = vsel %vm2653, %v2754, %v2750
          %v2756 = vlaneseq
          %v2757 = vshrl.u32 %v2756, 7
          %v2758 = vsub.s32 %v2655, %v2757
          %v2759 = vrot.slane %v2173, %v2758
          %v2760 = vsel %vm2660, %v2759, %v2755
          %v2761 = vlaneseq
          %v2762 = vshrl.u32 %v2761, 7
          %v2763 = vsub.s32 %v2662, %v2762
          %v2764 = vrot.slane %v2176, %v2763
          %v2765 = vsel %vm2667, %v2764, %v2760
          %v2766 = vlaneseq
          %v2767 = vshrl.u32 %v2766, 7
          %v2768 = vsub.s32 %v2669, %v2767
          %v2769 = vrot.slane %v2179, %v2768
          %v2770 = vsel %vm2674, %v2769, %v2765
          %v2771 = vlaneseq
          %v2772 = vshrl.u32 %v2771, 7
          %v2773 = vsub.s32 %v2676, %v2772
          %v2774 = vrot.slane %v2182, %v2773
          %v2775 = vsel %vm2681, %v2774, %v2770
          %v2776 = vlaneseq
          %v2777 = vshrl.u32 %v2776, 7
          %v2778 = vsub.s32 %v2683, %v2777
          %v2779 = vrot.slane %v2185, %v2778
          %v2780 = vsel %vm2688, %v2779, %v2775
          %v2781 = vlaneseq
          %v2782 = vshrl.u32 %v2781, 7
          %v2783 = vsub.s32 %v2690, %v2782
          %v2784 = vrot.slane %v2188, %v2783
          %v2785 = vsel %vm2695, %v2784, %v2780
          %v2786 = vlaneseq
          %v2787 = vshrl.u32 %v2786, 7
          %v2788 = vsub.s32 %v2697, %v2787
          %v2789 = vrot.slane %v2191, %v2788
          %v2790 = vsel %vm2702, %v2789, %v2785
          %v2791 = vlaneseq
          %v2792 = vshrl.u32 %v2791, 7
          %v2793 = vsub.s32 %v2704, %v2792
          %v2794 = vrot.slane %v2194, %v2793
          %v2795 = vsel %vm2709, %v2794, %v2790
          %v2796 = vlaneseq
          %v2797 = vshrl.u32 %v2796, 7
          %v2798 = vsub.s32 %v2711, %v2797
          %v2799 = vrot.slane %v2197, %v2798
          %v2800 = vsel %vm2716, %v2799, %v2795
          %v2801 = vlaneseq
          %v2802 = vshrl.u32 %v2801, 7
          %v2803 = vsub.s32 %v2718, %v2802
          %v2804 = vrot.slane %v2200, %v2803
          %v2805 = vsel %vm2723, %v2804, %v2800
          %v2806 = vlaneseq
          %v2807 = vshrl.u32 %v2806, 7
          %v2808 = vsub.s32 %v2725, %v2807
          %v2809 = vrot.slane %v2203, %v2808
          %v2810 = vsel %vm2730, %v2809, %v2805
          %v2811 = vlaneseq
          %v2812 = vshrl.u32 %v2811, 7
          %v2813 = vsub.s32 %v2493, %v2812
          %v2814 = vrot.slane %v2206, %v2813
          %v2815 = vlaneseq
          %v2816 = vshrl.u32 %v2815, 7
          %v2817 = vsub.s32 %v2627, %v2816
          %v2818 = vrot.slane %v2209, %v2817
          %v2819 = vsel %vm2632, %v2818, %v2814
          %v2820 = vlaneseq
          %v2821 = vshrl.u32 %v2820, 7
          %v2822 = vsub.s32 %v2634, %v2821
          %v2823 = vrot.slane %v2212, %v2822
          %v2824 = vsel %vm2639, %v2823, %v2819
          %v2825 = vlaneseq
          %v2826 = vshrl.u32 %v2825, 7
          %v2827 = vsub.s32 %v2641, %v2826
          %v2828 = vrot.slane %v2215, %v2827
          %v2829 = vsel %vm2646, %v2828, %v2824
          %v2830 = vlaneseq
          %v2831 = vshrl.u32 %v2830, 7
          %v2832 = vsub.s32 %v2648, %v2831
          %v2833 = vrot.slane %v2218, %v2832
          %v2834 = vsel %vm2653, %v2833, %v2829
          %v2835 = vlaneseq
          %v2836 = vshrl.u32 %v2835, 7
          %v2837 = vsub.s32 %v2655, %v2836
          %v2838 = vrot.slane %v2221, %v2837
          %v2839 = vsel %vm2660, %v2838, %v2834
          %v2840 = vlaneseq
          %v2841 = vshrl.u32 %v2840, 7
          %v2842 = vsub.s32 %v2662, %v2841
          %v2843 = vrot.slane %v2224, %v2842
          %v2844 = vsel %vm2667, %v2843, %v2839
          %v2845 = vlaneseq
          %v2846 = vshrl.u32 %v2845, 7
          %v2847 = vsub.s32 %v2669, %v2846
          %v2848 = vrot.slane %v2227, %v2847
          %v2849 = vsel %vm2674, %v2848, %v2844
          %v2850 = vlaneseq
          %v2851 = vshrl.u32 %v2850, 7
          %v2852 = vsub.s32 %v2676, %v2851
          %v2853 = vrot.slane %v2230, %v2852
          %v2854 = vsel %vm2681, %v2853, %v2849
          %v2855 = vlaneseq
          %v2856 = vshrl.u32 %v2855, 7
          %v2857 = vsub.s32 %v2683, %v2856
          %v2858 = vrot.slane %v2233, %v2857
          %v2859 = vsel %vm2688, %v2858, %v2854
          %v2860 = vlaneseq
          %v2861 = vshrl.u32 %v2860, 7
          %v2862 = vsub.s32 %v2690, %v2861
          %v2863 = vrot.slane %v2236, %v2862
          %v2864 = vsel %vm2695, %v2863, %v2859
          %v2865 = vlaneseq
          %v2866 = vshrl.u32 %v2865, 7
          %v2867 = vsub.s32 %v2697, %v2866
          %v2868 = vrot.slane %v2239, %v2867
          %v2869 = vsel %vm2702, %v2868, %v2864
          %v2870 = vlaneseq
          %v2871 = vshrl.u32 %v2870, 7
          %v2872 = vsub.s32 %v2704, %v2871
          %v2873 = vrot.slane %v2242, %v2872
          %v2874 = vsel %vm2709, %v2873, %v2869
          %v2875 = vlaneseq
          %v2876 = vshrl.u32 %v2875, 7
          %v2877 = vsub.s32 %v2711, %v2876
          %v2878 = vrot.slane %v2245, %v2877
          %v2879 = vsel %vm2716, %v2878, %v2874
          %v2880 = vlaneseq
          %v2881 = vshrl.u32 %v2880, 7
          %v2882 = vsub.s32 %v2718, %v2881
          %v2883 = vrot.slane %v2248, %v2882
          %v2884 = vsel %vm2723, %v2883, %v2879
          %v2885 = vlaneseq
          %v2886 = vshrl.u32 %v2885, 7
          %v2887 = vsub.s32 %v2725, %v2886
          %v2888 = vrot.slane %v2251, %v2887
          %v2889 = vsel %vm2730, %v2888, %v2884
          %v2890 = vlaneseq
          %v2891 = vshrl.u32 %v2890, 7
          %v2892 = vsub.s32 %v2493, %v2891
          %v2893 = vrot.slane %v2254, %v2892
          %v2894 = vlaneseq
          %v2895 = vshrl.u32 %v2894, 7
          %v2896 = vsub.s32 %v2627, %v2895
          %v2897 = vrot.slane %v2257, %v2896
          %v2898 = vsel %vm2632, %v2897, %v2893
          %v2899 = vlaneseq
          %v2900 = vshrl.u32 %v2899, 7
          %v2901 = vsub.s32 %v2634, %v2900
          %v2902 = vrot.slane %v2260, %v2901
          %v2903 = vsel %vm2639, %v2902, %v2898
          %v2904 = vlaneseq
          %v2905 = vshrl.u32 %v2904, 7
          %v2906 = vsub.s32 %v2641, %v2905
          %v2907 = vrot.slane %v2263, %v2906
          %v2908 = vsel %vm2646, %v2907, %v2903
          %v2909 = vlaneseq
          %v2910 = vshrl.u32 %v2909, 7
          %v2911 = vsub.s32 %v2648, %v2910
          %v2912 = vrot.slane %v2266, %v2911
          %v2913 = vsel %vm2653, %v2912, %v2908
          %v2914 = vlaneseq
          %v2915 = vshrl.u32 %v2914, 7
          %v2916 = vsub.s32 %v2655, %v2915
          %v2917 = vrot.slane %v2269, %v2916
          %v2918 = vsel %vm2660, %v2917, %v2913
          %v2919 = vlaneseq
          %v2920 = vshrl.u32 %v2919, 7
          %v2921 = vsub.s32 %v2662, %v2920
          %v2922 = vrot.slane %v2272, %v2921
          %v2923 = vsel %vm2667, %v2922, %v2918
          %v2924 = vlaneseq
          %v2925 = vshrl.u32 %v2924, 7
          %v2926 = vsub.s32 %v2669, %v2925
          %v2927 = vrot.slane %v2275, %v2926
          %v2928 = vsel %vm2674, %v2927, %v2923
          %v2929 = vlaneseq
          %v2930 = vshrl.u32 %v2929, 7
          %v2931 = vsub.s32 %v2676, %v2930
          %v2932 = vrot.slane %v2278, %v2931
          %v2933 = vsel %vm2681, %v2932, %v2928
          %v2934 = vlaneseq
          %v2935 = vshrl.u32 %v2934, 7
          %v2936 = vsub.s32 %v2683, %v2935
          %v2937 = vrot.slane %v2281, %v2936
          %v2938 = vsel %vm2688, %v2937, %v2933
          %v2939 = vlaneseq
          %v2940 = vshrl.u32 %v2939, 7
          %v2941 = vsub.s32 %v2690, %v2940
          %v2942 = vrot.slane %v2284, %v2941
          %v2943 = vsel %vm2695, %v2942, %v2938
          %v2944 = vlaneseq
          %v2945 = vshrl.u32 %v2944, 7
          %v2946 = vsub.s32 %v2697, %v2945
          %v2947 = vrot.slane %v2287, %v2946
          %v2948 = vsel %vm2702, %v2947, %v2943
          %v2949 = vlaneseq
          %v2950 = vshrl.u32 %v2949, 7
          %v2951 = vsub.s32 %v2704, %v2950
          %v2952 = vrot.slane %v2290, %v2951
          %v2953 = vsel %vm2709, %v2952, %v2948
          %v2954 = vlaneseq
          %v2955 = vshrl.u32 %v2954, 7
          %v2956 = vsub.s32 %v2711, %v2955
          %v2957 = vrot.slane %v2293, %v2956
          %v2958 = vsel %vm2716, %v2957, %v2953
          %v2959 = vlaneseq
          %v2960 = vshrl.u32 %v2959, 7
          %v2961 = vsub.s32 %v2718, %v2960
          %v2962 = vrot.slane %v2296, %v2961
          %v2963 = vsel %vm2723, %v2962, %v2958
          %v2964 = vlaneseq
          %v2965 = vshrl.u32 %v2964, 7
          %v2966 = vsub.s32 %v2725, %v2965
          %v2967 = vrot.slane %v2299, %v2966
          %v2968 = vsel %vm2730, %v2967, %v2963
          %v2969 = vlaneseq
          %v2970 = vshrl.u32 %v2969, 7
          %v2971 = vsub.s32 %v2493, %v2970
          %v2972 = vrot.slane %v2302, %v2971
          %v2973 = vlaneseq
          %v2974 = vshrl.u32 %v2973, 7
          %v2975 = vsub.s32 %v2627, %v2974
          %v2976 = vrot.slane %v2305, %v2975
          %v2977 = vsel %vm2632, %v2976, %v2972
          %v2978 = vlaneseq
          %v2979 = vshrl.u32 %v2978, 7
          %v2980 = vsub.s32 %v2634, %v2979
          %v2981 = vrot.slane %v2308, %v2980
          %v2982 = vsel %vm2639, %v2981, %v2977
          %v2983 = vlaneseq
          %v2984 = vshrl.u32 %v2983, 7
          %v2985 = vsub.s32 %v2641, %v2984
          %v2986 = vrot.slane %v2311, %v2985
          %v2987 = vsel %vm2646, %v2986, %v2982
          %v2988 = vlaneseq
          %v2989 = vshrl.u32 %v2988, 7
          %v2990 = vsub.s32 %v2648, %v2989
          %v2991 = vrot.slane %v2314, %v2990
          %v2992 = vsel %vm2653, %v2991, %v2987
          %v2993 = vlaneseq
          %v2994 = vshrl.u32 %v2993, 7
          %v2995 = vsub.s32 %v2655, %v2994
          %v2996 = vrot.slane %v2317, %v2995
          %v2997 = vsel %vm2660, %v2996, %v2992
          %v2998 = vlaneseq
          %v2999 = vshrl.u32 %v2998, 7
          %v3000 = vsub.s32 %v2662, %v2999
          %v3001 = vrot.slane %v2320, %v3000
          %v3002 = vsel %vm2667, %v3001, %v2997
          %v3003 = vlaneseq
          %v3004 = vshrl.u32 %v3003, 7
          %v3005 = vsub.s32 %v2669, %v3004
          %v3006 = vrot.slane %v2323, %v3005
          %v3007 = vsel %vm2674, %v3006, %v3002
          %v3008 = vlaneseq
          %v3009 = vshrl.u32 %v3008, 7
          %v3010 = vsub.s32 %v2676, %v3009
          %v3011 = vrot.slane %v2326, %v3010
          %v3012 = vsel %vm2681, %v3011, %v3007
          %v3013 = vlaneseq
          %v3014 = vshrl.u32 %v3013, 7
          %v3015 = vsub.s32 %v2683, %v3014
          %v3016 = vrot.slane %v2329, %v3015
          %v3017 = vsel %vm2688, %v3016, %v3012
          %v3018 = vlaneseq
          %v3019 = vshrl.u32 %v3018, 7
          %v3020 = vsub.s32 %v2690, %v3019
          %v3021 = vrot.slane %v2332, %v3020
          %v3022 = vsel %vm2695, %v3021, %v3017
          %v3023 = vlaneseq
          %v3024 = vshrl.u32 %v3023, 7
          %v3025 = vsub.s32 %v2697, %v3024
          %v3026 = vrot.slane %v2335, %v3025
          %v3027 = vsel %vm2702, %v3026, %v3022
          %v3028 = vlaneseq
          %v3029 = vshrl.u32 %v3028, 7
          %v3030 = vsub.s32 %v2704, %v3029
          %v3031 = vrot.slane %v2338, %v3030
          %v3032 = vsel %vm2709, %v3031, %v3027
          %v3033 = vlaneseq
          %v3034 = vshrl.u32 %v3033, 7
          %v3035 = vsub.s32 %v2711, %v3034
          %v3036 = vrot.slane %v2341, %v3035
          %v3037 = vsel %vm2716, %v3036, %v3032
          %v3038 = vlaneseq
          %v3039 = vshrl.u32 %v3038, 7
          %v3040 = vsub.s32 %v2718, %v3039
          %v3041 = vrot.slane %v2344, %v3040
          %v3042 = vsel %vm2723, %v3041, %v3037
          %v3043 = vlaneseq
          %v3044 = vshrl.u32 %v3043, 7
          %v3045 = vsub.s32 %v2725, %v3044
          %v3046 = vrot.slane %v2347, %v3045
          %v3047 = vsel %vm2730, %v3046, %v3042
          %v3048 = vlaneseq
          %v3049 = vshrl.u32 %v3048, 7
          %v3050 = vsub.s32 %v2493, %v3049
          %v3051 = vrot.slane %v2350, %v3050
          %v3052 = vlaneseq
          %v3053 = vshrl.u32 %v3052, 7
          %v3054 = vsub.s32 %v2627, %v3053
          %v3055 = vrot.slane %v2353, %v3054
          %v3056 = vsel %vm2632, %v3055, %v3051
          %v3057 = vlaneseq
          %v3058 = vshrl.u32 %v3057, 7
          %v3059 = vsub.s32 %v2634, %v3058
          %v3060 = vrot.slane %v2356, %v3059
          %v3061 = vsel %vm2639, %v3060, %v3056
          %v3062 = vlaneseq
          %v3063 = vshrl.u32 %v3062, 7
          %v3064 = vsub.s32 %v2641, %v3063
          %v3065 = vrot.slane %v2359, %v3064
          %v3066 = vsel %vm2646, %v3065, %v3061
          %v3067 = vlaneseq
          %v3068 = vshrl.u32 %v3067, 7
          %v3069 = vsub.s32 %v2648, %v3068
          %v3070 = vrot.slane %v2362, %v3069
          %v3071 = vsel %vm2653, %v3070, %v3066
          %v3072 = vlaneseq
          %v3073 = vshrl.u32 %v3072, 7
          %v3074 = vsub.s32 %v2655, %v3073
          %v3075 = vrot.slane %v2365, %v3074
          %v3076 = vsel %vm2660, %v3075, %v3071
          %v3077 = vlaneseq
          %v3078 = vshrl.u32 %v3077, 7
          %v3079 = vsub.s32 %v2662, %v3078
          %v3080 = vrot.slane %v2368, %v3079
          %v3081 = vsel %vm2667, %v3080, %v3076
          %v3082 = vlaneseq
          %v3083 = vshrl.u32 %v3082, 7
          %v3084 = vsub.s32 %v2669, %v3083
          %v3085 = vrot.slane %v2371, %v3084
          %v3086 = vsel %vm2674, %v3085, %v3081
          %v3087 = vlaneseq
          %v3088 = vshrl.u32 %v3087, 7
          %v3089 = vsub.s32 %v2676, %v3088
          %v3090 = vrot.slane %v2374, %v3089
          %v3091 = vsel %vm2681, %v3090, %v3086
          %v3092 = vlaneseq
          %v3093 = vshrl.u32 %v3092, 7
          %v3094 = vsub.s32 %v2683, %v3093
          %v3095 = vrot.slane %v2377, %v3094
          %v3096 = vsel %vm2688, %v3095, %v3091
          %v3097 = vlaneseq
          %v3098 = vshrl.u32 %v3097, 7
          %v3099 = vsub.s32 %v2690, %v3098
          %v3100 = vrot.slane %v2380, %v3099
          %v3101 = vsel %vm2695, %v3100, %v3096
          %v3102 = vlaneseq
          %v3103 = vshrl.u32 %v3102, 7
          %v3104 = vsub.s32 %v2697, %v3103
          %v3105 = vrot.slane %v2383, %v3104
          %v3106 = vsel %vm2702, %v3105, %v3101
          %v3107 = vlaneseq
          %v3108 = vshrl.u32 %v3107, 7
          %v3109 = vsub.s32 %v2704, %v3108
          %v3110 = vrot.slane %v2386, %v3109
          %v3111 = vsel %vm2709, %v3110, %v3106
          %v3112 = vlaneseq
          %v3113 = vshrl.u32 %v3112, 7
          %v3114 = vsub.s32 %v2711, %v3113
          %v3115 = vrot.slane %v2389, %v3114
          %v3116 = vsel %vm2716, %v3115, %v3111
          %v3117 = vlaneseq
          %v3118 = vshrl.u32 %v3117, 7
          %v3119 = vsub.s32 %v2718, %v3118
          %v3120 = vrot.slane %v2392, %v3119
          %v3121 = vsel %vm2723, %v3120, %v3116
          %v3122 = vlaneseq
          %v3123 = vshrl.u32 %v3122, 7
          %v3124 = vsub.s32 %v2725, %v3123
          %v3125 = vrot.slane %v2395, %v3124
          %v3126 = vsel %vm2730, %v3125, %v3121
          %v3127 = vlaneseq
          %v3128 = vshrl.u32 %v3127, 7
          %v3129 = vsub.s32 %v2493, %v3128
          %v3130 = vrot.slane %v2398, %v3129
          %v3131 = vlaneseq
          %v3132 = vshrl.u32 %v3131, 7
          %v3133 = vsub.s32 %v2627, %v3132
          %v3134 = vrot.slane %v2401, %v3133
          %v3135 = vsel %vm2632, %v3134, %v3130
          %v3136 = vlaneseq
          %v3137 = vshrl.u32 %v3136, 7
          %v3138 = vsub.s32 %v2634, %v3137
          %v3139 = vrot.slane %v2404, %v3138
          %v3140 = vsel %vm2639, %v3139, %v3135
          %v3141 = vlaneseq
          %v3142 = vshrl.u32 %v3141, 7
          %v3143 = vsub.s32 %v2641, %v3142
          %v3144 = vrot.slane %v2407, %v3143
          %v3145 = vsel %vm2646, %v3144, %v3140
          %v3146 = vlaneseq
          %v3147 = vshrl.u32 %v3146, 7
          %v3148 = vsub.s32 %v2648, %v3147
          %v3149 = vrot.slane %v2410, %v3148
          %v3150 = vsel %vm2653, %v3149, %v3145
          %v3151 = vlaneseq
          %v3152 = vshrl.u32 %v3151, 7
          %v3153 = vsub.s32 %v2655, %v3152
          %v3154 = vrot.slane %v2413, %v3153
          %v3155 = vsel %vm2660, %v3154, %v3150
          %v3156 = vlaneseq
          %v3157 = vshrl.u32 %v3156, 7
          %v3158 = vsub.s32 %v2662, %v3157
          %v3159 = vrot.slane %v2416, %v3158
          %v3160 = vsel %vm2667, %v3159, %v3155
          %v3161 = vlaneseq
          %v3162 = vshrl.u32 %v3161, 7
          %v3163 = vsub.s32 %v2669, %v3162
          %v3164 = vrot.slane %v2419, %v3163
          %v3165 = vsel %vm2674, %v3164, %v3160
          %v3166 = vlaneseq
          %v3167 = vshrl.u32 %v3166, 7
          %v3168 = vsub.s32 %v2676, %v3167
          %v3169 = vrot.slane %v2422, %v3168
          %v3170 = vsel %vm2681, %v3169, %v3165
          %v3171 = vlaneseq
          %v3172 = vshrl.u32 %v3171, 7
          %v3173 = vsub.s32 %v2683, %v3172
          %v3174 = vrot.slane %v2425, %v3173
          %v3175 = vsel %vm2688, %v3174, %v3170
          %v3176 = vlaneseq
          %v3177 = vshrl.u32 %v3176, 7
          %v3178 = vsub.s32 %v2690, %v3177
          %v3179 = vrot.slane %v2428, %v3178
          %v3180 = vsel %vm2695, %v3179, %v3175
          %v3181 = vlaneseq
          %v3182 = vshrl.u32 %v3181, 7
          %v3183 = vsub.s32 %v2697, %v3182
          %v3184 = vrot.slane %v2431, %v3183
          %v3185 = vsel %vm2702, %v3184, %v3180
          %v3186 = vlaneseq
          %v3187 = vshrl.u32 %v3186, 7
          %v3188 = vsub.s32 %v2704, %v3187
          %v3189 = vrot.slane %v2434, %v3188
          %v3190 = vsel %vm2709, %v3189, %v3185
          %v3191 = vlaneseq
          %v3192 = vshrl.u32 %v3191, 7
          %v3193 = vsub.s32 %v2711, %v3192
          %v3194 = vrot.slane %v2437, %v3193
          %v3195 = vsel %vm2716, %v3194, %v3190
          %v3196 = vlaneseq
          %v3197 = vshrl.u32 %v3196, 7
          %v3198 = vsub.s32 %v2718, %v3197
          %v3199 = vrot.slane %v2440, %v3198
          %v3200 = vsel %vm2723, %v3199, %v3195
          %v3201 = vlaneseq
          %v3202 = vshrl.u32 %v3201, 7
          %v3203 = vsub.s32 %v2725, %v3202
          %v3204 = vrot.slane %v2443, %v3203
          %v3205 = vsel %vm2730, %v3204, %v3200
          %v3206 = vlaneseq
          %v3207 = vshrl.u32 %v3206, 7
          %v3208 = vsub.s32 %v2493, %v3207
          %v3209 = vrot.slane %v2446, %v3208
          %v3210 = vlaneseq
          %v3211 = vshrl.u32 %v3210, 7
          %v3212 = vsub.s32 %v2627, %v3211
          %v3213 = vrot.slane %v2449, %v3212
          %v3214 = vsel %vm2632, %v3213, %v3209
          %v3215 = vlaneseq
          %v3216 = vshrl.u32 %v3215, 7
          %v3217 = vsub.s32 %v2634, %v3216
          %v3218 = vrot.slane %v2452, %v3217
          %v3219 = vsel %vm2639, %v3218, %v3214
          %v3220 = vlaneseq
          %v3221 = vshrl.u32 %v3220, 7
          %v3222 = vsub.s32 %v2641, %v3221
          %v3223 = vrot.slane %v2455, %v3222
          %v3224 = vsel %vm2646, %v3223, %v3219
          %v3225 = vlaneseq
          %v3226 = vshrl.u32 %v3225, 7
          %v3227 = vsub.s32 %v2648, %v3226
          %v3228 = vrot.slane %v2458, %v3227
          %v3229 = vsel %vm2653, %v3228, %v3224
          %v3230 = vlaneseq
          %v3231 = vshrl.u32 %v3230, 7
          %v3232 = vsub.s32 %v2655, %v3231
          %v3233 = vrot.slane %v2461, %v3232
          %v3234 = vsel %vm2660, %v3233, %v3229
          %v3235 = vlaneseq
          %v3236 = vshrl.u32 %v3235, 7
          %v3237 = vsub.s32 %v2662, %v3236
          %v3238 = vrot.slane %v2464, %v3237
          %v3239 = vsel %vm2667, %v3238, %v3234
          %v3240 = vlaneseq
          %v3241 = vshrl.u32 %v3240, 7
          %v3242 = vsub.s32 %v2669, %v3241
          %v3243 = vrot.slane %v2467, %v3242
          %v3244 = vsel %vm2674, %v3243, %v3239
          %v3245 = vlaneseq
          %v3246 = vshrl.u32 %v3245, 7
          %v3247 = vsub.s32 %v2676, %v3246
          %v3248 = vrot.slane %v2470, %v3247
          %v3249 = vsel %vm2681, %v3248, %v3244
          %v3250 = vlaneseq
          %v3251 = vshrl.u32 %v3250, 7
          %v3252 = vsub.s32 %v2683, %v3251
          %v3253 = vrot.slane %v2473, %v3252
          %v3254 = vsel %vm2688, %v3253, %v3249
          %v3255 = vlaneseq
          %v3256 = vshrl.u32 %v3255, 7
          %v3257 = vsub.s32 %v2690, %v3256
          %v3258 = vrot.slane %v2476, %v3257
          %v3259 = vsel %vm2695, %v3258, %v3254
          %v3260 = vlaneseq
          %v3261 = vshrl.u32 %v3260, 7
          %v3262 = vsub.s32 %v2697, %v3261
          %v3263 = vrot.slane %v2479, %v3262
          %v3264 = vsel %vm2702, %v3263, %v3259
          %v3265 = vlaneseq
          %v3266 = vshrl.u32 %v3265, 7
          %v3267 = vsub.s32 %v2704, %v3266
          %v3268 = vrot.slane %v2482, %v3267
          %v3269 = vsel %vm2709, %v3268, %v3264
          %v3270 = vlaneseq
          %v3271 = vshrl.u32 %v3270, 7
          %v3272 = vsub.s32 %v2711, %v3271
          %v3273 = vrot.slane %v2485, %v3272
          %v3274 = vsel %vm2716, %v3273, %v3269
          %v3275 = vlaneseq
          %v3276 = vshrl.u32 %v3275, 7
          %v3277 = vsub.s32 %v2718, %v3276
          %v3278 = vrot.slane %v2488, %v3277
          %v3279 = vsel %vm2723, %v3278, %v3274
          %v3280 = vlaneseq
          %v3281 = vshrl.u32 %v3280, 7
          %v3282 = vsub.s32 %v2725, %v3281
          %v3283 = vrot.slane %v2491, %v3282
          %v3284 = vsel %vm2730, %v3283, %v3279
          %vm3285 = vcmask 1041409
          %v3286 = vsel %vm3285, %v2810, %v2731
          %vm3287 = vcmask 1042434
          %v3288 = vsel %vm3287, %v2889, %v3286
          %vm3289 = vcmask 1043459
          %v3290 = vsel %vm3289, %v2968, %v3288
          %vm3291 = vcmask 1044484
          %v3292 = vsel %vm3291, %v3047, %v3290
          %vm3293 = vcmask 1045509
          %v3294 = vsel %vm3293, %v3126, %v3292
          %vm3295 = vcmask 1046534
          %v3296 = vsel %vm3295, %v3205, %v3294
          %vm3297 = vcmask 1047559
          %v3298 = vsel %vm3297, %v3284, %v3296
          %v3300 = vsel %vm2494, %v3298, -1e+30
          %3301 = vmax.xlane.f32.xlu0 %v3300
          %v3302 = vpop.xlane.xlu0 %3301
          %v3303 = vsub.f32 %v3300, %v3302
          %v3304 = vmul.f32 %v3303, 1.442695
          %v3305 = vpow.pop %v3304
          %3306 = vadd.xlane.f32.xlu0 %v3305
          %v3307 = vpop.xlane.xlu0 %3306
          %v3308 = vrcp.pop %v3307
          %v3309 = vmul.f32 %v3305, %v3308
          %3310 = vst [vmem:[#allocation7] sm:$0xff] %v3309
          %v3311 = vlaneseq
          %v3312 = vshrl.u32 %v3311, 7
          %v3313 = vsub.s32 0, %v3312
          %v3314 = vrot.slane %v3309, %v3313
          %3316 = vbcast.lane.b32.xlu0 %v3314, 256
          %v3317 = vpop.permute.xlu0 %3316
          %s3319 = sor.u32 256, 8
          %3320 = vbcast.lane.b32.xlu0 %v3314, %s3319
          %v3321 = vpop.permute.xlu0 %3320
          %s3323 = sor.u32 256, 16
          %3324 = vbcast.lane.b32.xlu0 %v3314, %s3323
          %v3325 = vpop.permute.xlu0 %3324
          %s3327 = sor.u32 256, 24
          %3328 = vbcast.lane.b32.xlu0 %v3314, %s3327
          %v3329 = vpop.permute.xlu0 %3328
          %s3331 = sor.u32 256, 32
          %3332 = vbcast.lane.b32.xlu0 %v3314, %s3331
          %v3333 = vpop.permute.xlu0 %3332
          %s3335 = sor.u32 256, 40
          %3336 = vbcast.lane.b32.xlu0 %v3314, %s3335
          %v3337 = vpop.permute.xlu0 %3336
          %s3339 = sor.u32 256, 48
          %3340 = vbcast.lane.b32.xlu0 %v3314, %s3339
          %v3341 = vpop.permute.xlu0 %3340
          %s3343 = sor.u32 256, 56
          %3344 = vbcast.lane.b32.xlu0 %v3314, %s3343
          %v3345 = vpop.permute.xlu0 %3344
          %s3347 = sor.u32 256, 64
          %3348 = vbcast.lane.b32.xlu0 %v3314, %s3347
          %v3349 = vpop.permute.xlu0 %3348
          %s3351 = sor.u32 256, 72
          %3352 = vbcast.lane.b32.xlu0 %v3314, %s3351
          %v3353 = vpop.permute.xlu0 %3352
          %s3355 = sor.u32 256, 80
          %3356 = vbcast.lane.b32.xlu0 %v3314, %s3355
          %v3357 = vpop.permute.xlu0 %3356
          %s3359 = sor.u32 256, 88
          %3360 = vbcast.lane.b32.xlu0 %v3314, %s3359
          %v3361 = vpop.permute.xlu0 %3360
          %s3363 = sor.u32 256, 96
          %3364 = vbcast.lane.b32.xlu0 %v3314, %s3363
          %v3365 = vpop.permute.xlu0 %3364
          %s3367 = sor.u32 256, 104
          %3368 = vbcast.lane.b32.xlu0 %v3314, %s3367
          %v3369 = vpop.permute.xlu0 %3368
          %s3371 = sor.u32 256, 112
          %3372 = vbcast.lane.b32.xlu0 %v3314, %s3371
          %v3373 = vpop.permute.xlu0 %3372
          %s3375 = sor.u32 256, 120
          %3376 = vbcast.lane.b32.xlu0 %v3314, %s3375
          %v3377 = vpop.permute.xlu0 %3376
          %v3378 = vlaneseq
          %v3379 = vshrl.u32 %v3378, 7
          %v3380 = vsub.s32 1, %v3379
          %v3381 = vrot.slane %v3309, %v3380
          %3383 = vbcast.lane.b32.xlu0 %v3381, 256
          %v3384 = vpop.permute.xlu0 %3383
          %s3386 = sor.u32 256, 8
          %3387 = vbcast.lane.b32.xlu0 %v3381, %s3386
          %v3388 = vpop.permute.xlu0 %3387
          %s3390 = sor.u32 256, 16
          %3391 = vbcast.lane.b32.xlu0 %v3381, %s3390
          %v3392 = vpop.permute.xlu0 %3391
          %s3394 = sor.u32 256, 24
          %3395 = vbcast.lane.b32.xlu0 %v3381, %s3394
          %v3396 = vpop.permute.xlu0 %3395
          %s3398 = sor.u32 256, 32
          %3399 = vbcast.lane.b32.xlu0 %v3381, %s3398
          %v3400 = vpop.permute.xlu0 %3399
          %s3402 = sor.u32 256, 40
          %3403 = vbcast.lane.b32.xlu0 %v3381, %s3402
          %v3404 = vpop.permute.xlu0 %3403
          %s3406 = sor.u32 256, 48
          %3407 = vbcast.lane.b32.xlu0 %v3381, %s3406
          %v3408 = vpop.permute.xlu0 %3407
          %s3410 = sor.u32 256, 56
          %3411 = vbcast.lane.b32.xlu0 %v3381, %s3410
          %v3412 = vpop.permute.xlu0 %3411
          %s3414 = sor.u32 256, 64
          %3415 = vbcast.lane.b32.xlu0 %v3381, %s3414
          %v3416 = vpop.permute.xlu0 %3415
          %s3418 = sor.u32 256, 72
          %3419 = vbcast.lane.b32.xlu0 %v3381, %s3418
          %v3420 = vpop.permute.xlu0 %3419
          %s3422 = sor.u32 256, 80
          %3423 = vbcast.lane.b32.xlu0 %v3381, %s3422
          %v3424 = vpop.permute.xlu0 %3423
          %s3426 = sor.u32 256, 88
          %3427 = vbcast.lane.b32.xlu0 %v3381, %s3426
          %v3428 = vpop.permute.xlu0 %3427
          %s3430 = sor.u32 256, 96
          %3431 = vbcast.lane.b32.xlu0 %v3381, %s3430
          %v3432 = vpop.permute.xlu0 %3431
          %s3434 = sor.u32 256, 104
          %3435 = vbcast.lane.b32.xlu0 %v3381, %s3434
          %v3436 = vpop.permute.xlu0 %3435
          %s3438 = sor.u32 256, 112
          %3439 = vbcast.lane.b32.xlu0 %v3381, %s3438
          %v3440 = vpop.permute.xlu0 %3439
          %s3442 = sor.u32 256, 120
          %3443 = vbcast.lane.b32.xlu0 %v3381, %s3442
          %v3444 = vpop.permute.xlu0 %3443
          %v3445 = vlaneseq
          %v3446 = vshrl.u32 %v3445, 7
          %v3447 = vsub.s32 2, %v3446
          %v3448 = vrot.slane %v3309, %v3447
          %3450 = vbcast.lane.b32.xlu0 %v3448, 256
          %v3451 = vpop.permute.xlu0 %3450
          %s3453 = sor.u32 256, 8
          %3454 = vbcast.lane.b32.xlu0 %v3448, %s3453
          %v3455 = vpop.permute.xlu0 %3454
          %s3457 = sor.u32 256, 16
          %3458 = vbcast.lane.b32.xlu0 %v3448, %s3457
          %v3459 = vpop.permute.xlu0 %3458
          %s3461 = sor.u32 256, 24
          %3462 = vbcast.lane.b32.xlu0 %v3448, %s3461
          %v3463 = vpop.permute.xlu0 %3462
          %s3465 = sor.u32 256, 32
          %3466 = vbcast.lane.b32.xlu0 %v3448, %s3465
          %v3467 = vpop.permute.xlu0 %3466
          %s3469 = sor.u32 256, 40
          %3470 = vbcast.lane.b32.xlu0 %v3448, %s3469
          %v3471 = vpop.permute.xlu0 %3470
          %s3473 = sor.u32 256, 48
          %3474 = vbcast.lane.b32.xlu0 %v3448, %s3473
          %v3475 = vpop.permute.xlu0 %3474
          %s3477 = sor.u32 256, 56
          %3478 = vbcast.lane.b32.xlu0 %v3448, %s3477
          %v3479 = vpop.permute.xlu0 %3478
          %s3481 = sor.u32 256, 64
          %3482 = vbcast.lane.b32.xlu0 %v3448, %s3481
          %v3483 = vpop.permute.xlu0 %3482
          %s3485 = sor.u32 256, 72
          %3486 = vbcast.lane.b32.xlu0 %v3448, %s3485
          %v3487 = vpop.permute.xlu0 %3486
          %s3489 = sor.u32 256, 80
          %3490 = vbcast.lane.b32.xlu0 %v3448, %s3489
          %v3491 = vpop.permute.xlu0 %3490
          %s3493 = sor.u32 256, 88
          %3494 = vbcast.lane.b32.xlu0 %v3448, %s3493
          %v3495 = vpop.permute.xlu0 %3494
          %s3497 = sor.u32 256, 96
          %3498 = vbcast.lane.b32.xlu0 %v3448, %s3497
          %v3499 = vpop.permute.xlu0 %3498
          %s3501 = sor.u32 256, 104
          %3502 = vbcast.lane.b32.xlu0 %v3448, %s3501
          %v3503 = vpop.permute.xlu0 %3502
          %s3505 = sor.u32 256, 112
          %3506 = vbcast.lane.b32.xlu0 %v3448, %s3505
          %v3507 = vpop.permute.xlu0 %3506
          %s3509 = sor.u32 256, 120
          %3510 = vbcast.lane.b32.xlu0 %v3448, %s3509
          %v3511 = vpop.permute.xlu0 %3510
          %v3512 = vlaneseq
          %v3513 = vshrl.u32 %v3512, 7
          %v3514 = vsub.s32 3, %v3513
          %v3515 = vrot.slane %v3309, %v3514
          %3517 = vbcast.lane.b32.xlu0 %v3515, 256
          %v3518 = vpop.permute.xlu0 %3517
          %s3520 = sor.u32 256, 8
          %3521 = vbcast.lane.b32.xlu0 %v3515, %s3520
          %v3522 = vpop.permute.xlu0 %3521
          %s3524 = sor.u32 256, 16
          %3525 = vbcast.lane.b32.xlu0 %v3515, %s3524
          %v3526 = vpop.permute.xlu0 %3525
          %s3528 = sor.u32 256, 24
          %3529 = vbcast.lane.b32.xlu0 %v3515, %s3528
          %v3530 = vpop.permute.xlu0 %3529
          %s3532 = sor.u32 256, 32
          %3533 = vbcast.lane.b32.xlu0 %v3515, %s3532
          %v3534 = vpop.permute.xlu0 %3533
          %s3536 = sor.u32 256, 40
          %3537 = vbcast.lane.b32.xlu0 %v3515, %s3536
          %v3538 = vpop.permute.xlu0 %3537
          %s3540 = sor.u32 256, 48
          %3541 = vbcast.lane.b32.xlu0 %v3515, %s3540
          %v3542 = vpop.permute.xlu0 %3541
          %s3544 = sor.u32 256, 56
          %3545 = vbcast.lane.b32.xlu0 %v3515, %s3544
          %v3546 = vpop.permute.xlu0 %3545
          %s3548 = sor.u32 256, 64
          %3549 = vbcast.lane.b32.xlu0 %v3515, %s3548
          %v3550 = vpop.permute.xlu0 %3549
          %s3552 = sor.u32 256, 72
          %3553 = vbcast.lane.b32.xlu0 %v3515, %s3552
          %v3554 = vpop.permute.xlu0 %3553
          %s3556 = sor.u32 256, 80
          %3557 = vbcast.lane.b32.xlu0 %v3515, %s3556
          %v3558 = vpop.permute.xlu0 %3557
          %s3560 = sor.u32 256, 88
          %3561 = vbcast.lane.b32.xlu0 %v3515, %s3560
          %v3562 = vpop.permute.xlu0 %3561
          %s3564 = sor.u32 256, 96
          %3565 = vbcast.lane.b32.xlu0 %v3515, %s3564
          %v3566 = vpop.permute.xlu0 %3565
          %s3568 = sor.u32 256, 104
          %3569 = vbcast.lane.b32.xlu0 %v3515, %s3568
          %v3570 = vpop.permute.xlu0 %3569
          %s3572 = sor.u32 256, 112
          %3573 = vbcast.lane.b32.xlu0 %v3515, %s3572
          %v3574 = vpop.permute.xlu0 %3573
          %s3576 = sor.u32 256, 120
          %3577 = vbcast.lane.b32.xlu0 %v3515, %s3576
          %v3578 = vpop.permute.xlu0 %3577
          %v3579 = vlaneseq
          %v3580 = vshrl.u32 %v3579, 7
          %v3581 = vsub.s32 4, %v3580
          %v3582 = vrot.slane %v3309, %v3581
          %3584 = vbcast.lane.b32.xlu0 %v3582, 256
          %v3585 = vpop.permute.xlu0 %3584
          %s3587 = sor.u32 256, 8
          %3588 = vbcast.lane.b32.xlu0 %v3582, %s3587
          %v3589 = vpop.permute.xlu0 %3588
          %s3591 = sor.u32 256, 16
          %3592 = vbcast.lane.b32.xlu0 %v3582, %s3591
          %v3593 = vpop.permute.xlu0 %3592
          %s3595 = sor.u32 256, 24
          %3596 = vbcast.lane.b32.xlu0 %v3582, %s3595
          %v3597 = vpop.permute.xlu0 %3596
          %s3599 = sor.u32 256, 32
          %3600 = vbcast.lane.b32.xlu0 %v3582, %s3599
          %v3601 = vpop.permute.xlu0 %3600
          %s3603 = sor.u32 256, 40
          %3604 = vbcast.lane.b32.xlu0 %v3582, %s3603
          %v3605 = vpop.permute.xlu0 %3604
          %s3607 = sor.u32 256, 48
          %3608 = vbcast.lane.b32.xlu0 %v3582, %s3607
          %v3609 = vpop.permute.xlu0 %3608
          %s3611 = sor.u32 256, 56
          %3612 = vbcast.lane.b32.xlu0 %v3582, %s3611
          %v3613 = vpop.permute.xlu0 %3612
          %s3615 = sor.u32 256, 64
          %3616 = vbcast.lane.b32.xlu0 %v3582, %s3615
          %v3617 = vpop.permute.xlu0 %3616
          %s3619 = sor.u32 256, 72
          %3620 = vbcast.lane.b32.xlu0 %v3582, %s3619
          %v3621 = vpop.permute.xlu0 %3620
          %s3623 = sor.u32 256, 80
          %3624 = vbcast.lane.b32.xlu0 %v3582, %s3623
          %v3625 = vpop.permute.xlu0 %3624
          %s3627 = sor.u32 256, 88
          %3628 = vbcast.lane.b32.xlu0 %v3582, %s3627
          %v3629 = vpop.permute.xlu0 %3628
          %s3631 = sor.u32 256, 96
          %3632 = vbcast.lane.b32.xlu0 %v3582, %s3631
          %v3633 = vpop.permute.xlu0 %3632
          %s3635 = sor.u32 256, 104
          %3636 = vbcast.lane.b32.xlu0 %v3582, %s3635
          %v3637 = vpop.permute.xlu0 %3636
          %s3639 = sor.u32 256, 112
          %3640 = vbcast.lane.b32.xlu0 %v3582, %s3639
          %v3641 = vpop.permute.xlu0 %3640
          %s3643 = sor.u32 256, 120
          %3644 = vbcast.lane.b32.xlu0 %v3582, %s3643
          %v3645 = vpop.permute.xlu0 %3644
          %v3646 = vlaneseq
          %v3647 = vshrl.u32 %v3646, 7
          %v3648 = vsub.s32 5, %v3647
          %v3649 = vrot.slane %v3309, %v3648
          %3651 = vbcast.lane.b32.xlu0 %v3649, 256
          %v3652 = vpop.permute.xlu0 %3651
          %s3654 = sor.u32 256, 8
          %3655 = vbcast.lane.b32.xlu0 %v3649, %s3654
          %v3656 = vpop.permute.xlu0 %3655
          %s3658 = sor.u32 256, 16
          %3659 = vbcast.lane.b32.xlu0 %v3649, %s3658
          %v3660 = vpop.permute.xlu0 %3659
          %s3662 = sor.u32 256, 24
          %3663 = vbcast.lane.b32.xlu0 %v3649, %s3662
          %v3664 = vpop.permute.xlu0 %3663
          %s3666 = sor.u32 256, 32
          %3667 = vbcast.lane.b32.xlu0 %v3649, %s3666
          %v3668 = vpop.permute.xlu0 %3667
          %s3670 = sor.u32 256, 40
          %3671 = vbcast.lane.b32.xlu0 %v3649, %s3670
          %v3672 = vpop.permute.xlu0 %3671
          %s3674 = sor.u32 256, 48
          %3675 = vbcast.lane.b32.xlu0 %v3649, %s3674
          %v3676 = vpop.permute.xlu0 %3675
          %s3678 = sor.u32 256, 56
          %3679 = vbcast.lane.b32.xlu0 %v3649, %s3678
          %v3680 = vpop.permute.xlu0 %3679
          %s3682 = sor.u32 256, 64
          %3683 = vbcast.lane.b32.xlu0 %v3649, %s3682
          %v3684 = vpop.permute.xlu0 %3683
          %s3686 = sor.u32 256, 72
          %3687 = vbcast.lane.b32.xlu0 %v3649, %s3686
          %v3688 = vpop.permute.xlu0 %3687
          %s3690 = sor.u32 256, 80
          %3691 = vbcast.lane.b32.xlu0 %v3649, %s3690
          %v3692 = vpop.permute.xlu0 %3691
          %s3694 = sor.u32 256, 88
          %3695 = vbcast.lane.b32.xlu0 %v3649, %s3694
          %v3696 = vpop.permute.xlu0 %3695
          %s3698 = sor.u32 256, 96
          %3699 = vbcast.lane.b32.xlu0 %v3649, %s3698
          %v3700 = vpop.permute.xlu0 %3699
          %s3702 = sor.u32 256, 104
          %3703 = vbcast.lane.b32.xlu0 %v3649, %s3702
          %v3704 = vpop.permute.xlu0 %3703
          %s3706 = sor.u32 256, 112
          %3707 = vbcast.lane.b32.xlu0 %v3649, %s3706
          %v3708 = vpop.permute.xlu0 %3707
          %s3710 = sor.u32 256, 120
          %3711 = vbcast.lane.b32.xlu0 %v3649, %s3710
          %v3712 = vpop.permute.xlu0 %3711
          %v3713 = vlaneseq
          %v3714 = vshrl.u32 %v3713, 7
          %v3715 = vsub.s32 6, %v3714
          %v3716 = vrot.slane %v3309, %v3715
          %3718 = vbcast.lane.b32.xlu0 %v3716, 256
          %v3719 = vpop.permute.xlu0 %3718
          %s3721 = sor.u32 256, 8
          %3722 = vbcast.lane.b32.xlu0 %v3716, %s3721
          %v3723 = vpop.permute.xlu0 %3722
          %s3725 = sor.u32 256, 16
          %3726 = vbcast.lane.b32.xlu0 %v3716, %s3725
          %v3727 = vpop.permute.xlu0 %3726
          %s3729 = sor.u32 256, 24
          %3730 = vbcast.lane.b32.xlu0 %v3716, %s3729
          %v3731 = vpop.permute.xlu0 %3730
          %s3733 = sor.u32 256, 32
          %3734 = vbcast.lane.b32.xlu0 %v3716, %s3733
          %v3735 = vpop.permute.xlu0 %3734
          %s3737 = sor.u32 256, 40
          %3738 = vbcast.lane.b32.xlu0 %v3716, %s3737
          %v3739 = vpop.permute.xlu0 %3738
          %s3741 = sor.u32 256, 48
          %3742 = vbcast.lane.b32.xlu0 %v3716, %s3741
          %v3743 = vpop.permute.xlu0 %3742
          %s3745 = sor.u32 256, 56
          %3746 = vbcast.lane.b32.xlu0 %v3716, %s3745
          %v3747 = vpop.permute.xlu0 %3746
          %s3749 = sor.u32 256, 64
          %3750 = vbcast.lane.b32.xlu0 %v3716, %s3749
          %v3751 = vpop.permute.xlu0 %3750
          %s3753 = sor.u32 256, 72
          %3754 = vbcast.lane.b32.xlu0 %v3716, %s3753
          %v3755 = vpop.permute.xlu0 %3754
          %s3757 = sor.u32 256, 80
          %3758 = vbcast.lane.b32.xlu0 %v3716, %s3757
          %v3759 = vpop.permute.xlu0 %3758
          %s3761 = sor.u32 256, 88
          %3762 = vbcast.lane.b32.xlu0 %v3716, %s3761
          %v3763 = vpop.permute.xlu0 %3762
          %s3765 = sor.u32 256, 96
          %3766 = vbcast.lane.b32.xlu0 %v3716, %s3765
          %v3767 = vpop.permute.xlu0 %3766
          %s3769 = sor.u32 256, 104
          %3770 = vbcast.lane.b32.xlu0 %v3716, %s3769
          %v3771 = vpop.permute.xlu0 %3770
          %s3773 = sor.u32 256, 112
          %3774 = vbcast.lane.b32.xlu0 %v3716, %s3773
          %v3775 = vpop.permute.xlu0 %3774
          %s3777 = sor.u32 256, 120
          %3778 = vbcast.lane.b32.xlu0 %v3716, %s3777
          %v3779 = vpop.permute.xlu0 %3778
          %v3780 = vlaneseq
          %v3781 = vshrl.u32 %v3780, 7
          %v3782 = vsub.s32 7, %v3781
          %v3783 = vrot.slane %v3309, %v3782
          %3785 = vbcast.lane.b32.xlu0 %v3783, 256
          %v3786 = vpop.permute.xlu0 %3785
          %s3788 = sor.u32 256, 8
          %3789 = vbcast.lane.b32.xlu0 %v3783, %s3788
          %v3790 = vpop.permute.xlu0 %3789
          %s3792 = sor.u32 256, 16
          %3793 = vbcast.lane.b32.xlu0 %v3783, %s3792
          %v3794 = vpop.permute.xlu0 %3793
          %s3796 = sor.u32 256, 24
          %3797 = vbcast.lane.b32.xlu0 %v3783, %s3796
          %v3798 = vpop.permute.xlu0 %3797
          %s3800 = sor.u32 256, 32
          %3801 = vbcast.lane.b32.xlu0 %v3783, %s3800
          %v3802 = vpop.permute.xlu0 %3801
          %s3804 = sor.u32 256, 40
          %3805 = vbcast.lane.b32.xlu0 %v3783, %s3804
          %v3806 = vpop.permute.xlu0 %3805
          %s3808 = sor.u32 256, 48
          %3809 = vbcast.lane.b32.xlu0 %v3783, %s3808
          %v3810 = vpop.permute.xlu0 %3809
          %s3812 = sor.u32 256, 56
          %3813 = vbcast.lane.b32.xlu0 %v3783, %s3812
          %v3814 = vpop.permute.xlu0 %3813
          %s3816 = sor.u32 256, 64
          %3817 = vbcast.lane.b32.xlu0 %v3783, %s3816
          %v3818 = vpop.permute.xlu0 %3817
          %s3820 = sor.u32 256, 72
          %3821 = vbcast.lane.b32.xlu0 %v3783, %s3820
          %v3822 = vpop.permute.xlu0 %3821
          %s3824 = sor.u32 256, 80
          %3825 = vbcast.lane.b32.xlu0 %v3783, %s3824
          %v3826 = vpop.permute.xlu0 %3825
          %s3828 = sor.u32 256, 88
          %3829 = vbcast.lane.b32.xlu0 %v3783, %s3828
          %v3830 = vpop.permute.xlu0 %3829
          %s3832 = sor.u32 256, 96
          %3833 = vbcast.lane.b32.xlu0 %v3783, %s3832
          %v3834 = vpop.permute.xlu0 %3833
          %s3836 = sor.u32 256, 104
          %3837 = vbcast.lane.b32.xlu0 %v3783, %s3836
          %v3838 = vpop.permute.xlu0 %3837
          %s3840 = sor.u32 256, 112
          %3841 = vbcast.lane.b32.xlu0 %v3783, %s3840
          %v3842 = vpop.permute.xlu0 %3841
          %s3844 = sor.u32 256, 120
          %3845 = vbcast.lane.b32.xlu0 %v3783, %s3844
          %v3846 = vpop.permute.xlu0 %3845
          %v3847 = vmul.f32 %v3317, %v788
          %v3848 = vmul.f32 %v3321, %v789
          %v3849 = vmul.f32 %v3325, %v790
          %v3850 = vmul.f32 %v3329, %v791
          %v3851 = vmul.f32 %v3333, %v792
          %v3852 = vmul.f32 %v3337, %v793
          %v3853 = vmul.f32 %v3341, %v794
          %v3854 = vmul.f32 %v3345, %v795
          %v3855 = vmul.f32 %v3349, %v796
          %v3856 = vmul.f32 %v3353, %v797
          %v3857 = vmul.f32 %v3357, %v798
          %v3858 = vmul.f32 %v3361, %v799
          %v3859 = vmul.f32 %v3365, %v800
          %v3860 = vmul.f32 %v3369, %v801
          %v3861 = vmul.f32 %v3373, %v802
          %v3862 = vmul.f32 %v3377, %v803
          %v3863 = vmul.f32 %v3384, %v804
          %v3864 = vmul.f32 %v3388, %v805
          %v3865 = vmul.f32 %v3392, %v806
          %v3866 = vmul.f32 %v3396, %v807
          %v3867 = vmul.f32 %v3400, %v808
          %v3868 = vmul.f32 %v3404, %v809
          %v3869 = vmul.f32 %v3408, %v810
          %v3870 = vmul.f32 %v3412, %v811
          %v3871 = vmul.f32 %v3416, %v812
          %v3872 = vmul.f32 %v3420, %v813
          %v3873 = vmul.f32 %v3424, %v814
          %v3874 = vmul.f32 %v3428, %v815
          %v3875 = vmul.f32 %v3432, %v816
          %v3876 = vmul.f32 %v3436, %v817
          %v3877 = vmul.f32 %v3440, %v818
          %v3878 = vmul.f32 %v3444, %v819
          %v3879 = vmul.f32 %v3451, %v820
          %v3880 = vmul.f32 %v3455, %v821
          %v3881 = vmul.f32 %v3459, %v822
          %v3882 = vmul.f32 %v3463, %v823
          %v3883 = vmul.f32 %v3467, %v824
          %v3884 = vmul.f32 %v3471, %v825
          %v3885 = vmul.f32 %v3475, %v826
          %v3886 = vmul.f32 %v3479, %v827
          %v3887 = vmul.f32 %v3483, %v828
          %v3888 = vmul.f32 %v3487, %v829
          %v3889 = vmul.f32 %v3491, %v830
          %v3890 = vmul.f32 %v3495, %v831
          %v3891 = vmul.f32 %v3499, %v832
          %v3892 = vmul.f32 %v3503, %v833
          %v3893 = vmul.f32 %v3507, %v834
          %v3894 = vmul.f32 %v3511, %v835
          %v3895 = vmul.f32 %v3518, %v836
          %v3896 = vmul.f32 %v3522, %v837
          %v3897 = vmul.f32 %v3526, %v838
          %v3898 = vmul.f32 %v3530, %v839
          %v3899 = vmul.f32 %v3534, %v840
          %v3900 = vmul.f32 %v3538, %v841
          %v3901 = vmul.f32 %v3542, %v842
          %v3902 = vmul.f32 %v3546, %v843
          %v3903 = vmul.f32 %v3550, %v844
          %v3904 = vmul.f32 %v3554, %v845
          %v3905 = vmul.f32 %v3558, %v846
          %v3906 = vmul.f32 %v3562, %v847
          %v3907 = vmul.f32 %v3566, %v848
          %v3908 = vmul.f32 %v3570, %v849
          %v3909 = vmul.f32 %v3574, %v850
          %v3910 = vmul.f32 %v3578, %v851
          %v3911 = vmul.f32 %v3585, %v852
          %v3912 = vmul.f32 %v3589, %v853
          %v3913 = vmul.f32 %v3593, %v854
          %v3914 = vmul.f32 %v3597, %v855
          %v3915 = vmul.f32 %v3601, %v856
          %v3916 = vmul.f32 %v3605, %v857
          %v3917 = vmul.f32 %v3609, %v858
          %v3918 = vmul.f32 %v3613, %v859
          %v3919 = vmul.f32 %v3617, %v860
          %v3920 = vmul.f32 %v3621, %v861
          %v3921 = vmul.f32 %v3625, %v862
          %v3922 = vmul.f32 %v3629, %v863
          %v3923 = vmul.f32 %v3633, %v864
          %v3924 = vmul.f32 %v3637, %v865
          %v3925 = vmul.f32 %v3641, %v866
          %v3926 = vmul.f32 %v3645, %v867
          %v3927 = vmul.f32 %v3652, %v868
          %v3928 = vmul.f32 %v3656, %v869
          %v3929 = vmul.f32 %v3660, %v870
          %v3930 = vmul.f32 %v3664, %v871
          %v3931 = vmul.f32 %v3668, %v872
          %v3932 = vmul.f32 %v3672, %v873
          %v3933 = vmul.f32 %v3676, %v874
          %v3934 = vmul.f32 %v3680, %v875
          %v3935 = vmul.f32 %v3684, %v876
          %v3936 = vmul.f32 %v3688, %v877
          %v3937 = vmul.f32 %v3692, %v878
          %v3938 = vmul.f32 %v3696, %v879
          %v3939 = vmul.f32 %v3700, %v880
          %v3940 = vmul.f32 %v3704, %v881
          %v3941 = vmul.f32 %v3708, %v882
          %v3942 = vmul.f32 %v3712, %v883
          %v3943 = vmul.f32 %v3719, %v884
          %v3944 = vmul.f32 %v3723, %v885
          %v3945 = vmul.f32 %v3727, %v886
          %v3946 = vmul.f32 %v3731, %v887
          %v3947 = vmul.f32 %v3735, %v888
          %v3948 = vmul.f32 %v3739, %v889
          %v3949 = vmul.f32 %v3743, %v890
          %v3950 = vmul.f32 %v3747, %v891
          %v3951 = vmul.f32 %v3751, %v892
          %v3952 = vmul.f32 %v3755, %v893
          %v3953 = vmul.f32 %v3759, %v894
          %v3954 = vmul.f32 %v3763, %v895
          %v3955 = vmul.f32 %v3767, %v896
          %v3956 = vmul.f32 %v3771, %v897
          %v3957 = vmul.f32 %v3775, %v898
          %v3958 = vmul.f32 %v3779, %v899
          %v3959 = vmul.f32 %v3786, %v900
          %v3960 = vmul.f32 %v3790, %v901
          %v3961 = vmul.f32 %v3794, %v902
          %v3962 = vmul.f32 %v3798, %v903
          %v3963 = vmul.f32 %v3802, %v904
          %v3964 = vmul.f32 %v3806, %v905
          %v3965 = vmul.f32 %v3810, %v906
          %v3966 = vmul.f32 %v3814, %v907
          %v3967 = vmul.f32 %v3818, %v908
          %v3968 = vmul.f32 %v3822, %v909
          %v3969 = vmul.f32 %v3826, %v910
          %v3970 = vmul.f32 %v3830, %v911
          %v3971 = vmul.f32 %v3834, %v912
          %v3972 = vmul.f32 %v3838, %v913
          %v3973 = vmul.f32 %v3842, %v914
          %v3974 = vmul.f32 %v3846, %v915
          %v3975 = vsel %vm599, %v3847, 0.0
          %v3976 = vsel %vm599, %v3848, 0.0
          %v3977 = vadd.f32 %v3975, %v3976
          %v3978 = vsel %vm599, %v3849, 0.0
          %v3979 = vadd.f32 %v3977, %v3978
          %v3980 = vsel %vm599, %v3850, 0.0
          %v3981 = vadd.f32 %v3979, %v3980
          %v3982 = vsel %vm599, %v3851, 0.0
          %v3983 = vadd.f32 %v3981, %v3982
          %v3984 = vsel %vm599, %v3852, 0.0
          %v3985 = vadd.f32 %v3983, %v3984
          %v3986 = vsel %vm599, %v3853, 0.0
          %v3987 = vadd.f32 %v3985, %v3986
          %v3988 = vsel %vm599, %v3854, 0.0
          %v3989 = vadd.f32 %v3987, %v3988
          %v3990 = vsel %vm599, %v3855, 0.0
          %v3991 = vadd.f32 %v3989, %v3990
          %v3992 = vsel %vm599, %v3856, 0.0
          %v3993 = vadd.f32 %v3991, %v3992
          %v3994 = vsel %vm599, %v3857, 0.0
          %v3995 = vadd.f32 %v3993, %v3994
          %v3996 = vsel %vm599, %v3858, 0.0
          %v3997 = vadd.f32 %v3995, %v3996
          %v3998 = vsel %vm599, %v3859, 0.0
          %v3999 = vadd.f32 %v3997, %v3998
          %v4000 = vsel %vm599, %v3860, 0.0
          %v4001 = vadd.f32 %v3999, %v4000
          %v4002 = vsel %vm599, %v3861, 0.0
          %v4003 = vadd.f32 %v4001, %v4002
          %v4004 = vsel %vm599, %v3862, 0.0
          %v4005 = vadd.f32 %v4003, %v4004
          %v4006 = vrot.slane %v4005, 4
          %v4007 = vadd.f32 %v4005, %v4006
          %v4008 = vrot.slane %v4007, 2
          %v4009 = vadd.f32 %v4007, %v4008
          %v4010 = vrot.slane %v4009, 1
          %v4011 = vadd.f32 %v4009, %v4010
          %v4012 = vsel %vm599, %v3863, 0.0
          %v4013 = vsel %vm599, %v3864, 0.0
          %v4014 = vadd.f32 %v4012, %v4013
          %v4015 = vsel %vm599, %v3865, 0.0
          %v4016 = vadd.f32 %v4014, %v4015
          %v4017 = vsel %vm599, %v3866, 0.0
          %v4018 = vadd.f32 %v4016, %v4017
          %v4019 = vsel %vm599, %v3867, 0.0
          %v4020 = vadd.f32 %v4018, %v4019
          %v4021 = vsel %vm599, %v3868, 0.0
          %v4022 = vadd.f32 %v4020, %v4021
          %v4023 = vsel %vm599, %v3869, 0.0
          %v4024 = vadd.f32 %v4022, %v4023
          %v4025 = vsel %vm599, %v3870, 0.0
          %v4026 = vadd.f32 %v4024, %v4025
          %v4027 = vsel %vm599, %v3871, 0.0
          %v4028 = vadd.f32 %v4026, %v4027
          %v4029 = vsel %vm599, %v3872, 0.0
          %v4030 = vadd.f32 %v4028, %v4029
          %v4031 = vsel %vm599, %v3873, 0.0
          %v4032 = vadd.f32 %v4030, %v4031
          %v4033 = vsel %vm599, %v3874, 0.0
          %v4034 = vadd.f32 %v4032, %v4033
          %v4035 = vsel %vm599, %v3875, 0.0
          %v4036 = vadd.f32 %v4034, %v4035
          %v4037 = vsel %vm599, %v3876, 0.0
          %v4038 = vadd.f32 %v4036, %v4037
          %v4039 = vsel %vm599, %v3877, 0.0
          %v4040 = vadd.f32 %v4038, %v4039
          %v4041 = vsel %vm599, %v3878, 0.0
          %v4042 = vadd.f32 %v4040, %v4041
          %v4043 = vrot.slane %v4042, 4
          %v4044 = vadd.f32 %v4042, %v4043
          %v4045 = vrot.slane %v4044, 2
          %v4046 = vadd.f32 %v4044, %v4045
          %v4047 = vrot.slane %v4046, 1
          %v4048 = vadd.f32 %v4046, %v4047
          %v4049 = vsel %vm599, %v3879, 0.0
          %v4050 = vsel %vm599, %v3880, 0.0
          %v4051 = vadd.f32 %v4049, %v4050
          %v4052 = vsel %vm599, %v3881, 0.0
          %v4053 = vadd.f32 %v4051, %v4052
          %v4054 = vsel %vm599, %v3882, 0.0
          %v4055 = vadd.f32 %v4053, %v4054
          %v4056 = vsel %vm599, %v3883, 0.0
          %v4057 = vadd.f32 %v4055, %v4056
          %v4058 = vsel %vm599, %v3884, 0.0
          %v4059 = vadd.f32 %v4057, %v4058
          %v4060 = vsel %vm599, %v3885, 0.0
          %v4061 = vadd.f32 %v4059, %v4060
          %v4062 = vsel %vm599, %v3886, 0.0
          %v4063 = vadd.f32 %v4061, %v4062
          %v4064 = vsel %vm599, %v3887, 0.0
          %v4065 = vadd.f32 %v4063, %v4064
          %v4066 = vsel %vm599, %v3888, 0.0
          %v4067 = vadd.f32 %v4065, %v4066
          %v4068 = vsel %vm599, %v3889, 0.0
          %v4069 = vadd.f32 %v4067, %v4068
          %v4070 = vsel %vm599, %v3890, 0.0
          %v4071 = vadd.f32 %v4069, %v4070
          %v4072 = vsel %vm599, %v3891, 0.0
          %v4073 = vadd.f32 %v4071, %v4072
          %v4074 = vsel %vm599, %v3892, 0.0
          %v4075 = vadd.f32 %v4073, %v4074
          %v4076 = vsel %vm599, %v3893, 0.0
          %v4077 = vadd.f32 %v4075, %v4076
          %v4078 = vsel %vm599, %v3894, 0.0
          %v4079 = vadd.f32 %v4077, %v4078
          %v4080 = vrot.slane %v4079, 4
          %v4081 = vadd.f32 %v4079, %v4080
          %v4082 = vrot.slane %v4081, 2
          %v4083 = vadd.f32 %v4081, %v4082
          %v4084 = vrot.slane %v4083, 1
          %v4085 = vadd.f32 %v4083, %v4084
          %v4086 = vsel %vm599, %v3895, 0.0
          %v4087 = vsel %vm599, %v3896, 0.0
          %v4088 = vadd.f32 %v4086, %v4087
          %v4089 = vsel %vm599, %v3897, 0.0
          %v4090 = vadd.f32 %v4088, %v4089
          %v4091 = vsel %vm599, %v3898, 0.0
          %v4092 = vadd.f32 %v4090, %v4091
          %v4093 = vsel %vm599, %v3899, 0.0
          %v4094 = vadd.f32 %v4092, %v4093
          %v4095 = vsel %vm599, %v3900, 0.0
          %v4096 = vadd.f32 %v4094, %v4095
          %v4097 = vsel %vm599, %v3901, 0.0
          %v4098 = vadd.f32 %v4096, %v4097
          %v4099 = vsel %vm599, %v3902, 0.0
          %v4100 = vadd.f32 %v4098, %v4099
          %v4101 = vsel %vm599, %v3903, 0.0
          %v4102 = vadd.f32 %v4100, %v4101
          %v4103 = vsel %vm599, %v3904, 0.0
          %v4104 = vadd.f32 %v4102, %v4103
          %v4105 = vsel %vm599, %v3905, 0.0
          %v4106 = vadd.f32 %v4104, %v4105
          %v4107 = vsel %vm599, %v3906, 0.0
          %v4108 = vadd.f32 %v4106, %v4107
          %v4109 = vsel %vm599, %v3907, 0.0
          %v4110 = vadd.f32 %v4108, %v4109
          %v4111 = vsel %vm599, %v3908, 0.0
          %v4112 = vadd.f32 %v4110, %v4111
          %v4113 = vsel %vm599, %v3909, 0.0
          %v4114 = vadd.f32 %v4112, %v4113
          %v4115 = vsel %vm599, %v3910, 0.0
          %v4116 = vadd.f32 %v4114, %v4115
          %v4117 = vrot.slane %v4116, 4
          %v4118 = vadd.f32 %v4116, %v4117
          %v4119 = vrot.slane %v4118, 2
          %v4120 = vadd.f32 %v4118, %v4119
          %v4121 = vrot.slane %v4120, 1
          %v4122 = vadd.f32 %v4120, %v4121
          %v4123 = vsel %vm599, %v3911, 0.0
          %v4124 = vsel %vm599, %v3912, 0.0
          %v4125 = vadd.f32 %v4123, %v4124
          %v4126 = vsel %vm599, %v3913, 0.0
          %v4127 = vadd.f32 %v4125, %v4126
          %v4128 = vsel %vm599, %v3914, 0.0
          %v4129 = vadd.f32 %v4127, %v4128
          %v4130 = vsel %vm599, %v3915, 0.0
          %v4131 = vadd.f32 %v4129, %v4130
          %v4132 = vsel %vm599, %v3916, 0.0
          %v4133 = vadd.f32 %v4131, %v4132
          %v4134 = vsel %vm599, %v3917, 0.0
          %v4135 = vadd.f32 %v4133, %v4134
          %v4136 = vsel %vm599, %v3918, 0.0
          %v4137 = vadd.f32 %v4135, %v4136
          %v4138 = vsel %vm599, %v3919, 0.0
          %v4139 = vadd.f32 %v4137, %v4138
          %v4140 = vsel %vm599, %v3920, 0.0
          %v4141 = vadd.f32 %v4139, %v4140
          %v4142 = vsel %vm599, %v3921, 0.0
          %v4143 = vadd.f32 %v4141, %v4142
          %v4144 = vsel %vm599, %v3922, 0.0
          %v4145 = vadd.f32 %v4143, %v4144
          %v4146 = vsel %vm599, %v3923, 0.0
          %v4147 = vadd.f32 %v4145, %v4146
          %v4148 = vsel %vm599, %v3924, 0.0
          %v4149 = vadd.f32 %v4147, %v4148
          %v4150 = vsel %vm599, %v3925, 0.0
          %v4151 = vadd.f32 %v4149, %v4150
          %v4152 = vsel %vm599, %v3926, 0.0
          %v4153 = vadd.f32 %v4151, %v4152
          %v4154 = vrot.slane %v4153, 4
          %v4155 = vadd.f32 %v4153, %v4154
          %v4156 = vrot.slane %v4155, 2
          %v4157 = vadd.f32 %v4155, %v4156
          %v4158 = vrot.slane %v4157, 1
          %v4159 = vadd.f32 %v4157, %v4158
          %v4160 = vsel %vm599, %v3927, 0.0
          %v4161 = vsel %vm599, %v3928, 0.0
          %v4162 = vadd.f32 %v4160, %v4161
          %v4163 = vsel %vm599, %v3929, 0.0
          %v4164 = vadd.f32 %v4162, %v4163
          %v4165 = vsel %vm599, %v3930, 0.0
          %v4166 = vadd.f32 %v4164, %v4165
          %v4167 = vsel %vm599, %v3931, 0.0
          %v4168 = vadd.f32 %v4166, %v4167
          %v4169 = vsel %vm599, %v3932, 0.0
          %v4170 = vadd.f32 %v4168, %v4169
          %v4171 = vsel %vm599, %v3933, 0.0
          %v4172 = vadd.f32 %v4170, %v4171
          %v4173 = vsel %vm599, %v3934, 0.0
          %v4174 = vadd.f32 %v4172, %v4173
          %v4175 = vsel %vm599, %v3935, 0.0
          %v4176 = vadd.f32 %v4174, %v4175
          %v4177 = vsel %vm599, %v3936, 0.0
          %v4178 = vadd.f32 %v4176, %v4177
          %v4179 = vsel %vm599, %v3937, 0.0
          %v4180 = vadd.f32 %v4178, %v4179
          %v4181 = vsel %vm599, %v3938, 0.0
          %v4182 = vadd.f32 %v4180, %v4181
          %v4183 = vsel %vm599, %v3939, 0.0
          %v4184 = vadd.f32 %v4182, %v4183
          %v4185 = vsel %vm599, %v3940, 0.0
          %v4186 = vadd.f32 %v4184, %v4185
          %v4187 = vsel %vm599, %v3941, 0.0
          %v4188 = vadd.f32 %v4186, %v4187
          %v4189 = vsel %vm599, %v3942, 0.0
          %v4190 = vadd.f32 %v4188, %v4189
          %v4191 = vrot.slane %v4190, 4
          %v4192 = vadd.f32 %v4190, %v4191
          %v4193 = vrot.slane %v4192, 2
          %v4194 = vadd.f32 %v4192, %v4193
          %v4195 = vrot.slane %v4194, 1
          %v4196 = vadd.f32 %v4194, %v4195
          %v4197 = vsel %vm599, %v3943, 0.0
          %v4198 = vsel %vm599, %v3944, 0.0
          %v4199 = vadd.f32 %v4197, %v4198
          %v4200 = vsel %vm599, %v3945, 0.0
          %v4201 = vadd.f32 %v4199, %v4200
          %v4202 = vsel %vm599, %v3946, 0.0
          %v4203 = vadd.f32 %v4201, %v4202
          %v4204 = vsel %vm599, %v3947, 0.0
          %v4205 = vadd.f32 %v4203, %v4204
          %v4206 = vsel %vm599, %v3948, 0.0
          %v4207 = vadd.f32 %v4205, %v4206
          %v4208 = vsel %vm599, %v3949, 0.0
          %v4209 = vadd.f32 %v4207, %v4208
          %v4210 = vsel %vm599, %v3950, 0.0
          %v4211 = vadd.f32 %v4209, %v4210
          %v4212 = vsel %vm599, %v3951, 0.0
          %v4213 = vadd.f32 %v4211, %v4212
          %v4214 = vsel %vm599, %v3952, 0.0
          %v4215 = vadd.f32 %v4213, %v4214
          %v4216 = vsel %vm599, %v3953, 0.0
          %v4217 = vadd.f32 %v4215, %v4216
          %v4218 = vsel %vm599, %v3954, 0.0
          %v4219 = vadd.f32 %v4217, %v4218
          %v4220 = vsel %vm599, %v3955, 0.0
          %v4221 = vadd.f32 %v4219, %v4220
          %v4222 = vsel %vm599, %v3956, 0.0
          %v4223 = vadd.f32 %v4221, %v4222
          %v4224 = vsel %vm599, %v3957, 0.0
          %v4225 = vadd.f32 %v4223, %v4224
          %v4226 = vsel %vm599, %v3958, 0.0
          %v4227 = vadd.f32 %v4225, %v4226
          %v4228 = vrot.slane %v4227, 4
          %v4229 = vadd.f32 %v4227, %v4228
          %v4230 = vrot.slane %v4229, 2
          %v4231 = vadd.f32 %v4229, %v4230
          %v4232 = vrot.slane %v4231, 1
          %v4233 = vadd.f32 %v4231, %v4232
          %v4234 = vsel %vm599, %v3959, 0.0
          %v4235 = vsel %vm599, %v3960, 0.0
          %v4236 = vadd.f32 %v4234, %v4235
          %v4237 = vsel %vm599, %v3961, 0.0
          %v4238 = vadd.f32 %v4236, %v4237
          %v4239 = vsel %vm599, %v3962, 0.0
          %v4240 = vadd.f32 %v4238, %v4239
          %v4241 = vsel %vm599, %v3963, 0.0
          %v4242 = vadd.f32 %v4240, %v4241
          %v4243 = vsel %vm599, %v3964, 0.0
          %v4244 = vadd.f32 %v4242, %v4243
          %v4245 = vsel %vm599, %v3965, 0.0
          %v4246 = vadd.f32 %v4244, %v4245
          %v4247 = vsel %vm599, %v3966, 0.0
          %v4248 = vadd.f32 %v4246, %v4247
          %v4249 = vsel %vm599, %v3967, 0.0
          %v4250 = vadd.f32 %v4248, %v4249
          %v4251 = vsel %vm599, %v3968, 0.0
          %v4252 = vadd.f32 %v4250, %v4251
          %v4253 = vsel %vm599, %v3969, 0.0
          %v4254 = vadd.f32 %v4252, %v4253
          %v4255 = vsel %vm599, %v3970, 0.0
          %v4256 = vadd.f32 %v4254, %v4255
          %v4257 = vsel %vm599, %v3971, 0.0
          %v4258 = vadd.f32 %v4256, %v4257
          %v4259 = vsel %vm599, %v3972, 0.0
          %v4260 = vadd.f32 %v4258, %v4259
          %v4261 = vsel %vm599, %v3973, 0.0
          %v4262 = vadd.f32 %v4260, %v4261
          %v4263 = vsel %vm599, %v3974, 0.0
          %v4264 = vadd.f32 %v4262, %v4263
          %v4265 = vrot.slane %v4264, 4
          %v4266 = vadd.f32 %v4264, %v4265
          %v4267 = vrot.slane %v4266, 2
          %v4268 = vadd.f32 %v4266, %v4267
          %v4269 = vrot.slane %v4268, 1
          %v4270 = vadd.f32 %v4268, %v4269
          %v4271 = vpack.c.bf16 %v594, %v594
          %v4272 = vld [vmem:[%s6] sm:$0xf]
          %v4273 = vld [vmem:[%s6 + $0x4] sm:$0xf]
          %v4274 = vld [vmem:[%s6 + $0x8] sm:$0xf]
          %v4275 = vld [vmem:[%s6 + $0xc] sm:$0xf]
          %v4276 = vpack.c.bf16 %v4011, %v4011
          %v4277 = vpack.c.bf16 %v4048, %v4048
          %v4278 = vpack.c.bf16 %v4085, %v4085
          %v4279 = vpack.c.bf16 %v4122, %v4122
          %v4280 = vpack.c.bf16 %v4159, %v4159
          %v4281 = vpack.c.bf16 %v4196, %v4196
          %v4282 = vpack.c.bf16 %v4233, %v4233
          %v4283 = vpack.c.bf16 %v4270, %v4270
          %v4284 = vld [vmem:[%s7] sm:$0xf]
          %v4285 = vld [vmem:[%s7 + $0x4] sm:$0xf]
          %v4286 = vld [vmem:[%s7 + $0x8] sm:$0xf]
          %v4287 = vld [vmem:[%s7 + $0xc] sm:$0xf]
          %v4296 = vunpack.c.l.b16 %v4276
          %v4297 = vunpack.c.l.b16 %v4277
          %v4298 = vunpack.c.l.b16 %v4278
          %v4299 = vunpack.c.l.b16 %v4279
          %v4300 = vunpack.c.l.b16 %v4280
          %v4301 = vunpack.c.l.b16 %v4281
          %v4302 = vunpack.c.l.b16 %v4282
          %v4303 = vunpack.c.l.b16 %v4283
          %v4304 = vsel %vm3285, %v4297, %v4296
          %v4305 = vsel %vm3287, %v4298, %v4304
          %v4306 = vsel %vm3289, %v4299, %v4305
          %v4307 = vsel %vm3291, %v4300, %v4306
          %v4308 = vsel %vm3293, %v4301, %v4307
          %v4309 = vsel %vm3295, %v4302, %v4308
          %v4310 = vsel %vm3297, %v4303, %v4309
          %v4311 = vpack.c.b16 %v4310, %v4310
          %v4316 = vunpack.c.l.b16 %v4284
          %v4317 = vunpack.c.l.b16 %v4285
          %v4318 = vunpack.c.l.b16 %v4286
          %v4319 = vunpack.c.l.b16 %v4287
          %v4320 = vpack.c.b16 %v4317, %v4316
          %v4321 = vpack.c.b16 %v4319, %v4318
          %v4325 = vsel %vm599, %v4311, 0
          %4327 = vmatprep.subr.bf16.mxu0 0
          %4328 = vmatpush1.bf16.msra.mxu0 %v4320
          %4329 = vmatprep.subr.bf16.mxu0 0
          %4330 = vmatpush1.bf16.msra.mxu0 %v4321
          %4331 = vmatprep.subr.bf16.mxu0 0
          %4332 = vmatpush1.bf16.msra.mxu0 0
          %4333 = vmatprep.subr.bf16.mxu0 0
          %4334 = vmatpush1.bf16.msra.mxu0 0
          %4335 = vmatprep.subr.bf16.mxu0 0
          %4336 = vmatpush1.bf16.msra.mxu0 0
          %4337 = vmatprep.subr.bf16.mxu0 0
          %4338 = vmatpush1.bf16.msra.mxu0 0
          %4339 = vmatprep.subr.bf16.mxu0 0
          %4340 = vmatpush1.bf16.msra.mxu0 0
          %4341 = vmatprep.subr.bf16.mxu0 0
          %4342 = vmatpush1.bf16.msra.mxu0 0
          %4343 = vmatprep.subr.bf16.mxu0 0
          %4344 = vmatpush1.bf16.msra.mxu0 0
          %4345 = vmatprep.subr.bf16.mxu0 0
          %4346 = vmatpush1.bf16.msra.mxu0 0
          %4347 = vmatprep.subr.bf16.mxu0 0
          %4348 = vmatpush1.bf16.msra.mxu0 0
          %4349 = vmatprep.subr.bf16.mxu0 0
          %4350 = vmatpush1.bf16.msra.mxu0 0
          %4351 = vmatprep.subr.bf16.mxu0 0
          %4352 = vmatpush1.bf16.msra.mxu0 0
          %4353 = vmatprep.subr.bf16.mxu0 0
          %4354 = vmatpush1.bf16.msra.mxu0 0
          %4355 = vmatprep.subr.bf16.mxu0 0
          %4356 = vmatpush1.bf16.msra.mxu0 0
          %4357 = vmatprep.subr.bf16.mxu0 0
          %4358 = vmatpush1.bf16.msra.mxu0 0
          %4359 = vmatprep.mubr.bf16.mxu0 0
          %4360 = vmatmul.mubr.bf16.gmra.mrb[0].mxu0 %v4325
          %v4361 = vpop.f32.mrb[0].mxu0
          %v4362 = vadd.f32 0.0, %v4361
          %v4363 = vpop.f32.mrb[0].mxu0
          %v4364 = vpop.f32.mrb[0].mxu0
          %v4365 = vpop.f32.mrb[0].mxu0
          %4366 = vdwg.mxu0
          %4368 = vrot.lane.b32.xlu0 %v4271, 32
          %v4369 = vpop.permute.xlu0 %4368
          %v4374 = vunpack.c.l.b16 %v4272
          %v4375 = vunpack.c.l.b16 %v4273
          %v4376 = vunpack.c.l.b16 %v4274
          %v4377 = vunpack.c.l.b16 %v4275
          %v4378 = vpack.c.b16 %v4375, %v4374
          %v4379 = vpack.c.b16 %v4377, %v4376
          %v4383 = vsel %vm599, %v4369, 0
          %4385 = vmatprep.subr.bf16.mxu0 0
          %4386 = vmatpush1.bf16.msra.mxu0 %v4378
          %4387 = vmatprep.subr.bf16.mxu0 0
          %4388 = vmatpush1.bf16.msra.mxu0 %v4379
          %4389 = vmatprep.subr.bf16.mxu0 0
          %4390 = vmatpush1.bf16.msra.mxu0 0
          %4391 = vmatprep.subr.bf16.mxu0 0
          %4392 = vmatpush1.bf16.msra.mxu0 0
          %4393 = vmatprep.subr.bf16.mxu0 0
          %4394 = vmatpush1.bf16.msra.mxu0 0
          %4395 = vmatprep.subr.bf16.mxu0 0
          %4396 = vmatpush1.bf16.msra.mxu0 0
          %4397 = vmatprep.subr.bf16.mxu0 0
          %4398 = vmatpush1.bf16.msra.mxu0 0
          %4399 = vmatprep.subr.bf16.mxu0 0
          %4400 = vmatpush1.bf16.msra.mxu0 0
          %4401 = vmatprep.subr.bf16.mxu0 0
          %4402 = vmatpush1.bf16.msra.mxu0 0
          %4403 = vmatprep.subr.bf16.mxu0 0
          %4404 = vmatpush1.bf16.msra.mxu0 0
          %4405 = vmatprep.subr.bf16.mxu0 0
          %4406 = vmatpush1.bf16.msra.mxu0 0
          %4407 = vmatprep.subr.bf16.mxu0 0
          %4408 = vmatpush1.bf16.msra.mxu0 0
          %4409 = vmatprep.subr.bf16.mxu0 0
          %4410 = vmatpush1.bf16.msra.mxu0 0
          %4411 = vmatprep.subr.bf16.mxu0 0
          %4412 = vmatpush1.bf16.msra.mxu0 0
          %4413 = vmatprep.subr.bf16.mxu0 0
          %4414 = vmatpush1.bf16.msra.mxu0 0
          %4415 = vmatprep.subr.bf16.mxu0 0
          %4416 = vmatpush1.bf16.msra.mxu0 0
          %4417 = vmatprep.mubr.bf16.mxu0 0
          %4418 = vmatmul.mubr.bf16.gmra.mrb[0].mxu0 %v4383
          %v4419 = vpop.f32.mrb[0].mxu0
          %v4420 = vadd.f32 %v4362, %v4419
          %v4421 = vpop.f32.mrb[0].mxu0
          %v4422 = vpop.f32.mrb[0].mxu0
          %v4423 = vpop.f32.mrb[0].mxu0
          %4424 = vdwg.mxu0
          %v4425 = vld [vmem:[%s8] sm:$0x1]
          %v4427 = vlaneseq
          %v4428 = vshrl.u32 %v4427, 7
          %v4429 = vsub.s32 0, %v4428
          %v4430 = vrot.slane %v4425, %v4429
          %v4432 = vadd.f32 %v4420, %v4430
          %v4433 = vtanh.pop %v4432
          %4434 = vst.msk [vmem:[#allocation8] sm:$0xff] %vm599, %v4433
        $region64: #{tpu_custom_call.1} parent=55 // pred_fallthru
          _
        %s4435 = sand.u32 %s248, 1
        %s4436 = scalar_lea.sflag [#allocation4], %s4435
        %s4437 = sand.u32 %s248, 1
        %s4438 = smul.addr %s4437, 8
        %s4439 = scalar_lea.vmem [#allocation3], %s4438
        %s4440 = sand.u32 %s31, 1
        %s4441 = scalar_lea.sflag [#allocation6], %s4440
        %s4442 = sand.u32 %s274, 1
        %s4443 = smul.addr %s4442, 8
        %s4444 = scalar_lea.vmem [#allocation5], %s4443
        // Predicated region
        $region65: #{tpu_custom_call.1} parent=55 // pred_check
          %p4445 = pneg %p258
        $region66: #{tpu_custom_call.1} parent=55 // pred_check_branch
          %4447 = sbr.rel (%p4445) target = $region68
        $region67: #{tpu_custom_call.1} parent=55 // pred_region
          %s4449 = ssub.s32 128, 128
          %4450 = vsyncadd %s4436, %s4449
          %s4451 = smul.addr %s31, 128
          %s4452 = scalar_lea.hbm %s9, %s4451
          %s4454 = sshll.u32 %s4439, 4
          %s4455 = int_to_ptr.vmem [resolvable:$true] %s4454
          %4457 = dma.vmem_to_hbm [thread:$0]  %s4455, 128, %s4452, %s4436
        $region68: #{tpu_custom_call.1} parent=55 // pred_fallthru
          _
        // Predicated region
        $region69: #{tpu_custom_call.1} parent=55 // pred_check
          %p4458 = pneg %p284
        $region70: #{tpu_custom_call.1} parent=55 // pred_check_branch
          %4460 = sbr.rel (%p4458) target = $region72
        $region71: #{tpu_custom_call.1} parent=55 // pred_region
          %s4462 = ssub.s32 128, 128
          %4463 = vsyncadd %s4441, %s4462
          %s4464 = smul.addr %s31, 128
          %s4465 = scalar_lea.hbm %s10, %s4464
          %s4467 = sshll.u32 %s4444, 4
          %s4468 = int_to_ptr.vmem [resolvable:$true] %s4467
          %4470 = dma.vmem_to_hbm [thread:$0]  %s4468, 128, %s4465, %s4441
        $region72: #{tpu_custom_call.1} parent=55 // pred_fallthru
          _
        // Predicated region
        $region73: #{tpu_custom_call.1} parent=55 // pred_check
          %p4471 = pneg %p305
        $region74: #{tpu_custom_call.1} parent=55 // pred_check_branch
          %4473 = sbr.rel (%p4471) target = $region76
        $region75: #{tpu_custom_call.1} parent=55 // pred_region
          %s4475 = ssub.s32 128, 128
          %4476 = vsyncadd [#allocation6], %s4475
          %s4478 = sshll.u32 [#allocation7], 4
          %s4479 = int_to_ptr.vmem [resolvable:$true] %s4478
          %4481 = dma.vmem_to_hbm [thread:$0]  %s4479, 128, %s11, [#allocation6]
        $region76: #{tpu_custom_call.1} parent=55 // pred_fallthru
          _
        // Predicated region
        $region77: #{tpu_custom_call.1} parent=55 // pred_check
          %p4482 = pneg %p326
        $region78: #{tpu_custom_call.1} parent=55 // pred_check_branch
          %4484 = sbr.rel (%p4482) target = $region80
        $region79: #{tpu_custom_call.1} parent=55 // pred_region
          %s4486 = ssub.s32 128, 128
          %4487 = vsyncadd [#allocation9], %s4486
          %s4489 = sshll.u32 [#allocation8], 4
          %s4490 = int_to_ptr.vmem [resolvable:$true] %s4489
          %4492 = dma.vmem_to_hbm [thread:$0]  %s4490, 128, %s12, [#allocation9]
        $region80: #{tpu_custom_call.1} parent=55 // pred_fallthru
          _
        // Predicated region
        $region81: #{tpu_custom_call.1} parent=55 // pred_check
          %p4493 = pneg %p305
        $region82: #{tpu_custom_call.1} parent=55 // pred_check_branch
          %4495 = sbr.rel (%p4493) target = $region84
        $region83: #{tpu_custom_call.1} parent=55 // pred_region
          %4496 = dma.done [#allocation6], 128
        $region84: #{tpu_custom_call.1} parent=55 // pred_fallthru
          _
        // Predicated region
        $region85: #{tpu_custom_call.1} parent=55 // pred_check
          %p4497 = pneg %p326
        $region86: #{tpu_custom_call.1} parent=55 // pred_check_branch
          %4499 = sbr.rel (%p4497) target = $region88
        $region87: #{tpu_custom_call.1} parent=55 // pred_region
          %4500 = dma.done [#allocation9], 128
        $region88: #{tpu_custom_call.1} parent=55 // pred_fallthru
          _
      $region56: #{tpu_custom_call.1} parent=5 // pred_fallthru
        _
      %p4501 = scmp.le.s32.totalorder 2, %s26
      // Predicated region
      $region89: #{tpu_custom_call.1} parent=5 // pred_check
        %p4502 = pneg %p4501
      $region90: #{tpu_custom_call.1} parent=5 // pred_check_branch
        %4504 = sbr.rel (%p4502) target = $region92
      $region91: #{tpu_custom_call.1} parent=5 // pred_region
        %s4505 = ssub.s32 %s26, 2
        // Predicated region
        $region93: #{tpu_custom_call.1} parent=91 // pred_check
          %p4506 = pneg %p264
        $region94: #{tpu_custom_call.1} parent=91 // pred_check_branch
          %4508 = sbr.rel (%p4506) target = $region96
        $region95: #{tpu_custom_call.1} parent=91 // pred_region
          %s4509 = sand.u32 %s249, 1
          %s4510 = scalar_lea.sflag [#allocation4], %s4509
          %s4511 = sand.u32 %s249, 1
          %s4512 = smul.addr %s4511, 8
          %s4513 = scalar_lea.vmem [#allocation3], %s4512
          %4514 = dma.done %s4510, 128
        $region96: #{tpu_custom_call.1} parent=91 // pred_fallthru
          _
        // Predicated region
        $region97: #{tpu_custom_call.1} parent=91 // pred_check
          %p4515 = pneg %p290
        $region98: #{tpu_custom_call.1} parent=91 // pred_check_branch
          %4517 = sbr.rel (%p4515) target = $region100
        $region99: #{tpu_custom_call.1} parent=91 // pred_region
          %s4518 = sand.u32 %s32, 1
          %s4519 = scalar_lea.sflag [#allocation6], %s4518
          %s4520 = sand.u32 %s275, 1
          %s4521 = smul.addr %s4520, 8
          %s4522 = scalar_lea.vmem [#allocation5], %s4521
          %4523 = dma.done %s4519, 128
        $region100: #{tpu_custom_call.1} parent=91 // pred_fallthru
          _
      $region92: #{tpu_custom_call.1} parent=5 // pred_fallthru
        _
    $region6: #{tpu_custom_call.1} parent=1 // loop_footer
      %s30 = sadd.s32 1, %s26
    $region7: #{tpu_custom_call.1} parent=1 // loop_footer_branch
      %25 = sbr.rel target = $region3
    $region8: #{tpu_custom_call.1} parent=1 // loop_exit
      _
    %4524 = vsyncpa [#allocation4], 1
    %s4525 = scalar_lea.sflag [#allocation4], 1
    %4526 = vsyncpa %s4525, 1
    %4527 = vsyncpa [#allocation6], 1
    %s4528 = scalar_lea.sflag [#allocation6], 1
    %4529 = vsyncpa %s4528, 1
    %4530 = vsyncpa [#allocation9], 1

</llo_original>
